<compile_context>
chip_gen: v6e
topology: v6e:2x2x1
jax: 0.10.0
libtpu: 0.0.40
codegen_flags: <defaults>
</compile_context>

<pallas_src>
import math

import jax
import jax.numpy as jnp
from jax.experimental import pallas as pl
from jax.experimental.pallas import tpu as pltpu

BN_EPS = 1e-5    # torch.nn.BatchNorm1d default eps
L2_EPS = 1e-12   # torch.nn.functional.normalize default eps


def _netrvlad_kernel(x_ref, cw_ref, gw_ref, hw_ref, out_ref,
                     vlad_ref, hid_ref, gnorm_ref):
    k = pl.program_id(0)
    nk = pl.num_programs(0)
    B, M, F = x_ref.shape
    C, TF, D = hw_ref.shape          # streamed hidden1-weight tile: (C, tf, D)
    KF = vlad_ref.shape[0]           # number of F tiles (== nk, static)

    # ---- k == 0: assignment softmax + residual-less VLAD + intra-norm --------
    @pl.when(k == 0)
    def _prologue():
        # x only ever feeds the MXU, so cast to bf16 here (no wrapper-side HBM
        # astype round trip; a no-op if the caller already supplies bf16).
        xb = x_ref[...].astype(jnp.bfloat16)                       # (B, M, F)
        xi = xb.reshape(B * M, F)
        act = jnp.dot(xi, cw_ref[...],
                      preferred_element_type=jnp.float32)          # (B*M, C)
        # BatchNorm1d (training statistics, gamma=1, beta=0); single-pass
        # variance clamped at 0 so cancellation can never produce NaN in rsqrt.
        mean = jnp.mean(act, axis=0, keepdims=True)
        var = jnp.maximum(
            jnp.mean(act * act, axis=0, keepdims=True) - mean * mean, 0.0)
        act = (act - mean) * jax.lax.rsqrt(var + BN_EPS)
        # softmax(dim=-1); EUP approximate reciprocal for the denominator
        # (systematic ~2^-12 relative deviation vs. the f32 reference).
        act = act - jnp.max(act, axis=-1, keepdims=True)
        e = jnp.exp(act)
        act = e * pl.reciprocal(jnp.sum(e, axis=-1, keepdims=True), approx=True)
        # Residual-less VLAD aggregation A^T X per batch (bf16 MXU, f32 accum).
        act3 = act.reshape(B, M, C).astype(jnp.bfloat16)
        vlad = jnp.einsum('bmc,bmf->bcf', act3, xb,
                          preferred_element_type=jnp.float32)      # (B, C, F)
        # Intra-normalize over f (== F.normalize(dim=1) on the (B, F, C) view).
        ssq = jnp.sum(vlad * vlad, axis=-1, keepdims=True)         # (B, C, 1)
        inv = jax.lax.rsqrt(jnp.maximum(ssq, L2_EPS * L2_EPS))
        vlad = vlad * inv
        # Global L2 normalization is a per-batch scalar and the hidden1 matmul
        # is linear, so only its scale is kept (from the per-cluster sums, no
        # extra full-tensor pass) and applied to the accumulator in the epilogue.
        gsq = jnp.sum(ssq * inv * inv, axis=1)                     # (B, 1)
        gnorm_ref[...] = jax.lax.rsqrt(jnp.maximum(gsq, L2_EPS * L2_EPS))
        # Stash the intra-normalized VLAD (bf16 MXU operand) per F-tile in the
        # fused (B, C*TF) lane layout consumed by the deep-K matmul below.  The
        # cluster -> lane-offset shuffle is paid exactly once here; every grid
        # step is then a single leading-axis ref read with zero slicing.
        vb = vlad.astype(jnp.bfloat16)
        for kk in range(KF):
            for c in range(C):
                vlad_ref[kk, :, c * TF:(c + 1) * TF] = (
                    vb[:, c, kk * TF:(kk + 1) * TF])
        hid_ref[...] = jnp.zeros_like(hid_ref)

    # ---- every k: ONE deep-K (K = C*TF) MXU matmul for this F-tile -----------
    # hw tile rows are ordered c*TF + f (weights pre-permuted to (C, F, D)), so
    # collapsing its two leading dims is a free reshape matching the VLAD stash.
    hw2 = hw_ref[...].reshape(C * TF, D)
    hid_ref[...] += jnp.dot(vlad_ref[k], hw2,
                            preferred_element_type=jnp.float32)    # (B, D) f32

    # ---- last k: factored global-L2 scale + context gating -------------------
    @pl.when(k == nk - 1)
    def _epilogue():
        hidden = hid_ref[...] * gnorm_ref[...]                     # (B, D) f32
        gates = jnp.dot(hidden, gw_ref[...],
                        preferred_element_type=jnp.float32)
        gmean = jnp.mean(gates, axis=0, keepdims=True)
        gvar = jnp.maximum(
            jnp.mean(gates * gates, axis=0, keepdims=True) - gmean * gmean, 0.0)
        gates = (gates - gmean) * jax.lax.rsqrt(gvar + BN_EPS)
        gates = jax.nn.sigmoid(gates)
        # TODO(synk): keep output_dim a multiple of 128 in production (or pad
        # the output block) -- D < 128 makes this a masked, lane-sparse store.
        out_ref[...] = (hidden * gates).astype(out_ref.dtype)


def prepare_params(cluster_weights, hidden1_weights, gating_weights):
    """One-time parameter preprocessing (do at module init in production).

    * bf16 copies of the MXU-operand weights so the kernel never pays a
      per-call f32->bf16 HBM conversion pass.
    * hidden1_weights (rows ordered f*C + c, the PyTorch flatten order) is
      permuted once to the (C, F, D) streaming layout whose (C, tf, D) tiles
      collapse to (C*tf, D) with a free reshape inside the kernel.
    * gating weights stay f32: the gating path is tiny and all epilogue math is
      kept in f32 (v5e has no bf16 VPU/EUP).
    """
    F, C = cluster_weights.shape
    D = hidden1_weights.shape[1]
    assert hidden1_weights.shape[0] == C * F
    cw_b16 = cluster_weights.astype(jnp.bfloat16)                      # (F, C)
    hw_cfd = jnp.transpose(hidden1_weights.reshape(F, C, D),
                           (1, 0, 2)).astype(jnp.bfloat16)             # (C, F, D)
    gw_f32 = gating_weights.astype(jnp.float32)                        # (D, D)
    return cw_b16, hw_cfd, gw_f32


def _vmem_budget_bytes():
    """~85% of the device's physical VMEM (conservative fallback: 64 MiB)."""
    cap = 64 * 1024 * 1024
    try:
        info = pltpu.get_tpu_info()
        cap = int(getattr(info, "vmem_capacity_bytes", cap)) or cap
    except Exception:
        pass
    cap = max(32 * 1024 * 1024, min(cap, 128 * 1024 * 1024))
    return int(cap * 0.85)


def _choose_tile_f(B, M, F, C, D, *, x_bytes, budget, max_tile_f=None):
    """Largest F-tile whose pipeline + scratch footprint fits the VMEM budget.

    Every pipeline-managed block is counted with 2 buffers, so the fit does not
    rely on single-buffering hints for the constant-index (resident) blocks.
    """
    fixed = (2 * B * M * F * x_bytes            # resident x block
             + 2 * (F * C * 2 + D * D * 4)      # cluster / gating weights
             + 2 * B * D * 4                    # output block
             + B * C * F * 2                    # fused-layout VLAD scratch (bf16)
             + B * D * 4 + B * 4)               # hidden accumulator + L2 scale
    if F % 128 == 0:
        cands = [t for t in range(F, 127, -128) if F % t == 0]
    else:
        cands = [F]                             # un-tiled fallback
    if max_tile_f is not None:
        capped = [t for t in cands if t <= max_tile_f]
        cands = capped if capped else [cands[-1]]
    for tf in cands:
        if fixed + 2 * C * tf * D * 2 <= budget:   # double-buffered hw stream
            return tf
    return cands[-1]


def netrvlad_forward(x, cw_b16, hw_cfd, gw, *, max_tile_f=None):
    """NetRVLAD forward.  x: (B, M, F); params from prepare_params().
    Returns (B, output_dim) float32."""
    B, M, F = x.shape
    C, F2, D = hw_cfd.shape
    assert F2 == F and cw_b16.shape == (F, C) and gw.shape == (D, D)

    budget = _vmem_budget_bytes()
    tf = _choose_tile_f(B, M, F, C, D, x_bytes=x.dtype.itemsize,
                        budget=budget, max_tile_f=max_tile_f)
    assert F % tf == 0
    kf = F // tf

    # TODO(synk): where BlockSpec pipeline_mode is honored by the TPU pipeline,
    # mark the constant-index blocks (x/cw/gw/out) with pl.Buffered(1) and the
    # streamed hw tile with pl.Buffered(3) when kf >= 3: it reclaims the
    # redundant second buffer of the resident (B, M, F) x block (the dominant
    # VMEM tenant under v7x's 64 MiB) and hides two extra weight-tile DMAs
    # behind the heavy k == 0 step.
    # TODO(synk): v7x's second TensorCore stays idle behind the single
    # "arbitrary" reduction axis; a clean fix is a two-call split (assignment +
    # VLAD, then a D-parallel hidden1/gating call), since context gating mixes
    # all of D and cannot be sliced by a parallel output axis in one pass.
    grid_spec = pltpu.PrefetchScalarGridSpec(
        num_scalar_prefetch=0,
        grid=(kf,),
        in_specs=[
            pl.BlockSpec((B, M, F), lambda k: (0, 0, 0)),    # resident activations
            pl.BlockSpec((F, C), lambda k: (0, 0)),          # cluster weights (bf16)
            pl.BlockSpec((D, D), lambda k: (0, 0)),          # gating weights (f32)
            pl.BlockSpec((C, tf, D), lambda k: (0, k, 0)),   # streamed hidden1 tiles
        ],
        out_specs=pl.BlockSpec((B, D), lambda k: (0, 0)),
        scratch_shapes=[
            pltpu.VMEM((kf, B, C * tf), jnp.bfloat16),       # fused-layout VLAD tiles
            pltpu.VMEM((B, D), jnp.float32),                 # hidden1 accumulator
            pltpu.VMEM((B, 1), jnp.float32),                 # factored global-L2 scale
        ],
    )
    return pl.pallas_call(
        _netrvlad_kernel,
        out_shape=jax.ShapeDtypeStruct((B, D), jnp.float32),
        grid_spec=grid_spec,
        compiler_params=pltpu.CompilerParams(
            dimension_semantics=("arbitrary",),              # F is a reduction axis
            vmem_limit_bytes=budget,
        ),
    )(x, cw_b16, gw, hw_cfd)


def netrvlad_ref(x, cw, hw, gw):
    """Pure-JAX f32 reference mirroring the PyTorch forward literally."""
    B, M, Fdim = x.shape
    C = cw.shape[1]
    xi = x.reshape(B * M, Fdim)
    act = xi @ cw
    act = (act - act.mean(0)) / jnp.sqrt(act.var(0) + BN_EPS)
    act = jax.nn.softmax(act, axis=-1)
    act3 = act.reshape(B, M, C).transpose(0, 2, 1)                     # (B, C, M)
    vlad = jnp.matmul(act3, x)                                         # (B, C, F)
    vlad = vlad.transpose(0, 2, 1)                                     # (B, F, C)
    vlad = vlad / jnp.maximum(jnp.linalg.norm(vlad, axis=1, keepdims=True), L2_EPS)
    vlad = vlad.reshape(B, C * Fdim)                                   # row order f*C + c
    vlad = vlad / jnp.maximum(jnp.linalg.norm(vlad, axis=1, keepdims=True), L2_EPS)
    vlad = vlad @ hw
    gates = vlad @ gw
    gates = (gates - gates.mean(0)) / jnp.sqrt(gates.var(0) + BN_EPS)
    return vlad * jax.nn.sigmoid(gates)


# TODO(synk): BatchNorm1d running-mean/var buffer updates (a training-time side
# effect in PyTorch) are not emitted; the kernel matches one training-mode forward.

if __name__ == "__main__":
    # feature_size=256, max_samples=16, cluster_size=8, output_dim=32, batch=8.
    # max_tile_f=128 forces two F tiles so the streamed deep-K accumulation path
    # (prologue at k=0, accumulate every k, epilogue at the last k) is exercised.
    B, M, Fdim, C, D = 8, 16, 256, 8, 32

    key = jax.random.PRNGKey(0)
    kx, kc, kh, kg = jax.random.split(key, 4)
    x = jax.random.normal(kx, (B, M, Fdim), jnp.float32)
    cluster_weights = jax.random.normal(kc, (Fdim, C), jnp.float32) / math.sqrt(Fdim)
    hidden1_weights = jax.random.normal(kh, (C * Fdim, D), jnp.float32) / math.sqrt(C)
    gating_weights = jax.random.normal(kg, (D, D), jnp.float32) / math.sqrt(D)

    cw_b16, hw_cfd, gw_f32 = prepare_params(cluster_weights, hidden1_weights,
                                            gating_weights)
    out = jax.block_until_ready(
        netrvlad_forward(x, cw_b16, hw_cfd, gw_f32, max_tile_f=128))
    ref = netrvlad_ref(x, cluster_weights, hidden1_weights, gating_weights)

    assert out.shape == (B, D)
    assert bool(jnp.allclose(out, ref, atol=5e-2, rtol=5e-2)), \
        "kernel mismatch vs reference"
    print("KERNEL_OK")
</pallas_src>

<mosaic_0001>
module attributes {stable_mosaic.version = 11 : i64} {
  func.func @_netrvlad_kernel(%arg0: i32, %arg1: memref<8x16x256xf32, #tpu.memory_space<vmem>>, %arg2: memref<256x8xbf16, #tpu.memory_space<vmem>>, %arg3: memref<32x32xf32, #tpu.memory_space<vmem>>, %arg4: memref<8x128x32xbf16, #tpu.memory_space<vmem>>, %arg5: memref<8x32xf32, #tpu.memory_space<vmem>>, %arg6: memref<2x8x1024xbf16, #tpu.memory_space<vmem>>, %arg7: memref<8x32xf32, #tpu.memory_space<vmem>>, %arg8: memref<8x1xf32, #tpu.memory_space<vmem>>) attributes {dimension_semantics = [#tpu.dimension_semantics<arbitrary>], iteration_bounds = array<i64: 2>, scalar_prefetch = 0 : i64, scratch_operands = 3 : i64, tpu.core_type = #tpu.core_type<tc>, window_params = [{pipeline_mode = #tpu.pipeline_mode<synchronous>, transform_indices = @transform_0, window_bounds = array<i64: 8, 16, 256>}, {pipeline_mode = #tpu.pipeline_mode<synchronous>, transform_indices = @transform_1, window_bounds = array<i64: 256, 8>}, {pipeline_mode = #tpu.pipeline_mode<synchronous>, transform_indices = @transform_2, window_bounds = array<i64: 32, 32>}, {transform_indices = @transform_3, window_bounds = array<i64: 8, 128, 32>}, {pipeline_mode = #tpu.pipeline_mode<synchronous>, transform_indices = @transform_4, window_bounds = array<i64: 8, 32>}]} {
    %c0_i32 = arith.constant 0 : i32
    %0 = arith.cmpi eq, %arg0, %c0_i32 : i32
    %1 = arith.extui %0 : i1 to i32
    %c0_i32_0 = arith.constant 0 : i32
    %2 = arith.cmpi ne, %1, %c0_i32_0 : i32
    scf.if %2 {
      %c0_10 = arith.constant 0 : index
      %c0_11 = arith.constant 0 : index
      %c0_12 = arith.constant 0 : index
      %15 = vector.load %arg1[%c0_10, %c0_11, %c0_12] : memref<8x16x256xf32, #tpu.memory_space<vmem>>, vector<8x16x256xf32>
      %16 = arith.truncf %15 : vector<8x16x256xf32> to vector<8x16x256xbf16>
      %17 = vector.shape_cast %16 : vector<8x16x256xbf16> to vector<128x256xbf16>
      %c0_13 = arith.constant 0 : index
      %c0_14 = arith.constant 0 : index
      %18 = vector.load %arg2[%c0_13, %c0_14] : memref<256x8xbf16, #tpu.memory_space<vmem>>, vector<256x8xbf16>
      %cst_15 = arith.constant dense<0.000000e+00> : vector<128x8xf32>
      %19 = tpu.matmul %17, %18, %cst_15 {dimension_numbers = #tpu.dot_dimension_numbers<[1], [0], [0], [1], [0, 0, 1, 1], [], []>} : vector<128x256xbf16>, vector<256x8xbf16>, vector<128x8xf32> -> vector<128x8xf32>
      %cst_16 = arith.constant dense<0.000000e+00> : vector<8xf32>
      %20 = vector.multi_reduction <add>, %19, %cst_16 [0] : vector<128x8xf32> to vector<8xf32>
      %21 = vector.shape_cast %20 : vector<8xf32> to vector<1x8xf32>
      %cst_17 = arith.constant 1.280000e+02 : f32
      %22 = vector.broadcast %cst_17 : f32 to vector<1x8xf32>
      %23 = arith.divf %21, %22 : vector<1x8xf32>
      %24 = arith.mulf %19, %19 : vector<128x8xf32>
      %cst_18 = arith.constant dense<0.000000e+00> : vector<8xf32>
      %25 = vector.multi_reduction <add>, %24, %cst_18 [0] : vector<128x8xf32> to vector<8xf32>
      %26 = vector.shape_cast %25 : vector<8xf32> to vector<1x8xf32>
      %cst_19 = arith.constant 1.280000e+02 : f32
      %27 = vector.broadcast %cst_19 : f32 to vector<1x8xf32>
      %28 = arith.divf %26, %27 : vector<1x8xf32>
      %29 = arith.mulf %23, %23 : vector<1x8xf32>
      %30 = arith.subf %28, %29 : vector<1x8xf32>
      %cst_20 = arith.constant 0.000000e+00 : f32
      %31 = vector.broadcast %cst_20 : f32 to vector<1x8xf32>
      %32 = arith.maximumf %30, %31 : vector<1x8xf32>
      %33 = vector.broadcast %23 : vector<1x8xf32> to vector<128x8xf32>
      %34 = arith.subf %19, %33 : vector<128x8xf32>
      %cst_21 = arith.constant 9.99999974E-6 : f32
      %35 = vector.broadcast %cst_21 : f32 to vector<1x8xf32>
      %36 = arith.addf %32, %35 : vector<1x8xf32>
      %37 = math.rsqrt %36 : vector<1x8xf32>
      %38 = vector.broadcast %37 : vector<1x8xf32> to vector<128x8xf32>
      %39 = arith.mulf %34, %38 : vector<128x8xf32>
      %cst_22 = arith.constant dense<0xFF800000> : vector<128xf32>
      %40 = vector.multi_reduction <maximumf>, %39, %cst_22 [1] : vector<128x8xf32> to vector<128xf32>
      %41 = vector.shape_cast %40 : vector<128xf32> to vector<128x1xf32>
      %42 = vector.broadcast %41 : vector<128x1xf32> to vector<128x8xf32>
      %43 = arith.subf %39, %42 : vector<128x8xf32>
      %44 = math.exp %43 : vector<128x8xf32>
      %cst_23 = arith.constant dense<0.000000e+00> : vector<128xf32>
      %45 = vector.multi_reduction <add>, %44, %cst_23 [1] : vector<128x8xf32> to vector<128xf32>
      %46 = vector.shape_cast %45 : vector<128xf32> to vector<128x1xf32>
      %47 = tpu.reciprocal %46 {approx = true} : vector<128x1xf32> -> vector<128x1xf32>
      %48 = vector.broadcast %47 : vector<128x1xf32> to vector<128x8xf32>
      %49 = arith.mulf %44, %48 : vector<128x8xf32>
      %50 = vector.shape_cast %49 : vector<128x8xf32> to vector<8x16x8xf32>
      %51 = arith.truncf %50 : vector<8x16x8xf32> to vector<8x16x8xbf16>
      "tpu.trace_start"() <{level = 10 : i32, message = "bmc,bmf->bcf"}> : () -> ()
      %cst_24 = arith.constant dense<0.000000e+00> : vector<8x8x256xf32>
      %52 = tpu.matmul %51, %16, %cst_24 {dimension_numbers = #tpu.dot_dimension_numbers<[1], [1], [2], [2], [0, 0, 0, 2, 1, 2], [0], [0]>} : vector<8x16x8xbf16>, vector<8x16x256xbf16>, vector<8x8x256xf32> -> vector<8x8x256xf32>
      "tpu.trace_stop"() : () -> ()
      %53 = arith.mulf %52, %52 : vector<8x8x256xf32>
      %cst_25 = arith.constant dense<0.000000e+00> : vector<8x8xf32>
      %54 = vector.multi_reduction <add>, %53, %cst_25 [2] : vector<8x8x256xf32> to vector<8x8xf32>
      %55 = vector.shape_cast %54 : vector<8x8xf32> to vector<8x8x1xf32>
      %cst_26 = arith.constant 1.000000e-24 : f32
      %56 = vector.broadcast %cst_26 : f32 to vector<8x8x1xf32>
      %57 = arith.maximumf %55, %56 : vector<8x8x1xf32>
      %58 = math.rsqrt %57 : vector<8x8x1xf32>
      %59 = vector.broadcast %58 : vector<8x8x1xf32> to vector<8x8x256xf32>
      %60 = arith.mulf %52, %59 : vector<8x8x256xf32>
      %61 = arith.mulf %55, %58 : vector<8x8x1xf32>
      %62 = arith.mulf %61, %58 : vector<8x8x1xf32>
      %cst_27 = arith.constant dense<0.000000e+00> : vector<8x1xf32>
      %63 = vector.multi_reduction <add>, %62, %cst_27 [1] : vector<8x8x1xf32> to vector<8x1xf32>
      %cst_28 = arith.constant 1.000000e-24 : f32
      %64 = vector.broadcast %cst_28 : f32 to vector<8x1xf32>
      %65 = arith.maximumf %63, %64 : vector<8x1xf32>
      %66 = math.rsqrt %65 : vector<8x1xf32>
      %c0_29 = arith.constant 0 : index
      %c0_30 = arith.constant 0 : index
      %67 = vector.load %arg8[%c0_29, %c0_30] : memref<8x1xf32, #tpu.memory_space<vmem>>, vector<8x1xf32>
      tpu.vector_store %arg8[%c0_29, %c0_30], %66 {strides = array<i32>} : memref<8x1xf32, #tpu.memory_space<vmem>>, vector<8x1xf32>,
      %68 = arith.truncf %60 : vector<8x8x256xf32> to vector<8x8x256xbf16>
      %69 = vector.extract_strided_slice %68 {offsets = [0, 0, 0], sizes = [8, 1, 128], strides = [1, 1, 1]} : vector<8x8x256xbf16> to vector<8x1x128xbf16>
      %70 = vector.shape_cast %69 : vector<8x1x128xbf16> to vector<8x128xbf16>
      %c0_31 = arith.constant 0 : index
      %c0_32 = arith.constant 0 : index
      %c0_33 = arith.constant 0 : index
      %71 = vector.load %arg6[%c0_31, %c0_32, %c0_33] : memref<2x8x1024xbf16, #tpu.memory_space<vmem>>, vector<1x8x128xbf16>
      %72 = vector.shape_cast %71 : vector<1x8x128xbf16> to vector<8x128xbf16>
      %73 = vector.shape_cast %70 : vector<8x128xbf16> to vector<1x8x128xbf16>
      tpu.vector_store %arg6[%c0_31, %c0_32, %c0_33], %73 {strides = array<i32>} : memref<2x8x1024xbf16, #tpu.memory_space<vmem>>, vector<1x8x128xbf16>,
      %74 = vector.extract_strided_slice %68 {offsets = [0, 1, 0], sizes = [8, 1, 128], strides = [1, 1, 1]} : vector<8x8x256xbf16> to vector<8x1x128xbf16>
      %75 = vector.shape_cast %74 : vector<8x1x128xbf16> to vector<8x128xbf16>
      %c0_34 = arith.constant 0 : index
      %c0_35 = arith.constant 0 : index
      %c128 = arith.constant 128 : index
      %76 = vector.load %arg6[%c0_34, %c0_35, %c128] : memref<2x8x1024xbf16, #tpu.memory_space<vmem>>, vector<1x8x128xbf16>
      %77 = vector.shape_cast %76 : vector<1x8x128xbf16> to vector<8x128xbf16>
      %78 = vector.shape_cast %75 : vector<8x128xbf16> to vector<1x8x128xbf16>
      tpu.vector_store %arg6[%c0_34, %c0_35, %c128], %78 {strides = array<i32>} : memref<2x8x1024xbf16, #tpu.memory_space<vmem>>, vector<1x8x128xbf16>,
      %79 = vector.extract_strided_slice %68 {offsets = [0, 2, 0], sizes = [8, 1, 128], strides = [1, 1, 1]} : vector<8x8x256xbf16> to vector<8x1x128xbf16>
      %80 = vector.shape_cast %79 : vector<8x1x128xbf16> to vector<8x128xbf16>
      %c0_36 = arith.constant 0 : index
      %c0_37 = arith.constant 0 : index
      %c256 = arith.constant 256 : index
      %81 = vector.load %arg6[%c0_36, %c0_37, %c256] : memref<2x8x1024xbf16, #tpu.memory_space<vmem>>, vector<1x8x128xbf16>
      %82 = vector.shape_cast %81 : vector<1x8x128xbf16> to vector<8x128xbf16>
      %83 = vector.shape_cast %80 : vector<8x128xbf16> to vector<1x8x128xbf16>
      tpu.vector_store %arg6[%c0_36, %c0_37, %c256], %83 {strides = array<i32>} : memref<2x8x1024xbf16, #tpu.memory_space<vmem>>, vector<1x8x128xbf16>,
      %84 = vector.extract_strided_slice %68 {offsets = [0, 3, 0], sizes = [8, 1, 128], strides = [1, 1, 1]} : vector<8x8x256xbf16> to vector<8x1x128xbf16>
      %85 = vector.shape_cast %84 : vector<8x1x128xbf16> to vector<8x128xbf16>
      %c0_38 = arith.constant 0 : index
      %c0_39 = arith.constant 0 : index
      %c384 = arith.constant 384 : index
      %86 = vector.load %arg6[%c0_38, %c0_39, %c384] : memref<2x8x1024xbf16, #tpu.memory_space<vmem>>, vector<1x8x128xbf16>
      %87 = vector.shape_cast %86 : vector<1x8x128xbf16> to vector<8x128xbf16>
      %88 = vector.shape_cast %85 : vector<8x128xbf16> to vector<1x8x128xbf16>
      tpu.vector_store %arg6[%c0_38, %c0_39, %c384], %88 {strides = array<i32>} : memref<2x8x1024xbf16, #tpu.memory_space<vmem>>, vector<1x8x128xbf16>,
      %89 = vector.extract_strided_slice %68 {offsets = [0, 4, 0], sizes = [8, 1, 128], strides = [1, 1, 1]} : vector<8x8x256xbf16> to vector<8x1x128xbf16>
      %90 = vector.shape_cast %89 : vector<8x1x128xbf16> to vector<8x128xbf16>
      %c0_40 = arith.constant 0 : index
      %c0_41 = arith.constant 0 : index
      %c512 = arith.constant 512 : index
      %91 = vector.load %arg6[%c0_40, %c0_41, %c512] : memref<2x8x1024xbf16, #tpu.memory_space<vmem>>, vector<1x8x128xbf16>
      %92 = vector.shape_cast %91 : vector<1x8x128xbf16> to vector<8x128xbf16>
      %93 = vector.shape_cast %90 : vector<8x128xbf16> to vector<1x8x128xbf16>
      tpu.vector_store %arg6[%c0_40, %c0_41, %c512], %93 {strides = array<i32>} : memref<2x8x1024xbf16, #tpu.memory_space<vmem>>, vector<1x8x128xbf16>,
      %94 = vector.extract_strided_slice %68 {offsets = [0, 5, 0], sizes = [8, 1, 128], strides = [1, 1, 1]} : vector<8x8x256xbf16> to vector<8x1x128xbf16>
      %95 = vector.shape_cast %94 : vector<8x1x128xbf16> to vector<8x128xbf16>
      %c0_42 = arith.constant 0 : index
      %c0_43 = arith.constant 0 : index
      %c640 = arith.constant 640 : index
      %96 = vector.load %arg6[%c0_42, %c0_43, %c640] : memref<2x8x1024xbf16, #tpu.memory_space<vmem>>, vector<1x8x128xbf16>
      %97 = vector.shape_cast %96 : vector<1x8x128xbf16> to vector<8x128xbf16>
      %98 = vector.shape_cast %95 : vector<8x128xbf16> to vector<1x8x128xbf16>
      tpu.vector_store %arg6[%c0_42, %c0_43, %c640], %98 {strides = array<i32>} : memref<2x8x1024xbf16, #tpu.memory_space<vmem>>, vector<1x8x128xbf16>,
      %99 = vector.extract_strided_slice %68 {offsets = [0, 6, 0], sizes = [8, 1, 128], strides = [1, 1, 1]} : vector<8x8x256xbf16> to vector<8x1x128xbf16>
      %100 = vector.shape_cast %99 : vector<8x1x128xbf16> to vector<8x128xbf16>
      %c0_44 = arith.constant 0 : index
      %c0_45 = arith.constant 0 : index
      %c768 = arith.constant 768 : index
      %101 = vector.load %arg6[%c0_44, %c0_45, %c768] : memref<2x8x1024xbf16, #tpu.memory_space<vmem>>, vector<1x8x128xbf16>
      %102 = vector.shape_cast %101 : vector<1x8x128xbf16> to vector<8x128xbf16>
      %103 = vector.shape_cast %100 : vector<8x128xbf16> to vector<1x8x128xbf16>
      tpu.vector_store %arg6[%c0_44, %c0_45, %c768], %103 {strides = array<i32>} : memref<2x8x1024xbf16, #tpu.memory_space<vmem>>, vector<1x8x128xbf16>,
      %104 = vector.extract_strided_slice %68 {offsets = [0, 7, 0], sizes = [8, 1, 128], strides = [1, 1, 1]} : vector<8x8x256xbf16> to vector<8x1x128xbf16>
      %105 = vector.shape_cast %104 : vector<8x1x128xbf16> to vector<8x128xbf16>
      %c0_46 = arith.constant 0 : index
      %c0_47 = arith.constant 0 : index
      %c896 = arith.constant 896 : index
      %106 = vector.load %arg6[%c0_46, %c0_47, %c896] : memref<2x8x1024xbf16, #tpu.memory_space<vmem>>, vector<1x8x128xbf16>
      %107 = vector.shape_cast %106 : vector<1x8x128xbf16> to vector<8x128xbf16>
      %108 = vector.shape_cast %105 : vector<8x128xbf16> to vector<1x8x128xbf16>
      tpu.vector_store %arg6[%c0_46, %c0_47, %c896], %108 {strides = array<i32>} : memref<2x8x1024xbf16, #tpu.memory_space<vmem>>, vector<1x8x128xbf16>,
      %109 = vector.extract_strided_slice %68 {offsets = [0, 0, 128], sizes = [8, 1, 128], strides = [1, 1, 1]} : vector<8x8x256xbf16> to vector<8x1x128xbf16>
      %110 = vector.shape_cast %109 : vector<8x1x128xbf16> to vector<8x128xbf16>
      %c1 = arith.constant 1 : index
      %c0_48 = arith.constant 0 : index
      %c0_49 = arith.constant 0 : index
      %111 = vector.load %arg6[%c1, %c0_48, %c0_49] : memref<2x8x1024xbf16, #tpu.memory_space<vmem>>, vector<1x8x128xbf16>
      %112 = vector.shape_cast %111 : vector<1x8x128xbf16> to vector<8x128xbf16>
      %113 = vector.shape_cast %110 : vector<8x128xbf16> to vector<1x8x128xbf16>
      tpu.vector_store %arg6[%c1, %c0_48, %c0_49], %113 {strides = array<i32>} : memref<2x8x1024xbf16, #tpu.memory_space<vmem>>, vector<1x8x128xbf16>,
      %114 = vector.extract_strided_slice %68 {offsets = [0, 1, 128], sizes = [8, 1, 128], strides = [1, 1, 1]} : vector<8x8x256xbf16> to vector<8x1x128xbf16>
      %115 = vector.shape_cast %114 : vector<8x1x128xbf16> to vector<8x128xbf16>
      %c1_50 = arith.constant 1 : index
      %c0_51 = arith.constant 0 : index
      %c128_52 = arith.constant 128 : index
      %116 = vector.load %arg6[%c1_50, %c0_51, %c128_52] : memref<2x8x1024xbf16, #tpu.memory_space<vmem>>, vector<1x8x128xbf16>
      %117 = vector.shape_cast %116 : vector<1x8x128xbf16> to vector<8x128xbf16>
      %118 = vector.shape_cast %115 : vector<8x128xbf16> to vector<1x8x128xbf16>
      tpu.vector_store %arg6[%c1_50, %c0_51, %c128_52], %118 {strides = array<i32>} : memref<2x8x1024xbf16, #tpu.memory_space<vmem>>, vector<1x8x128xbf16>,
      %119 = vector.extract_strided_slice %68 {offsets = [0, 2, 128], sizes = [8, 1, 128], strides = [1, 1, 1]} : vector<8x8x256xbf16> to vector<8x1x128xbf16>
      %120 = vector.shape_cast %119 : vector<8x1x128xbf16> to vector<8x128xbf16>
      %c1_53 = arith.constant 1 : index
      %c0_54 = arith.constant 0 : index
      %c256_55 = arith.constant 256 : index
      %121 = vector.load %arg6[%c1_53, %c0_54, %c256_55] : memref<2x8x1024xbf16, #tpu.memory_space<vmem>>, vector<1x8x128xbf16>
      %122 = vector.shape_cast %121 : vector<1x8x128xbf16> to vector<8x128xbf16>
      %123 = vector.shape_cast %120 : vector<8x128xbf16> to vector<1x8x128xbf16>
      tpu.vector_store %arg6[%c1_53, %c0_54, %c256_55], %123 {strides = array<i32>} : memref<2x8x1024xbf16, #tpu.memory_space<vmem>>, vector<1x8x128xbf16>,
      %124 = vector.extract_strided_slice %68 {offsets = [0, 3, 128], sizes = [8, 1, 128], strides = [1, 1, 1]} : vector<8x8x256xbf16> to vector<8x1x128xbf16>
      %125 = vector.shape_cast %124 : vector<8x1x128xbf16> to vector<8x128xbf16>
      %c1_56 = arith.constant 1 : index
      %c0_57 = arith.constant 0 : index
      %c384_58 = arith.constant 384 : index
      %126 = vector.load %arg6[%c1_56, %c0_57, %c384_58] : memref<2x8x1024xbf16, #tpu.memory_space<vmem>>, vector<1x8x128xbf16>
      %127 = vector.shape_cast %126 : vector<1x8x128xbf16> to vector<8x128xbf16>
      %128 = vector.shape_cast %125 : vector<8x128xbf16> to vector<1x8x128xbf16>
      tpu.vector_store %arg6[%c1_56, %c0_57, %c384_58], %128 {strides = array<i32>} : memref<2x8x1024xbf16, #tpu.memory_space<vmem>>, vector<1x8x128xbf16>,
      %129 = vector.extract_strided_slice %68 {offsets = [0, 4, 128], sizes = [8, 1, 128], strides = [1, 1, 1]} : vector<8x8x256xbf16> to vector<8x1x128xbf16>
      %130 = vector.shape_cast %129 : vector<8x1x128xbf16> to vector<8x128xbf16>
      %c1_59 = arith.constant 1 : index
      %c0_60 = arith.constant 0 : index
      %c512_61 = arith.constant 512 : index
      %131 = vector.load %arg6[%c1_59, %c0_60, %c512_61] : memref<2x8x1024xbf16, #tpu.memory_space<vmem>>, vector<1x8x128xbf16>
      %132 = vector.shape_cast %131 : vector<1x8x128xbf16> to vector<8x128xbf16>
      %133 = vector.shape_cast %130 : vector<8x128xbf16> to vector<1x8x128xbf16>
      tpu.vector_store %arg6[%c1_59, %c0_60, %c512_61], %133 {strides = array<i32>} : memref<2x8x1024xbf16, #tpu.memory_space<vmem>>, vector<1x8x128xbf16>,
      %134 = vector.extract_strided_slice %68 {offsets = [0, 5, 128], sizes = [8, 1, 128], strides = [1, 1, 1]} : vector<8x8x256xbf16> to vector<8x1x128xbf16>
      %135 = vector.shape_cast %134 : vector<8x1x128xbf16> to vector<8x128xbf16>
      %c1_62 = arith.constant 1 : index
      %c0_63 = arith.constant 0 : index
      %c640_64 = arith.constant 640 : index
      %136 = vector.load %arg6[%c1_62, %c0_63, %c640_64] : memref<2x8x1024xbf16, #tpu.memory_space<vmem>>, vector<1x8x128xbf16>
      %137 = vector.shape_cast %136 : vector<1x8x128xbf16> to vector<8x128xbf16>
      %138 = vector.shape_cast %135 : vector<8x128xbf16> to vector<1x8x128xbf16>
      tpu.vector_store %arg6[%c1_62, %c0_63, %c640_64], %138 {strides = array<i32>} : memref<2x8x1024xbf16, #tpu.memory_space<vmem>>, vector<1x8x128xbf16>,
      %139 = vector.extract_strided_slice %68 {offsets = [0, 6, 128], sizes = [8, 1, 128], strides = [1, 1, 1]} : vector<8x8x256xbf16> to vector<8x1x128xbf16>
      %140 = vector.shape_cast %139 : vector<8x1x128xbf16> to vector<8x128xbf16>
      %c1_65 = arith.constant 1 : index
      %c0_66 = arith.constant 0 : index
      %c768_67 = arith.constant 768 : index
      %141 = vector.load %arg6[%c1_65, %c0_66, %c768_67] : memref<2x8x1024xbf16, #tpu.memory_space<vmem>>, vector<1x8x128xbf16>
      %142 = vector.shape_cast %141 : vector<1x8x128xbf16> to vector<8x128xbf16>
      %143 = vector.shape_cast %140 : vector<8x128xbf16> to vector<1x8x128xbf16>
      tpu.vector_store %arg6[%c1_65, %c0_66, %c768_67], %143 {strides = array<i32>} : memref<2x8x1024xbf16, #tpu.memory_space<vmem>>, vector<1x8x128xbf16>,
      %144 = vector.extract_strided_slice %68 {offsets = [0, 7, 128], sizes = [8, 1, 128], strides = [1, 1, 1]} : vector<8x8x256xbf16> to vector<8x1x128xbf16>
      %145 = vector.shape_cast %144 : vector<8x1x128xbf16> to vector<8x128xbf16>
      %c1_68 = arith.constant 1 : index
      %c0_69 = arith.constant 0 : index
      %c896_70 = arith.constant 896 : index
      %146 = vector.load %arg6[%c1_68, %c0_69, %c896_70] : memref<2x8x1024xbf16, #tpu.memory_space<vmem>>, vector<1x8x128xbf16>
      %147 = vector.shape_cast %146 : vector<1x8x128xbf16> to vector<8x128xbf16>
      %148 = vector.shape_cast %145 : vector<8x128xbf16> to vector<1x8x128xbf16>
      tpu.vector_store %arg6[%c1_68, %c0_69, %c896_70], %148 {strides = array<i32>} : memref<2x8x1024xbf16, #tpu.memory_space<vmem>>, vector<1x8x128xbf16>,
      %cst_71 = arith.constant 0.000000e+00 : f32
      %149 = vector.broadcast %cst_71 : f32 to vector<8x32xf32>
      %c0_72 = arith.constant 0 : index
      %c0_73 = arith.constant 0 : index
      %150 = vector.load %arg7[%c0_72, %c0_73] : memref<8x32xf32, #tpu.memory_space<vmem>>, vector<8x32xf32>
      tpu.vector_store %arg7[%c0_72, %c0_73], %149 {strides = array<i32>} : memref<8x32xf32, #tpu.memory_space<vmem>>, vector<8x32xf32>,
    } else {
    }
    %c0 = arith.constant 0 : index
    %c0_1 = arith.constant 0 : index
    %c0_2 = arith.constant 0 : index
    %3 = vector.load %arg4[%c0, %c0_1, %c0_2] : memref<8x128x32xbf16, #tpu.memory_space<vmem>>, vector<8x128x32xbf16>
    %4 = vector.shape_cast %3 : vector<8x128x32xbf16> to vector<1024x32xbf16>
    %c0_3 = arith.constant 0 : index
    %c0_4 = arith.constant 0 : index
    %5 = vector.load %arg7[%c0_3, %c0_4] : memref<8x32xf32, #tpu.memory_space<vmem>>, vector<8x32xf32>
    %6 = arith.index_cast %arg0 : i32 to index
    %c0_5 = arith.constant 0 : index
    %c0_6 = arith.constant 0 : index
    %7 = vector.load %arg6[%6, %c0_5, %c0_6] : memref<2x8x1024xbf16, #tpu.memory_space<vmem>>, vector<1x8x1024xbf16>
    %8 = vector.shape_cast %7 : vector<1x8x1024xbf16> to vector<8x1024xbf16>
    %cst = arith.constant dense<0.000000e+00> : vector<8x32xf32>
    %9 = tpu.matmul %8, %4, %cst {dimension_numbers = #tpu.dot_dimension_numbers<[1], [0], [0], [1], [0, 0, 1, 1], [], []>} : vector<8x1024xbf16>, vector<1024x32xbf16>, vector<8x32xf32> -> vector<8x32xf32>
    %10 = arith.addf %5, %9 : vector<8x32xf32>
    %c0_7 = arith.constant 0 : index
    %c0_8 = arith.constant 0 : index
    %11 = vector.load %arg7[%c0_7, %c0_8] : memref<8x32xf32, #tpu.memory_space<vmem>>, vector<8x32xf32>
    tpu.vector_store %arg7[%c0_7, %c0_8], %10 {strides = array<i32>} : memref<8x32xf32, #tpu.memory_space<vmem>>, vector<8x32xf32>,
    %c1_i32 = arith.constant 1 : i32
    %12 = arith.cmpi eq, %arg0, %c1_i32 : i32
    %13 = arith.extui %12 : i1 to i32
    %c0_i32_9 = arith.constant 0 : i32
    %14 = arith.cmpi ne, %13, %c0_i32_9 : i32
    scf.if %14 {
      %c0_10 = arith.constant 0 : index
      %c0_11 = arith.constant 0 : index
      %15 = vector.load %arg7[%c0_10, %c0_11] : memref<8x32xf32, #tpu.memory_space<vmem>>, vector<8x32xf32>
      %c0_12 = arith.constant 0 : index
      %c0_13 = arith.constant 0 : index
      %16 = vector.load %arg8[%c0_12, %c0_13] : memref<8x1xf32, #tpu.memory_space<vmem>>, vector<8x1xf32>
      %17 = vector.broadcast %16 : vector<8x1xf32> to vector<8x32xf32>
      %18 = arith.mulf %15, %17 : vector<8x32xf32>
      %c0_14 = arith.constant 0 : index
      %c0_15 = arith.constant 0 : index
      %19 = vector.load %arg3[%c0_14, %c0_15] : memref<32x32xf32, #tpu.memory_space<vmem>>, vector<32x32xf32>
      %cst_16 = arith.constant dense<0.000000e+00> : vector<8x32xf32>
      %20 = tpu.matmul %18, %19, %cst_16 {dimension_numbers = #tpu.dot_dimension_numbers<[1], [0], [0], [1], [0, 0, 1, 1], [], []>} : vector<8x32xf32>, vector<32x32xf32>, vector<8x32xf32> -> vector<8x32xf32>
      %cst_17 = arith.constant dense<0.000000e+00> : vector<32xf32>
      %21 = vector.multi_reduction <add>, %20, %cst_17 [0] : vector<8x32xf32> to vector<32xf32>
      %22 = vector.shape_cast %21 : vector<32xf32> to vector<1x32xf32>
      %cst_18 = arith.constant 8.000000e+00 : f32
      %23 = vector.broadcast %cst_18 : f32 to vector<1x32xf32>
      %24 = arith.divf %22, %23 : vector<1x32xf32>
      %25 = arith.mulf %20, %20 : vector<8x32xf32>
      %cst_19 = arith.constant dense<0.000000e+00> : vector<32xf32>
      %26 = vector.multi_reduction <add>, %25, %cst_19 [0] : vector<8x32xf32> to vector<32xf32>
      %27 = vector.shape_cast %26 : vector<32xf32> to vector<1x32xf32>
      %cst_20 = arith.constant 8.000000e+00 : f32
      %28 = vector.broadcast %cst_20 : f32 to vector<1x32xf32>
      %29 = arith.divf %27, %28 : vector<1x32xf32>
      %30 = arith.mulf %24, %24 : vector<1x32xf32>
      %31 = arith.subf %29, %30 : vector<1x32xf32>
      %cst_21 = arith.constant 0.000000e+00 : f32
      %32 = vector.broadcast %cst_21 : f32 to vector<1x32xf32>
      %33 = arith.maximumf %31, %32 : vector<1x32xf32>
      %34 = vector.broadcast %24 : vector<1x32xf32> to vector<8x32xf32>
      %35 = arith.subf %20, %34 : vector<8x32xf32>
      %cst_22 = arith.constant 9.99999974E-6 : f32
      %36 = vector.broadcast %cst_22 : f32 to vector<1x32xf32>
      %37 = arith.addf %33, %36 : vector<1x32xf32>
      %38 = math.rsqrt %37 : vector<1x32xf32>
      %39 = vector.broadcast %38 : vector<1x32xf32> to vector<8x32xf32>
      %40 = arith.mulf %35, %39 : vector<8x32xf32>
      %41 = arith.negf %40 : vector<8x32xf32>
      %42 = math.exp %41 : vector<8x32xf32>
      %cst_23 = arith.constant 1.000000e+00 : f32
      %43 = vector.broadcast %cst_23 : f32 to vector<8x32xf32>
      %44 = arith.addf %43, %42 : vector<8x32xf32>
      %45 = arith.divf %43, %44 : vector<8x32xf32>
      %46 = arith.mulf %18, %45 : vector<8x32xf32>
      %c0_24 = arith.constant 0 : index
      %c0_25 = arith.constant 0 : index
      %47 = vector.load %arg5[%c0_24, %c0_25] : memref<8x32xf32, #tpu.memory_space<vmem>>, vector<8x32xf32>
      tpu.vector_store %arg5[%c0_24, %c0_25], %46 {strides = array<i32>} : memref<8x32xf32, #tpu.memory_space<vmem>>, vector<8x32xf32>,
    } else {
    }
    return
  }
  func.func @transform_0(%arg0: i32) -> (i32, i32, i32) {
    %c0_i32 = arith.constant 0 : i32
    %c0_i32_0 = arith.constant 0 : i32
    %c0_i32_1 = arith.constant 0 : i32
    %c0_i32_2 = arith.constant 0 : i32
    return %c0_i32, %c0_i32_0, %c0_i32_1 : i32, i32, i32
  }
  func.func @transform_1(%arg0: i32) -> (i32, i32) {
    %c0_i32 = arith.constant 0 : i32
    %c0_i32_0 = arith.constant 0 : i32
    %c0_i32_1 = arith.constant 0 : i32
    return %c0_i32, %c0_i32_0 : i32, i32
  }
  func.func @transform_2(%arg0: i32) -> (i32, i32) {
    %c0_i32 = arith.constant 0 : i32
    %c0_i32_0 = arith.constant 0 : i32
    %c0_i32_1 = arith.constant 0 : i32
    return %c0_i32, %c0_i32_0 : i32, i32
  }
  func.func @transform_3(%arg0: i32) -> (i32, i32, i32) {
    %c0_i32 = arith.constant 0 : i32
    %c0_i32_0 = arith.constant 0 : i32
    %c0_i32_1 = arith.constant 0 : i32
    return %c0_i32, %arg0, %c0_i32_0 : i32, i32, i32
  }
  func.func @transform_4(%arg0: i32) -> (i32, i32) {
    %c0_i32 = arith.constant 0 : i32
    %c0_i32_0 = arith.constant 0 : i32
    %c0_i32_1 = arith.constant 0 : i32
    return %c0_i32, %c0_i32_0 : i32, i32
  }
}

</mosaic_0001>

<llo_original>
// kernel: tpu_custom_call.1
$region0: #{tpu_custom_call.1}
  #allocation0 [shape = 'u32[]', space=smem, size = 0x4, offset = 0x4, fixed_abs, tag = 'smem constant byte address 0x4 - core index']
  #allocation1 [shape = 'u32[144,128]{1,0:T(1,128)}', space=vmem, size = 0x12000, scoped, tag = 'internal scratch']
  #allocation2 [shape = 'bf16[2,8,1024]{2,1,0:T(8,128)(2,1)}', space=vmem, size = 0x8000, scoped, tag = 'scratch operand']
  #allocation3 [shape = 'f32[8,32]{1,0:T(8,128)}', space=vmem, size = 0x1000, scoped, tag = 'scratch operand']
  #allocation4 [shape = 'f32[8,1]{1,0:T(8,128)}', space=vmem, size = 0x1000, scoped, tag = 'scratch operand']
  %s0 = inlined_call_operand.vmem [shape: f32[8,16,256], index: 0, kind: input, shape index: {}]
  %s1 = inlined_call_operand.vmem [shape: bf16[256,8], index: 1, kind: input, shape index: {}]
  %s2 = inlined_call_operand.vmem [shape: f32[32,32], index: 2, kind: input, shape index: {}]
  %s3 = inlined_call_operand.vmem [shape: bf16[8,256,32], index: 3, kind: input, shape index: {}]
  %s4 = inlined_call_operand.hbm [shape: f32[8,32], index: 4, kind: output, shape index: {}]
  %s5 = sld [smem:[#allocation0]]
  $region98: #{tpu_custom_call.1} parent=0
    _
  %s7 = ssub.s32 1, %s5
  %s8 = scalar_select 0, %s7, %s5
  $region1: #{tpu_custom_call.1} parent=0
    #allocation5 [shape = 'u8[524288]{0}', space=vmem, size = 0x80000, scoped, tag = 'input window, operand 3']
    #allocation6 [shape = 'u8[4096]{0}', space=vmem, size = 0x1000, scoped, tag = 'output window, operand 0, single buffered']
    #allocation7 [shape = 's32[2]{0}', space=sflag, size = 0x8, scoped, tag = 'scoped memory for tpu_custom_call.1']
    %9 = vsyncpa [#allocation7], 0
    loop: start=0, step=1, limit=4
    $region2: #{tpu_custom_call.1} parent=1 // loop_pre_header
      _
    $region3: #{tpu_custom_call.1} parent=1 // loop_header
      %s11 = sphi 0, %s15
      %p12 = scmp.ge.s32.totalorder %s11, 4
      %s19 = sphi 0, %s19
      %s21 = sphi 0, %s19
      %s22 = sphi 0, %s21
      %s36 = sphi 0, %s22
      %s40 = sphi 0, %s40
      %s42 = sphi 0, %s40
      %s43 = sphi 0, %s42
      %s57 = sphi 0, %s43
      %s61 = sphi 0, %s61
      %s63 = sphi 0, %s61
      %s64 = sphi 0, %s63
      %s78 = sphi 0, %s64
      %s84 = sphi 0, %s86
      %s87 = sphi 0, %s84
      %s88 = sphi 0, %s87
      %s104 = sphi 0, %s88
      %s108 = sphi 0, %s108
      %s110 = sphi 0, %s108
      %s111 = sphi 0, %s110
      %s125 = sphi 0, %s111
    $region4: #{tpu_custom_call.1} parent=1 // loop_header_branch
      %14 = sbr.rel (%p12) target = $region8
    $region5: #{tpu_custom_call.1} parent=1 // loop_body
      %s16 = ssub.s32 %s11, 1
      %s17 = ssub.s32 %s11, 2
      %s18 = sadd.s32 %s11, 1
      %s20 = sadd.s32 %s19, 1
      %p23 = scmp.eq.s32.totalorder %s11, 1
      %p24 = scmp.ne.s32.totalorder %s19, %s21
      %p25 = scmp.eq.s32.totalorder %s11, 0
      %p26 = por %p24, %p25
      %p27 = scmp.ne.s32.totalorder %s19, %s21
      %p28 = scmp.eq.s32.totalorder %s16, 1
      %p29 = por %p27, %p28
      %p30 = scmp.ne.s32.totalorder %s21, %s22
      %p31 = scmp.eq.s32.totalorder %s16, 0
      %p32 = por %p30, %p31
      %p33 = scmp.ne.s32.totalorder %s21, %s22
      %p34 = scmp.eq.s32.totalorder %s17, 1
      %p35 = por %p33, %p34
      %p37 = scmp.ne.s32.totalorder %s22, %s36
      %p38 = scmp.eq.s32.totalorder %s17, 0
      %p39 = por %p37, %p38
      %s41 = sadd.s32 %s40, 1
      %p44 = scmp.eq.s32.totalorder %s11, 1
      %p45 = scmp.ne.s32.totalorder %s40, %s42
      %p46 = scmp.eq.s32.totalorder %s11, 0
      %p47 = por %p45, %p46
      %p48 = scmp.ne.s32.totalorder %s40, %s42
      %p49 = scmp.eq.s32.totalorder %s16, 1
      %p50 = por %p48, %p49
      %p51 = scmp.ne.s32.totalorder %s42, %s43
      %p52 = scmp.eq.s32.totalorder %s16, 0
      %p53 = por %p51, %p52
      %p54 = scmp.ne.s32.totalorder %s42, %s43
      %p55 = scmp.eq.s32.totalorder %s17, 1
      %p56 = por %p54, %p55
      %p58 = scmp.ne.s32.totalorder %s43, %s57
      %p59 = scmp.eq.s32.totalorder %s17, 0
      %p60 = por %p58, %p59
      %s62 = sadd.s32 %s61, 1
      %p65 = scmp.eq.s32.totalorder %s11, 1
      %p66 = scmp.ne.s32.totalorder %s61, %s63
      %p67 = scmp.eq.s32.totalorder %s11, 0
      %p68 = por %p66, %p67
      %p69 = scmp.ne.s32.totalorder %s61, %s63
      %p70 = scmp.eq.s32.totalorder %s16, 1
      %p71 = por %p69, %p70
      %p72 = scmp.ne.s32.totalorder %s63, %s64
      %p73 = scmp.eq.s32.totalorder %s16, 0
      %p74 = por %p72, %p73
      %p75 = scmp.ne.s32.totalorder %s63, %s64
      %p76 = scmp.eq.s32.totalorder %s17, 1
      %p77 = por %p75, %p76
      %p79 = scmp.ne.s32.totalorder %s64, %s78
      %p80 = scmp.eq.s32.totalorder %s17, 0
      %p81 = por %p79, %p80
      %s82 = ssub.s32 %s11, %s18
      %p83 = scmp.eq.s32.totalorder %s82, 0
      %s85 = sadd.s32 %s84, 1
      %s86 = scalar_select %p83, %s84, %s85
      %p89 = pneg %p83
      %p90 = scmp.eq.s32.totalorder %s11, 1
      %p91 = por %p89, %p90
      %p92 = scmp.ne.s32.totalorder %s84, %s87
      %p93 = scmp.eq.s32.totalorder %s11, 0
      %p94 = por %p92, %p93
      %p95 = scmp.ne.s32.totalorder %s84, %s87
      %p96 = scmp.eq.s32.totalorder %s16, 1
      %p97 = por %p95, %p96
      %p98 = scmp.ne.s32.totalorder %s87, %s88
      %p99 = scmp.eq.s32.totalorder %s16, 0
      %p100 = por %p98, %p99
      %p101 = scmp.ne.s32.totalorder %s87, %s88
      %p102 = scmp.eq.s32.totalorder %s17, 1
      %p103 = por %p101, %p102
      %p105 = scmp.ne.s32.totalorder %s88, %s104
      %p106 = scmp.eq.s32.totalorder %s17, 0
      %p107 = por %p105, %p106
      %s109 = sadd.s32 %s108, 1
      %p112 = scmp.eq.s32.totalorder %s11, 1
      %p113 = scmp.ne.s32.totalorder %s108, %s110
      %p114 = scmp.eq.s32.totalorder %s11, 0
      %p115 = por %p113, %p114
      %p116 = scmp.ne.s32.totalorder %s108, %s110
      %p117 = scmp.eq.s32.totalorder %s16, 1
      %p118 = por %p116, %p117
      %p119 = scmp.ne.s32.totalorder %s110, %s111
      %p120 = scmp.eq.s32.totalorder %s16, 0
      %p121 = por %p119, %p120
      %p122 = scmp.ne.s32.totalorder %s110, %s111
      %p123 = scmp.eq.s32.totalorder %s17, 1
      %p124 = por %p122, %p123
      %p126 = scmp.ne.s32.totalorder %s111, %s125
      %p127 = scmp.eq.s32.totalorder %s17, 0
      %p128 = por %p126, %p127
      %p129 = scmp.le.s32.totalorder 1, %s11
      %p130 = scmp.lt.s32.totalorder %s11, 3
      %p131 = pnand %p129, %p130
      %p132 = pneg %p131
      // Predicated region
      $region9: #{tpu_custom_call.1} parent=5 // pred_check
        _
      $region10: #{tpu_custom_call.1} parent=5 // pred_check_branch
        %134 = sbr.rel (%p131) target = $region12
      $region11: #{tpu_custom_call.1} parent=5 // pred_region
        %s135 = ssub.s32 %s11, 1
        // Predicated region
        $region13: #{tpu_custom_call.1} parent=11 // pred_check
          %p136 = pneg %p32
        $region14: #{tpu_custom_call.1} parent=11 // pred_check_branch
          %138 = sbr.rel (%p136) target = $region16
        $region15: #{tpu_custom_call.1} parent=11 // pred_region
          _
        $region16: #{tpu_custom_call.1} parent=11 // pred_fallthru
          _
        // Predicated region
        $region17: #{tpu_custom_call.1} parent=11 // pred_check
          %p139 = pneg %p53
        $region18: #{tpu_custom_call.1} parent=11 // pred_check_branch
          %141 = sbr.rel (%p139) target = $region20
        $region19: #{tpu_custom_call.1} parent=11 // pred_region
          _
        $region20: #{tpu_custom_call.1} parent=11 // pred_fallthru
          _
        // Predicated region
        $region21: #{tpu_custom_call.1} parent=11 // pred_check
          %p142 = pneg %p74
        $region22: #{tpu_custom_call.1} parent=11 // pred_check_branch
          %144 = sbr.rel (%p142) target = $region24
        $region23: #{tpu_custom_call.1} parent=11 // pred_region
          _
        $region24: #{tpu_custom_call.1} parent=11 // pred_fallthru
          _
      $region12: #{tpu_custom_call.1} parent=5 // pred_fallthru
        _
      %p145 = scmp.lt.s32.totalorder %s11, 2
      // Predicated region
      $region25: #{tpu_custom_call.1} parent=5 // pred_check
        %p146 = pneg %p145
      $region26: #{tpu_custom_call.1} parent=5 // pred_check_branch
        %148 = sbr.rel (%p146) target = $region28
      $region27: #{tpu_custom_call.1} parent=5 // pred_region
        // Predicated region
        $region29: #{tpu_custom_call.1} parent=27 // pred_check
          %p149 = pneg %p94
        $region30: #{tpu_custom_call.1} parent=27 // pred_check_branch
          %151 = sbr.rel (%p149) target = $region32
        $region31: #{tpu_custom_call.1} parent=27 // pred_region
          %s152 = sand.u32 %s84, 1
          %s153 = sand.u32 %s84, 1
          %s154 = smul.addr %s153, 512
          %s155 = scalar_lea.vmem [#allocation5], %s154
          %s156 = smul.u32 16, %s11
          %s157 = smul.addr %s156, 4
          %s158 = scalar_lea.vmem %s3, %s157
          // Predicated region
          $region33: #{tpu_custom_call.1} parent=31 // pred_check
            _
          $region34: #{tpu_custom_call.1} parent=31 // pred_check_branch
            %160 = sbr.rel (0) target = $region36
          $region35: #{tpu_custom_call.1} parent=31 // pred_region
            // Predicated region
            $region37: #{tpu_custom_call.1} parent=35 // pred_check
              _
            $region38: #{tpu_custom_call.1} parent=35 // pred_check_branch
              %162 = sbr.rel target = $region40
            $region39: #{tpu_custom_call.1} parent=35 // pred_region
              // Predicated region
              $region52: #{tpu_custom_call.1} parent=39 // pred_check
                _
              $region53: #{tpu_custom_call.1} parent=39 // pred_check_branch
                %432 = sbr.rel (0) target = $region55
              $region54: #{tpu_custom_call.1} parent=39 // pred_region
                loop: start=0, step=1, limit=1
                $region56: #{tpu_custom_call.1} parent=54 // loop_pre_header
                  _
                $region57: #{tpu_custom_call.1} parent=54 // loop_header
                  %s434 = sphi 0, %s438
                  %p435 = scmp.ge.s32.totalorder %s434, 1
                  %s439 = sphi %s158, %s158
                  %s440 = sphi %s155, %s155
                $region58: #{tpu_custom_call.1} parent=54 // loop_header_branch
                  %437 = sbr.rel (%p435) target = $region62
                $region59: #{tpu_custom_call.1} parent=54 // loop_body
                  _
                $region60: #{tpu_custom_call.1} parent=54 // loop_footer
                  %s438 = sadd.s32 1, %s434
                $region61: #{tpu_custom_call.1} parent=54 // loop_footer_branch
                  %433 = sbr.rel target = $region57
                $region62: #{tpu_custom_call.1} parent=54 // loop_exit
                  _
                %s442 = ssub.s32 16, 1
                loop: start=0, step=1, limit=1
                $region63: #{tpu_custom_call.1} parent=54 // loop_pre_header
                  _
                $region64: #{tpu_custom_call.1} parent=54 // loop_header
                  %s444 = sphi 0, %s448
                  %p445 = scmp.ge.s32.totalorder %s444, 1
                  %s449 = sphi %s158, %s158
                  %s450 = sphi %s155, %s155
                $region65: #{tpu_custom_call.1} parent=54 // loop_header_branch
                  %447 = sbr.rel (%p445) target = $region69
                $region66: #{tpu_custom_call.1} parent=54 // loop_body
                  %v451 = vld [vmem:[%s449] sm:%s442]
                  %452 = vst [vmem:[%s450] sm:%s442] %v451
                  %v453 = vld [vmem:[%s449 + $0x4] sm:%s442]
                  %454 = vst [vmem:[%s450 + $0x4] sm:%s442] %v453
                  %v455 = vld [vmem:[%s449 + $0x8] sm:%s442]
                  %456 = vst [vmem:[%s450 + $0x8] sm:%s442] %v455
                  %v457 = vld [vmem:[%s449 + $0xc] sm:%s442]
                  %458 = vst [vmem:[%s450 + $0xc] sm:%s442] %v457
                  %v459 = vld [vmem:[%s449 + $0x10] sm:%s442]
                  %460 = vst [vmem:[%s450 + $0x10] sm:%s442] %v459
                  %v461 = vld [vmem:[%s449 + $0x14] sm:%s442]
                  %462 = vst [vmem:[%s450 + $0x14] sm:%s442] %v461
                  %v463 = vld [vmem:[%s449 + $0x18] sm:%s442]
                  %464 = vst [vmem:[%s450 + $0x18] sm:%s442] %v463
                  %v465 = vld [vmem:[%s449 + $0x1c] sm:%s442]
                  %466 = vst [vmem:[%s450 + $0x1c] sm:%s442] %v465
                  %v467 = vld [vmem:[%s449 + $0x20] sm:%s442]
                  %468 = vst [vmem:[%s450 + $0x20] sm:%s442] %v467
                  %v469 = vld [vmem:[%s449 + $0x24] sm:%s442]
                  %470 = vst [vmem:[%s450 + $0x24] sm:%s442] %v469
                  %v471 = vld [vmem:[%s449 + $0x28] sm:%s442]
                  %472 = vst [vmem:[%s450 + $0x28] sm:%s442] %v471
                  %v473 = vld [vmem:[%s449 + $0x2c] sm:%s442]
                  %474 = vst [vmem:[%s450 + $0x2c] sm:%s442] %v473
                  %v475 = vld [vmem:[%s449 + $0x30] sm:%s442]
                  %476 = vst [vmem:[%s450 + $0x30] sm:%s442] %v475
                  %v477 = vld [vmem:[%s449 + $0x34] sm:%s442]
                  %478 = vst [vmem:[%s450 + $0x34] sm:%s442] %v477
                  %v479 = vld [vmem:[%s449 + $0x38] sm:%s442]
                  %480 = vst [vmem:[%s450 + $0x38] sm:%s442] %v479
                  %v481 = vld [vmem:[%s449 + $0x3c] sm:%s442]
                  %482 = vst [vmem:[%s450 + $0x3c] sm:%s442] %v481
                  %v483 = vld [vmem:[%s449 + $0x80] sm:%s442]
                  %484 = vst [vmem:[%s450 + $0x40] sm:%s442] %v483
                  %v485 = vld [vmem:[%s449 + $0x84] sm:%s442]
                  %486 = vst [vmem:[%s450 + $0x44] sm:%s442] %v485
                  %v487 = vld [vmem:[%s449 + $0x88] sm:%s442]
                  %488 = vst [vmem:[%s450 + $0x48] sm:%s442] %v487
                  %v489 = vld [vmem:[%s449 + $0x8c] sm:%s442]
                  %490 = vst [vmem:[%s450 + $0x4c] sm:%s442] %v489
                  %v491 = vld [vmem:[%s449 + $0x90] sm:%s442]
                  %492 = vst [vmem:[%s450 + $0x50] sm:%s442] %v491
                  %v493 = vld [vmem:[%s449 + $0x94] sm:%s442]
                  %494 = vst [vmem:[%s450 + $0x54] sm:%s442] %v493
                  %v495 = vld [vmem:[%s449 + $0x98] sm:%s442]
                  %496 = vst [vmem:[%s450 + $0x58] sm:%s442] %v495
                  %v497 = vld [vmem:[%s449 + $0x9c] sm:%s442]
                  %498 = vst [vmem:[%s450 + $0x5c] sm:%s442] %v497
                  %v499 = vld [vmem:[%s449 + $0xa0] sm:%s442]
                  %500 = vst [vmem:[%s450 + $0x60] sm:%s442] %v499
                  %v501 = vld [vmem:[%s449 + $0xa4] sm:%s442]
                  %502 = vst [vmem:[%s450 + $0x64] sm:%s442] %v501
                  %v503 = vld [vmem:[%s449 + $0xa8] sm:%s442]
                  %504 = vst [vmem:[%s450 + $0x68] sm:%s442] %v503
                  %v505 = vld [vmem:[%s449 + $0xac] sm:%s442]
                  %506 = vst [vmem:[%s450 + $0x6c] sm:%s442] %v505
                  %v507 = vld [vmem:[%s449 + $0xb0] sm:%s442]
                  %508 = vst [vmem:[%s450 + $0x70] sm:%s442] %v507
                  %v509 = vld [vmem:[%s449 + $0xb4] sm:%s442]
                  %510 = vst [vmem:[%s450 + $0x74] sm:%s442] %v509
                  %v511 = vld [vmem:[%s449 + $0xb8] sm:%s442]
                  %512 = vst [vmem:[%s450 + $0x78] sm:%s442] %v511
                  %v513 = vld [vmem:[%s449 + $0xbc] sm:%s442]
                  %514 = vst [vmem:[%s450 + $0x7c] sm:%s442] %v513
                  %v515 = vld [vmem:[%s449 + $0x100] sm:%s442]
                  %516 = vst [vmem:[%s450 + $0x80] sm:%s442] %v515
                  %v517 = vld [vmem:[%s449 + $0x104] sm:%s442]
                  %518 = vst [vmem:[%s450 + $0x84] sm:%s442] %v517
                  %v519 = vld [vmem:[%s449 + $0x108] sm:%s442]
                  %520 = vst [vmem:[%s450 + $0x88] sm:%s442] %v519
                  %v521 = vld [vmem:[%s449 + $0x10c] sm:%s442]
                  %522 = vst [vmem:[%s450 + $0x8c] sm:%s442] %v521
                  %v523 = vld [vmem:[%s449 + $0x110] sm:%s442]
                  %524 = vst [vmem:[%s450 + $0x90] sm:%s442] %v523
                  %v525 = vld [vmem:[%s449 + $0x114] sm:%s442]
                  %526 = vst [vmem:[%s450 + $0x94] sm:%s442] %v525
                  %v527 = vld [vmem:[%s449 + $0x118] sm:%s442]
                  %528 = vst [vmem:[%s450 + $0x98] sm:%s442] %v527
                  %v529 = vld [vmem:[%s449 + $0x11c] sm:%s442]
                  %530 = vst [vmem:[%s450 + $0x9c] sm:%s442] %v529
                  %v531 = vld [vmem:[%s449 + $0x120] sm:%s442]
                  %532 = vst [vmem:[%s450 + $0xa0] sm:%s442] %v531
                  %v533 = vld [vmem:[%s449 + $0x124] sm:%s442]
                  %534 = vst [vmem:[%s450 + $0xa4] sm:%s442] %v533
                  %v535 = vld [vmem:[%s449 + $0x128] sm:%s442]
                  %536 = vst [vmem:[%s450 + $0xa8] sm:%s442] %v535
                  %v537 = vld [vmem:[%s449 + $0x12c] sm:%s442]
                  %538 = vst [vmem:[%s450 + $0xac] sm:%s442] %v537
                  %v539 = vld [vmem:[%s449 + $0x130] sm:%s442]
                  %540 = vst [vmem:[%s450 + $0xb0] sm:%s442] %v539
                  %v541 = vld [vmem:[%s449 + $0x134] sm:%s442]
                  %542 = vst [vmem:[%s450 + $0xb4] sm:%s442] %v541
                  %v543 = vld [vmem:[%s449 + $0x138] sm:%s442]
                  %544 = vst [vmem:[%s450 + $0xb8] sm:%s442] %v543
                  %v545 = vld [vmem:[%s449 + $0x13c] sm:%s442]
                  %546 = vst [vmem:[%s450 + $0xbc] sm:%s442] %v545
                  %v547 = vld [vmem:[%s449 + $0x180] sm:%s442]
                  %548 = vst [vmem:[%s450 + $0xc0] sm:%s442] %v547
                  %v549 = vld [vmem:[%s449 + $0x184] sm:%s442]
                  %550 = vst [vmem:[%s450 + $0xc4] sm:%s442] %v549
                  %v551 = vld [vmem:[%s449 + $0x188] sm:%s442]
                  %552 = vst [vmem:[%s450 + $0xc8] sm:%s442] %v551
                  %v553 = vld [vmem:[%s449 + $0x18c] sm:%s442]
                  %554 = vst [vmem:[%s450 + $0xcc] sm:%s442] %v553
                  %v555 = vld [vmem:[%s449 + $0x190] sm:%s442]
                  %556 = vst [vmem:[%s450 + $0xd0] sm:%s442] %v555
                  %v557 = vld [vmem:[%s449 + $0x194] sm:%s442]
                  %558 = vst [vmem:[%s450 + $0xd4] sm:%s442] %v557
                  %v559 = vld [vmem:[%s449 + $0x198] sm:%s442]
                  %560 = vst [vmem:[%s450 + $0xd8] sm:%s442] %v559
                  %v561 = vld [vmem:[%s449 + $0x19c] sm:%s442]
                  %562 = vst [vmem:[%s450 + $0xdc] sm:%s442] %v561
                  %v563 = vld [vmem:[%s449 + $0x1a0] sm:%s442]
                  %564 = vst [vmem:[%s450 + $0xe0] sm:%s442] %v563
                  %v565 = vld [vmem:[%s449 + $0x1a4] sm:%s442]
                  %566 = vst [vmem:[%s450 + $0xe4] sm:%s442] %v565
                  %v567 = vld [vmem:[%s449 + $0x1a8] sm:%s442]
                  %568 = vst [vmem:[%s450 + $0xe8] sm:%s442] %v567
                  %v569 = vld [vmem:[%s449 + $0x1ac] sm:%s442]
                  %570 = vst [vmem:[%s450 + $0xec] sm:%s442] %v569
                  %v571 = vld [vmem:[%s449 + $0x1b0] sm:%s442]
                  %572 = vst [vmem:[%s450 + $0xf0] sm:%s442] %v571
                  %v573 = vld [vmem:[%s449 + $0x1b4] sm:%s442]
                  %574 = vst [vmem:[%s450 + $0xf4] sm:%s442] %v573
                  %v575 = vld [vmem:[%s449 + $0x1b8] sm:%s442]
                  %576 = vst [vmem:[%s450 + $0xf8] sm:%s442] %v575
                  %v577 = vld [vmem:[%s449 + $0x1bc] sm:%s442]
                  %578 = vst [vmem:[%s450 + $0xfc] sm:%s442] %v577
                  %v579 = vld [vmem:[%s449 + $0x200] sm:%s442]
                  %580 = vst [vmem:[%s450 + $0x100] sm:%s442] %v579
                  %v581 = vld [vmem:[%s449 + $0x204] sm:%s442]
                  %582 = vst [vmem:[%s450 + $0x104] sm:%s442] %v581
                  %v583 = vld [vmem:[%s449 + $0x208] sm:%s442]
                  %584 = vst [vmem:[%s450 + $0x108] sm:%s442] %v583
                  %v585 = vld [vmem:[%s449 + $0x20c] sm:%s442]
                  %586 = vst [vmem:[%s450 + $0x10c] sm:%s442] %v585
                  %v587 = vld [vmem:[%s449 + $0x210] sm:%s442]
                  %588 = vst [vmem:[%s450 + $0x110] sm:%s442] %v587
                  %v589 = vld [vmem:[%s449 + $0x214] sm:%s442]
                  %590 = vst [vmem:[%s450 + $0x114] sm:%s442] %v589
                  %v591 = vld [vmem:[%s449 + $0x218] sm:%s442]
                  %592 = vst [vmem:[%s450 + $0x118] sm:%s442] %v591
                  %v593 = vld [vmem:[%s449 + $0x21c] sm:%s442]
                  %594 = vst [vmem:[%s450 + $0x11c] sm:%s442] %v593
                  %v595 = vld [vmem:[%s449 + $0x220] sm:%s442]
                  %596 = vst [vmem:[%s450 + $0x120] sm:%s442] %v595
                  %v597 = vld [vmem:[%s449 + $0x224] sm:%s442]
                  %598 = vst [vmem:[%s450 + $0x124] sm:%s442] %v597
                  %v599 = vld [vmem:[%s449 + $0x228] sm:%s442]
                  %600 = vst [vmem:[%s450 + $0x128] sm:%s442] %v599
                  %v601 = vld [vmem:[%s449 + $0x22c] sm:%s442]
                  %602 = vst [vmem:[%s450 + $0x12c] sm:%s442] %v601
                  %v603 = vld [vmem:[%s449 + $0x230] sm:%s442]
                  %604 = vst [vmem:[%s450 + $0x130] sm:%s442] %v603
                  %v605 = vld [vmem:[%s449 + $0x234] sm:%s442]
                  %606 = vst [vmem:[%s450 + $0x134] sm:%s442] %v605
                  %v607 = vld [vmem:[%s449 + $0x238] sm:%s442]
                  %608 = vst [vmem:[%s450 + $0x138] sm:%s442] %v607
                  %v609 = vld [vmem:[%s449 + $0x23c] sm:%s442]
                  %610 = vst [vmem:[%s450 + $0x13c] sm:%s442] %v609
                  %v611 = vld [vmem:[%s449 + $0x280] sm:%s442]
                  %612 = vst [vmem:[%s450 + $0x140] sm:%s442] %v611
                  %v613 = vld [vmem:[%s449 + $0x284] sm:%s442]
                  %614 = vst [vmem:[%s450 + $0x144] sm:%s442] %v613
                  %v615 = vld [vmem:[%s449 + $0x288] sm:%s442]
                  %616 = vst [vmem:[%s450 + $0x148] sm:%s442] %v615
                  %v617 = vld [vmem:[%s449 + $0x28c] sm:%s442]
                  %618 = vst [vmem:[%s450 + $0x14c] sm:%s442] %v617
                  %v619 = vld [vmem:[%s449 + $0x290] sm:%s442]
                  %620 = vst [vmem:[%s450 + $0x150] sm:%s442] %v619
                  %v621 = vld [vmem:[%s449 + $0x294] sm:%s442]
                  %622 = vst [vmem:[%s450 + $0x154] sm:%s442] %v621
                  %v623 = vld [vmem:[%s449 + $0x298] sm:%s442]
                  %624 = vst [vmem:[%s450 + $0x158] sm:%s442] %v623
                  %v625 = vld [vmem:[%s449 + $0x29c] sm:%s442]
                  %626 = vst [vmem:[%s450 + $0x15c] sm:%s442] %v625
                  %v627 = vld [vmem:[%s449 + $0x2a0] sm:%s442]
                  %628 = vst [vmem:[%s450 + $0x160] sm:%s442] %v627
                  %v629 = vld [vmem:[%s449 + $0x2a4] sm:%s442]
                  %630 = vst [vmem:[%s450 + $0x164] sm:%s442] %v629
                  %v631 = vld [vmem:[%s449 + $0x2a8] sm:%s442]
                  %632 = vst [vmem:[%s450 + $0x168] sm:%s442] %v631
                  %v633 = vld [vmem:[%s449 + $0x2ac] sm:%s442]
                  %634 = vst [vmem:[%s450 + $0x16c] sm:%s442] %v633
                  %v635 = vld [vmem:[%s449 + $0x2b0] sm:%s442]
                  %636 = vst [vmem:[%s450 + $0x170] sm:%s442] %v635
                  %v637 = vld [vmem:[%s449 + $0x2b4] sm:%s442]
                  %638 = vst [vmem:[%s450 + $0x174] sm:%s442] %v637
                  %v639 = vld [vmem:[%s449 + $0x2b8] sm:%s442]
                  %640 = vst [vmem:[%s450 + $0x178] sm:%s442] %v639
                  %v641 = vld [vmem:[%s449 + $0x2bc] sm:%s442]
                  %642 = vst [vmem:[%s450 + $0x17c] sm:%s442] %v641
                  %v643 = vld [vmem:[%s449 + $0x300] sm:%s442]
                  %644 = vst [vmem:[%s450 + $0x180] sm:%s442] %v643
                  %v645 = vld [vmem:[%s449 + $0x304] sm:%s442]
                  %646 = vst [vmem:[%s450 + $0x184] sm:%s442] %v645
                  %v647 = vld [vmem:[%s449 + $0x308] sm:%s442]
                  %648 = vst [vmem:[%s450 + $0x188] sm:%s442] %v647
                  %v649 = vld [vmem:[%s449 + $0x30c] sm:%s442]
                  %650 = vst [vmem:[%s450 + $0x18c] sm:%s442] %v649
                  %v651 = vld [vmem:[%s449 + $0x310] sm:%s442]
                  %652 = vst [vmem:[%s450 + $0x190] sm:%s442] %v651
                  %v653 = vld [vmem:[%s449 + $0x314] sm:%s442]
                  %654 = vst [vmem:[%s450 + $0x194] sm:%s442] %v653
                  %v655 = vld [vmem:[%s449 + $0x318] sm:%s442]
                  %656 = vst [vmem:[%s450 + $0x198] sm:%s442] %v655
                  %v657 = vld [vmem:[%s449 + $0x31c] sm:%s442]
                  %658 = vst [vmem:[%s450 + $0x19c] sm:%s442] %v657
                  %v659 = vld [vmem:[%s449 + $0x320] sm:%s442]
                  %660 = vst [vmem:[%s450 + $0x1a0] sm:%s442] %v659
                  %v661 = vld [vmem:[%s449 + $0x324] sm:%s442]
                  %662 = vst [vmem:[%s450 + $0x1a4] sm:%s442] %v661
                  %v663 = vld [vmem:[%s449 + $0x328] sm:%s442]
                  %664 = vst [vmem:[%s450 + $0x1a8] sm:%s442] %v663
                  %v665 = vld [vmem:[%s449 + $0x32c] sm:%s442]
                  %666 = vst [vmem:[%s450 + $0x1ac] sm:%s442] %v665
                  %v667 = vld [vmem:[%s449 + $0x330] sm:%s442]
                  %668 = vst [vmem:[%s450 + $0x1b0] sm:%s442] %v667
                  %v669 = vld [vmem:[%s449 + $0x334] sm:%s442]
                  %670 = vst [vmem:[%s450 + $0x1b4] sm:%s442] %v669
                  %v671 = vld [vmem:[%s449 + $0x338] sm:%s442]
                  %672 = vst [vmem:[%s450 + $0x1b8] sm:%s442] %v671
                  %v673 = vld [vmem:[%s449 + $0x33c] sm:%s442]
                  %674 = vst [vmem:[%s450 + $0x1bc] sm:%s442] %v673
                  %v675 = vld [vmem:[%s449 + $0x380] sm:%s442]
                  %676 = vst [vmem:[%s450 + $0x1c0] sm:%s442] %v675
                  %v677 = vld [vmem:[%s449 + $0x384] sm:%s442]
                  %678 = vst [vmem:[%s450 + $0x1c4] sm:%s442] %v677
                  %v679 = vld [vmem:[%s449 + $0x388] sm:%s442]
                  %680 = vst [vmem:[%s450 + $0x1c8] sm:%s442] %v679
                  %v681 = vld [vmem:[%s449 + $0x38c] sm:%s442]
                  %682 = vst [vmem:[%s450 + $0x1cc] sm:%s442] %v681
                  %v683 = vld [vmem:[%s449 + $0x390] sm:%s442]
                  %684 = vst [vmem:[%s450 + $0x1d0] sm:%s442] %v683
                  %v685 = vld [vmem:[%s449 + $0x394] sm:%s442]
                  %686 = vst [vmem:[%s450 + $0x1d4] sm:%s442] %v685
                  %v687 = vld [vmem:[%s449 + $0x398] sm:%s442]
                  %688 = vst [vmem:[%s450 + $0x1d8] sm:%s442] %v687
                  %v689 = vld [vmem:[%s449 + $0x39c] sm:%s442]
                  %690 = vst [vmem:[%s450 + $0x1dc] sm:%s442] %v689
                  %v691 = vld [vmem:[%s449 + $0x3a0] sm:%s442]
                  %692 = vst [vmem:[%s450 + $0x1e0] sm:%s442] %v691
                  %v693 = vld [vmem:[%s449 + $0x3a4] sm:%s442]
                  %694 = vst [vmem:[%s450 + $0x1e4] sm:%s442] %v693
                  %v695 = vld [vmem:[%s449 + $0x3a8] sm:%s442]
                  %696 = vst [vmem:[%s450 + $0x1e8] sm:%s442] %v695
                  %v697 = vld [vmem:[%s449 + $0x3ac] sm:%s442]
                  %698 = vst [vmem:[%s450 + $0x1ec] sm:%s442] %v697
                  %v699 = vld [vmem:[%s449 + $0x3b0] sm:%s442]
                  %700 = vst [vmem:[%s450 + $0x1f0] sm:%s442] %v699
                  %v701 = vld [vmem:[%s449 + $0x3b4] sm:%s442]
                  %702 = vst [vmem:[%s450 + $0x1f4] sm:%s442] %v701
                  %v703 = vld [vmem:[%s449 + $0x3b8] sm:%s442]
                  %704 = vst [vmem:[%s450 + $0x1f8] sm:%s442] %v703
                  %v705 = vld [vmem:[%s449 + $0x3bc] sm:%s442]
                  %706 = vst [vmem:[%s450 + $0x1fc] sm:%s442] %v705
                $region67: #{tpu_custom_call.1} parent=54 // loop_footer
                  %s448 = sadd.s32 1, %s444
                $region68: #{tpu_custom_call.1} parent=54 // loop_footer_branch
                  %443 = sbr.rel target = $region64
                $region69: #{tpu_custom_call.1} parent=54 // loop_exit
                  _
              $region55: #{tpu_custom_call.1} parent=39 // pred_fallthru
                _
            $region40: #{tpu_custom_call.1} parent=35 // pred_fallthru
              _
            // Predicated region
            $region41: #{tpu_custom_call.1} parent=35 // pred_check
              _
            $region42: #{tpu_custom_call.1} parent=35 // pred_check_branch
              %164 = sbr.rel (0) target = $region44
            $region43: #{tpu_custom_call.1} parent=35 // pred_region
              %s166 = ssub.s32 16, 1
              loop: start=0, step=1, limit=1
              $region45: #{tpu_custom_call.1} parent=43 // loop_pre_header
                _
              $region46: #{tpu_custom_call.1} parent=43 // loop_header
                %s168 = sphi 0, %s172
                %p169 = scmp.ge.s32.totalorder %s168, 1
                %s173 = sphi %s158, %s158
                %s174 = sphi %s155, %s155
              $region47: #{tpu_custom_call.1} parent=43 // loop_header_branch
                %171 = sbr.rel (%p169) target = $region51
              $region48: #{tpu_custom_call.1} parent=43 // loop_body
                %v175 = vld [vmem:[%s173] sm:%s166]
                %176 = vst [vmem:[%s174] sm:%s166] %v175
                %v177 = vld [vmem:[%s173 + $0x4] sm:%s166]
                %178 = vst [vmem:[%s174 + $0x4] sm:%s166] %v177
                %v179 = vld [vmem:[%s173 + $0x8] sm:%s166]
                %180 = vst [vmem:[%s174 + $0x8] sm:%s166] %v179
                %v181 = vld [vmem:[%s173 + $0xc] sm:%s166]
                %182 = vst [vmem:[%s174 + $0xc] sm:%s166] %v181
                %v183 = vld [vmem:[%s173 + $0x10] sm:%s166]
                %184 = vst [vmem:[%s174 + $0x10] sm:%s166] %v183
                %v185 = vld [vmem:[%s173 + $0x14] sm:%s166]
                %186 = vst [vmem:[%s174 + $0x14] sm:%s166] %v185
                %v187 = vld [vmem:[%s173 + $0x18] sm:%s166]
                %188 = vst [vmem:[%s174 + $0x18] sm:%s166] %v187
                %v189 = vld [vmem:[%s173 + $0x1c] sm:%s166]
                %190 = vst [vmem:[%s174 + $0x1c] sm:%s166] %v189
                %v191 = vld [vmem:[%s173 + $0x20] sm:%s166]
                %192 = vst [vmem:[%s174 + $0x20] sm:%s166] %v191
                %v193 = vld [vmem:[%s173 + $0x24] sm:%s166]
                %194 = vst [vmem:[%s174 + $0x24] sm:%s166] %v193
                %v195 = vld [vmem:[%s173 + $0x28] sm:%s166]
                %196 = vst [vmem:[%s174 + $0x28] sm:%s166] %v195
                %v197 = vld [vmem:[%s173 + $0x2c] sm:%s166]
                %198 = vst [vmem:[%s174 + $0x2c] sm:%s166] %v197
                %v199 = vld [vmem:[%s173 + $0x30] sm:%s166]
                %200 = vst [vmem:[%s174 + $0x30] sm:%s166] %v199
                %v201 = vld [vmem:[%s173 + $0x34] sm:%s166]
                %202 = vst [vmem:[%s174 + $0x34] sm:%s166] %v201
                %v203 = vld [vmem:[%s173 + $0x38] sm:%s166]
                %204 = vst [vmem:[%s174 + $0x38] sm:%s166] %v203
                %v205 = vld [vmem:[%s173 + $0x3c] sm:%s166]
                %206 = vst [vmem:[%s174 + $0x3c] sm:%s166] %v205
                %v207 = vld [vmem:[%s173 + $0x80] sm:%s166]
                %208 = vst [vmem:[%s174 + $0x40] sm:%s166] %v207
                %v209 = vld [vmem:[%s173 + $0x84] sm:%s166]
                %210 = vst [vmem:[%s174 + $0x44] sm:%s166] %v209
                %v211 = vld [vmem:[%s173 + $0x88] sm:%s166]
                %212 = vst [vmem:[%s174 + $0x48] sm:%s166] %v211
                %v213 = vld [vmem:[%s173 + $0x8c] sm:%s166]
                %214 = vst [vmem:[%s174 + $0x4c] sm:%s166] %v213
                %v215 = vld [vmem:[%s173 + $0x90] sm:%s166]
                %216 = vst [vmem:[%s174 + $0x50] sm:%s166] %v215
                %v217 = vld [vmem:[%s173 + $0x94] sm:%s166]
                %218 = vst [vmem:[%s174 + $0x54] sm:%s166] %v217
                %v219 = vld [vmem:[%s173 + $0x98] sm:%s166]
                %220 = vst [vmem:[%s174 + $0x58] sm:%s166] %v219
                %v221 = vld [vmem:[%s173 + $0x9c] sm:%s166]
                %222 = vst [vmem:[%s174 + $0x5c] sm:%s166] %v221
                %v223 = vld [vmem:[%s173 + $0xa0] sm:%s166]
                %224 = vst [vmem:[%s174 + $0x60] sm:%s166] %v223
                %v225 = vld [vmem:[%s173 + $0xa4] sm:%s166]
                %226 = vst [vmem:[%s174 + $0x64] sm:%s166] %v225
                %v227 = vld [vmem:[%s173 + $0xa8] sm:%s166]
                %228 = vst [vmem:[%s174 + $0x68] sm:%s166] %v227
                %v229 = vld [vmem:[%s173 + $0xac] sm:%s166]
                %230 = vst [vmem:[%s174 + $0x6c] sm:%s166] %v229
                %v231 = vld [vmem:[%s173 + $0xb0] sm:%s166]
                %232 = vst [vmem:[%s174 + $0x70] sm:%s166] %v231
                %v233 = vld [vmem:[%s173 + $0xb4] sm:%s166]
                %234 = vst [vmem:[%s174 + $0x74] sm:%s166] %v233
                %v235 = vld [vmem:[%s173 + $0xb8] sm:%s166]
                %236 = vst [vmem:[%s174 + $0x78] sm:%s166] %v235
                %v237 = vld [vmem:[%s173 + $0xbc] sm:%s166]
                %238 = vst [vmem:[%s174 + $0x7c] sm:%s166] %v237
                %v239 = vld [vmem:[%s173 + $0x100] sm:%s166]
                %240 = vst [vmem:[%s174 + $0x80] sm:%s166] %v239
                %v241 = vld [vmem:[%s173 + $0x104] sm:%s166]
                %242 = vst [vmem:[%s174 + $0x84] sm:%s166] %v241
                %v243 = vld [vmem:[%s173 + $0x108] sm:%s166]
                %244 = vst [vmem:[%s174 + $0x88] sm:%s166] %v243
                %v245 = vld [vmem:[%s173 + $0x10c] sm:%s166]
                %246 = vst [vmem:[%s174 + $0x8c] sm:%s166] %v245
                %v247 = vld [vmem:[%s173 + $0x110] sm:%s166]
                %248 = vst [vmem:[%s174 + $0x90] sm:%s166] %v247
                %v249 = vld [vmem:[%s173 + $0x114] sm:%s166]
                %250 = vst [vmem:[%s174 + $0x94] sm:%s166] %v249
                %v251 = vld [vmem:[%s173 + $0x118] sm:%s166]
                %252 = vst [vmem:[%s174 + $0x98] sm:%s166] %v251
                %v253 = vld [vmem:[%s173 + $0x11c] sm:%s166]
                %254 = vst [vmem:[%s174 + $0x9c] sm:%s166] %v253
                %v255 = vld [vmem:[%s173 + $0x120] sm:%s166]
                %256 = vst [vmem:[%s174 + $0xa0] sm:%s166] %v255
                %v257 = vld [vmem:[%s173 + $0x124] sm:%s166]
                %258 = vst [vmem:[%s174 + $0xa4] sm:%s166] %v257
                %v259 = vld [vmem:[%s173 + $0x128] sm:%s166]
                %260 = vst [vmem:[%s174 + $0xa8] sm:%s166] %v259
                %v261 = vld [vmem:[%s173 + $0x12c] sm:%s166]
                %262 = vst [vmem:[%s174 + $0xac] sm:%s166] %v261
                %v263 = vld [vmem:[%s173 + $0x130] sm:%s166]
                %264 = vst [vmem:[%s174 + $0xb0] sm:%s166] %v263
                %v265 = vld [vmem:[%s173 + $0x134] sm:%s166]
                %266 = vst [vmem:[%s174 + $0xb4] sm:%s166] %v265
                %v267 = vld [vmem:[%s173 + $0x138] sm:%s166]
                %268 = vst [vmem:[%s174 + $0xb8] sm:%s166] %v267
                %v269 = vld [vmem:[%s173 + $0x13c] sm:%s166]
                %270 = vst [vmem:[%s174 + $0xbc] sm:%s166] %v269
                %v271 = vld [vmem:[%s173 + $0x180] sm:%s166]
                %272 = vst [vmem:[%s174 + $0xc0] sm:%s166] %v271
                %v273 = vld [vmem:[%s173 + $0x184] sm:%s166]
                %274 = vst [vmem:[%s174 + $0xc4] sm:%s166] %v273
                %v275 = vld [vmem:[%s173 + $0x188] sm:%s166]
                %276 = vst [vmem:[%s174 + $0xc8] sm:%s166] %v275
                %v277 = vld [vmem:[%s173 + $0x18c] sm:%s166]
                %278 = vst [vmem:[%s174 + $0xcc] sm:%s166] %v277
                %v279 = vld [vmem:[%s173 + $0x190] sm:%s166]
                %280 = vst [vmem:[%s174 + $0xd0] sm:%s166] %v279
                %v281 = vld [vmem:[%s173 + $0x194] sm:%s166]
                %282 = vst [vmem:[%s174 + $0xd4] sm:%s166] %v281
                %v283 = vld [vmem:[%s173 + $0x198] sm:%s166]
                %284 = vst [vmem:[%s174 + $0xd8] sm:%s166] %v283
                %v285 = vld [vmem:[%s173 + $0x19c] sm:%s166]
                %286 = vst [vmem:[%s174 + $0xdc] sm:%s166] %v285
                %v287 = vld [vmem:[%s173 + $0x1a0] sm:%s166]
                %288 = vst [vmem:[%s174 + $0xe0] sm:%s166] %v287
                %v289 = vld [vmem:[%s173 + $0x1a4] sm:%s166]
                %290 = vst [vmem:[%s174 + $0xe4] sm:%s166] %v289
                %v291 = vld [vmem:[%s173 + $0x1a8] sm:%s166]
                %292 = vst [vmem:[%s174 + $0xe8] sm:%s166] %v291
                %v293 = vld [vmem:[%s173 + $0x1ac] sm:%s166]
                %294 = vst [vmem:[%s174 + $0xec] sm:%s166] %v293
                %v295 = vld [vmem:[%s173 + $0x1b0] sm:%s166]
                %296 = vst [vmem:[%s174 + $0xf0] sm:%s166] %v295
                %v297 = vld [vmem:[%s173 + $0x1b4] sm:%s166]
                %298 = vst [vmem:[%s174 + $0xf4] sm:%s166] %v297
                %v299 = vld [vmem:[%s173 + $0x1b8] sm:%s166]
                %300 = vst [vmem:[%s174 + $0xf8] sm:%s166] %v299
                %v301 = vld [vmem:[%s173 + $0x1bc] sm:%s166]
                %302 = vst [vmem:[%s174 + $0xfc] sm:%s166] %v301
                %v303 = vld [vmem:[%s173 + $0x200] sm:%s166]
                %304 = vst [vmem:[%s174 + $0x100] sm:%s166] %v303
                %v305 = vld [vmem:[%s173 + $0x204] sm:%s166]
                %306 = vst [vmem:[%s174 + $0x104] sm:%s166] %v305
                %v307 = vld [vmem:[%s173 + $0x208] sm:%s166]
                %308 = vst [vmem:[%s174 + $0x108] sm:%s166] %v307
                %v309 = vld [vmem:[%s173 + $0x20c] sm:%s166]
                %310 = vst [vmem:[%s174 + $0x10c] sm:%s166] %v309
                %v311 = vld [vmem:[%s173 + $0x210] sm:%s166]
                %312 = vst [vmem:[%s174 + $0x110] sm:%s166] %v311
                %v313 = vld [vmem:[%s173 + $0x214] sm:%s166]
                %314 = vst [vmem:[%s174 + $0x114] sm:%s166] %v313
                %v315 = vld [vmem:[%s173 + $0x218] sm:%s166]
                %316 = vst [vmem:[%s174 + $0x118] sm:%s166] %v315
                %v317 = vld [vmem:[%s173 + $0x21c] sm:%s166]
                %318 = vst [vmem:[%s174 + $0x11c] sm:%s166] %v317
                %v319 = vld [vmem:[%s173 + $0x220] sm:%s166]
                %320 = vst [vmem:[%s174 + $0x120] sm:%s166] %v319
                %v321 = vld [vmem:[%s173 + $0x224] sm:%s166]
                %322 = vst [vmem:[%s174 + $0x124] sm:%s166] %v321
                %v323 = vld [vmem:[%s173 + $0x228] sm:%s166]
                %324 = vst [vmem:[%s174 + $0x128] sm:%s166] %v323
                %v325 = vld [vmem:[%s173 + $0x22c] sm:%s166]
                %326 = vst [vmem:[%s174 + $0x12c] sm:%s166] %v325
                %v327 = vld [vmem:[%s173 + $0x230] sm:%s166]
                %328 = vst [vmem:[%s174 + $0x130] sm:%s166] %v327
                %v329 = vld [vmem:[%s173 + $0x234] sm:%s166]
                %330 = vst [vmem:[%s174 + $0x134] sm:%s166] %v329
                %v331 = vld [vmem:[%s173 + $0x238] sm:%s166]
                %332 = vst [vmem:[%s174 + $0x138] sm:%s166] %v331
                %v333 = vld [vmem:[%s173 + $0x23c] sm:%s166]
                %334 = vst [vmem:[%s174 + $0x13c] sm:%s166] %v333
                %v335 = vld [vmem:[%s173 + $0x280] sm:%s166]
                %336 = vst [vmem:[%s174 + $0x140] sm:%s166] %v335
                %v337 = vld [vmem:[%s173 + $0x284] sm:%s166]
                %338 = vst [vmem:[%s174 + $0x144] sm:%s166] %v337
                %v339 = vld [vmem:[%s173 + $0x288] sm:%s166]
                %340 = vst [vmem:[%s174 + $0x148] sm:%s166] %v339
                %v341 = vld [vmem:[%s173 + $0x28c] sm:%s166]
                %342 = vst [vmem:[%s174 + $0x14c] sm:%s166] %v341
                %v343 = vld [vmem:[%s173 + $0x290] sm:%s166]
                %344 = vst [vmem:[%s174 + $0x150] sm:%s166] %v343
                %v345 = vld [vmem:[%s173 + $0x294] sm:%s166]
                %346 = vst [vmem:[%s174 + $0x154] sm:%s166] %v345
                %v347 = vld [vmem:[%s173 + $0x298] sm:%s166]
                %348 = vst [vmem:[%s174 + $0x158] sm:%s166] %v347
                %v349 = vld [vmem:[%s173 + $0x29c] sm:%s166]
                %350 = vst [vmem:[%s174 + $0x15c] sm:%s166] %v349
                %v351 = vld [vmem:[%s173 + $0x2a0] sm:%s166]
                %352 = vst [vmem:[%s174 + $0x160] sm:%s166] %v351
                %v353 = vld [vmem:[%s173 + $0x2a4] sm:%s166]
                %354 = vst [vmem:[%s174 + $0x164] sm:%s166] %v353
                %v355 = vld [vmem:[%s173 + $0x2a8] sm:%s166]
                %356 = vst [vmem:[%s174 + $0x168] sm:%s166] %v355
                %v357 = vld [vmem:[%s173 + $0x2ac] sm:%s166]
                %358 = vst [vmem:[%s174 + $0x16c] sm:%s166] %v357
                %v359 = vld [vmem:[%s173 + $0x2b0] sm:%s166]
                %360 = vst [vmem:[%s174 + $0x170] sm:%s166] %v359
                %v361 = vld [vmem:[%s173 + $0x2b4] sm:%s166]
                %362 = vst [vmem:[%s174 + $0x174] sm:%s166] %v361
                %v363 = vld [vmem:[%s173 + $0x2b8] sm:%s166]
                %364 = vst [vmem:[%s174 + $0x178] sm:%s166] %v363
                %v365 = vld [vmem:[%s173 + $0x2bc] sm:%s166]
                %366 = vst [vmem:[%s174 + $0x17c] sm:%s166] %v365
                %v367 = vld [vmem:[%s173 + $0x300] sm:%s166]
                %368 = vst [vmem:[%s174 + $0x180] sm:%s166] %v367
                %v369 = vld [vmem:[%s173 + $0x304] sm:%s166]
                %370 = vst [vmem:[%s174 + $0x184] sm:%s166] %v369
                %v371 = vld [vmem:[%s173 + $0x308] sm:%s166]
                %372 = vst [vmem:[%s174 + $0x188] sm:%s166] %v371
                %v373 = vld [vmem:[%s173 + $0x30c] sm:%s166]
                %374 = vst [vmem:[%s174 + $0x18c] sm:%s166] %v373
                %v375 = vld [vmem:[%s173 + $0x310] sm:%s166]
                %376 = vst [vmem:[%s174 + $0x190] sm:%s166] %v375
                %v377 = vld [vmem:[%s173 + $0x314] sm:%s166]
                %378 = vst [vmem:[%s174 + $0x194] sm:%s166] %v377
                %v379 = vld [vmem:[%s173 + $0x318] sm:%s166]
                %380 = vst [vmem:[%s174 + $0x198] sm:%s166] %v379
                %v381 = vld [vmem:[%s173 + $0x31c] sm:%s166]
                %382 = vst [vmem:[%s174 + $0x19c] sm:%s166] %v381
                %v383 = vld [vmem:[%s173 + $0x320] sm:%s166]
                %384 = vst [vmem:[%s174 + $0x1a0] sm:%s166] %v383
                %v385 = vld [vmem:[%s173 + $0x324] sm:%s166]
                %386 = vst [vmem:[%s174 + $0x1a4] sm:%s166] %v385
                %v387 = vld [vmem:[%s173 + $0x328] sm:%s166]
                %388 = vst [vmem:[%s174 + $0x1a8] sm:%s166] %v387
                %v389 = vld [vmem:[%s173 + $0x32c] sm:%s166]
                %390 = vst [vmem:[%s174 + $0x1ac] sm:%s166] %v389
                %v391 = vld [vmem:[%s173 + $0x330] sm:%s166]
                %392 = vst [vmem:[%s174 + $0x1b0] sm:%s166] %v391
                %v393 = vld [vmem:[%s173 + $0x334] sm:%s166]
                %394 = vst [vmem:[%s174 + $0x1b4] sm:%s166] %v393
                %v395 = vld [vmem:[%s173 + $0x338] sm:%s166]
                %396 = vst [vmem:[%s174 + $0x1b8] sm:%s166] %v395
                %v397 = vld [vmem:[%s173 + $0x33c] sm:%s166]
                %398 = vst [vmem:[%s174 + $0x1bc] sm:%s166] %v397
                %v399 = vld [vmem:[%s173 + $0x380] sm:%s166]
                %400 = vst [vmem:[%s174 + $0x1c0] sm:%s166] %v399
                %v401 = vld [vmem:[%s173 + $0x384] sm:%s166]
                %402 = vst [vmem:[%s174 + $0x1c4] sm:%s166] %v401
                %v403 = vld [vmem:[%s173 + $0x388] sm:%s166]
                %404 = vst [vmem:[%s174 + $0x1c8] sm:%s166] %v403
                %v405 = vld [vmem:[%s173 + $0x38c] sm:%s166]
                %406 = vst [vmem:[%s174 + $0x1cc] sm:%s166] %v405
                %v407 = vld [vmem:[%s173 + $0x390] sm:%s166]
                %408 = vst [vmem:[%s174 + $0x1d0] sm:%s166] %v407
                %v409 = vld [vmem:[%s173 + $0x394] sm:%s166]
                %410 = vst [vmem:[%s174 + $0x1d4] sm:%s166] %v409
                %v411 = vld [vmem:[%s173 + $0x398] sm:%s166]
                %412 = vst [vmem:[%s174 + $0x1d8] sm:%s166] %v411
                %v413 = vld [vmem:[%s173 + $0x39c] sm:%s166]
                %414 = vst [vmem:[%s174 + $0x1dc] sm:%s166] %v413
                %v415 = vld [vmem:[%s173 + $0x3a0] sm:%s166]
                %416 = vst [vmem:[%s174 + $0x1e0] sm:%s166] %v415
                %v417 = vld [vmem:[%s173 + $0x3a4] sm:%s166]
                %418 = vst [vmem:[%s174 + $0x1e4] sm:%s166] %v417
                %v419 = vld [vmem:[%s173 + $0x3a8] sm:%s166]
                %420 = vst [vmem:[%s174 + $0x1e8] sm:%s166] %v419
                %v421 = vld [vmem:[%s173 + $0x3ac] sm:%s166]
                %422 = vst [vmem:[%s174 + $0x1ec] sm:%s166] %v421
                %v423 = vld [vmem:[%s173 + $0x3b0] sm:%s166]
                %424 = vst [vmem:[%s174 + $0x1f0] sm:%s166] %v423
                %v425 = vld [vmem:[%s173 + $0x3b4] sm:%s166]
                %426 = vst [vmem:[%s174 + $0x1f4] sm:%s166] %v425
                %v427 = vld [vmem:[%s173 + $0x3b8] sm:%s166]
                %428 = vst [vmem:[%s174 + $0x1f8] sm:%s166] %v427
                %v429 = vld [vmem:[%s173 + $0x3bc] sm:%s166]
                %430 = vst [vmem:[%s174 + $0x1fc] sm:%s166] %v429
              $region49: #{tpu_custom_call.1} parent=43 // loop_footer
                %s172 = sadd.s32 1, %s168
              $region50: #{tpu_custom_call.1} parent=43 // loop_footer_branch
                %167 = sbr.rel target = $region46
              $region51: #{tpu_custom_call.1} parent=43 // loop_exit
                _
            $region44: #{tpu_custom_call.1} parent=35 // pred_fallthru
              _
          $region36: #{tpu_custom_call.1} parent=31 // pred_fallthru
            _
          %707 = vnop
        $region32: #{tpu_custom_call.1} parent=27 // pred_fallthru
          _
      $region28: #{tpu_custom_call.1} parent=5 // pred_fallthru
        _
      %p708 = scmp.le.s32.totalorder 1, %s11
      %p709 = scmp.lt.s32.totalorder %s11, 3
      %p710 = pnand %p708, %p709
      %p711 = pneg %p710
      // Predicated region
      $region70: #{tpu_custom_call.1} parent=5 // pred_check
        _
      $region71: #{tpu_custom_call.1} parent=5 // pred_check_branch
        %713 = sbr.rel (%p710) target = $region73
      $region72: #{tpu_custom_call.1} parent=5 // pred_region
        %s714 = ssub.s32 %s11, 1
        %s715 = sand.u32 %s87, 1
        %s716 = sand.u32 %s87, 1
        %s717 = smul.addr %s716, 512
        %s718 = scalar_lea.vmem [#allocation5], %s717
        // Predicated region
        $region74: #{tpu_custom_call.1} parent=72 // pred_check
          %p719 = pneg %p100
        $region75: #{tpu_custom_call.1} parent=72 // pred_check_branch
          %721 = sbr.rel (%p719) target = $region77
        $region76: #{tpu_custom_call.1} parent=72 // pred_region
          _
        $region77: #{tpu_custom_call.1} parent=72 // pred_fallthru
          _
        %p722 = pneg %p32
        %p723 = pneg %p29
        %p724 = pneg %p53
        %p725 = pneg %p50
        %p726 = pneg %p74
        %p727 = pneg %p71
        %s728 = sand.u32 %s87, 1
        %s729 = sand.u32 %s87, 1
        %s730 = smul.addr %s729, 512
        %s731 = scalar_lea.vmem [#allocation5], %s730
        %p732 = pneg %p100
        %p733 = pneg %p97
        %p734 = pneg %p121
        %p735 = pneg %p118
        %s736 = smul.u32 16, %s16
        %p738 = scmp.eq.s32.totalorder %s16, 0
        // Predicated region
        $region78: #{tpu_custom_call.1} parent=72 // pred_check
          %p739 = pneg %p738
        $region79: #{tpu_custom_call.1} parent=72 // pred_check_branch
          %741 = sbr.rel (%p739) target = $region81
        $region80: #{tpu_custom_call.1} parent=72 // pred_region
          %v742 = vld [vmem:[%s0] sm:$0xff]
          %v743 = vld [vmem:[%s0 + $0x8] sm:$0xff]
          %v744 = vld [vmem:[%s0 + $0x10] sm:$0xff]
          %v745 = vld [vmem:[%s0 + $0x18] sm:$0xff]
          %v746 = vld [vmem:[%s0 + $0x20] sm:$0xff]
          %v747 = vld [vmem:[%s0 + $0x28] sm:$0xff]
          %v748 = vld [vmem:[%s0 + $0x30] sm:$0xff]
          %v749 = vld [vmem:[%s0 + $0x38] sm:$0xff]
          %v750 = vld [vmem:[%s0 + $0x40] sm:$0xff]
          %v751 = vld [vmem:[%s0 + $0x48] sm:$0xff]
          %v752 = vld [vmem:[%s0 + $0x50] sm:$0xff]
          %v753 = vld [vmem:[%s0 + $0x58] sm:$0xff]
          %v754 = vld [vmem:[%s0 + $0x60] sm:$0xff]
          %v755 = vld [vmem:[%s0 + $0x68] sm:$0xff]
          %v756 = vld [vmem:[%s0 + $0x70] sm:$0xff]
          %v757 = vld [vmem:[%s0 + $0x78] sm:$0xff]
          %v758 = vld [vmem:[%s0 + $0x80] sm:$0xff]
          %v759 = vld [vmem:[%s0 + $0x88] sm:$0xff]
          %v760 = vld [vmem:[%s0 + $0x90] sm:$0xff]
          %v761 = vld [vmem:[%s0 + $0x98] sm:$0xff]
          %v762 = vld [vmem:[%s0 + $0xa0] sm:$0xff]
          %v763 = vld [vmem:[%s0 + $0xa8] sm:$0xff]
          %v764 = vld [vmem:[%s0 + $0xb0] sm:$0xff]
          %v765 = vld [vmem:[%s0 + $0xb8] sm:$0xff]
          %v766 = vld [vmem:[%s0 + $0xc0] sm:$0xff]
          %v767 = vld [vmem:[%s0 + $0xc8] sm:$0xff]
          %v768 = vld [vmem:[%s0 + $0xd0] sm:$0xff]
          %v769 = vld [vmem:[%s0 + $0xd8] sm:$0xff]
          %v770 = vld [vmem:[%s0 + $0xe0] sm:$0xff]
          %v771 = vld [vmem:[%s0 + $0xe8] sm:$0xff]
          %v772 = vld [vmem:[%s0 + $0xf0] sm:$0xff]
          %v773 = vld [vmem:[%s0 + $0xf8] sm:$0xff]
          %v774 = vpack.c.bf16 %v744, %v742
          %v775 = vpack.c.bf16 %v745, %v743
          %v776 = vpack.c.bf16 %v748, %v746
          %v777 = vpack.c.bf16 %v749, %v747
          %v778 = vpack.c.bf16 %v752, %v750
          %v779 = vpack.c.bf16 %v753, %v751
          %v780 = vpack.c.bf16 %v756, %v754
          %v781 = vpack.c.bf16 %v757, %v755
          %v782 = vpack.c.bf16 %v760, %v758
          %v783 = vpack.c.bf16 %v761, %v759
          %v784 = vpack.c.bf16 %v764, %v762
          %v785 = vpack.c.bf16 %v765, %v763
          %v786 = vpack.c.bf16 %v768, %v766
          %v787 = vpack.c.bf16 %v769, %v767
          %v788 = vpack.c.bf16 %v772, %v770
          %v789 = vpack.c.bf16 %v773, %v771
          %v790 = vld [vmem:[%s1] sm:$0xf]
          %v791 = vld [vmem:[%s1 + $0x4] sm:$0xf]
          %v792 = vld [vmem:[%s1 + $0x8] sm:$0xf]
          %v793 = vld [vmem:[%s1 + $0xc] sm:$0xf]
          %v794 = vld [vmem:[%s1 + $0x10] sm:$0xf]
          %v795 = vld [vmem:[%s1 + $0x14] sm:$0xf]
          %v796 = vld [vmem:[%s1 + $0x18] sm:$0xf]
          %v797 = vld [vmem:[%s1 + $0x1c] sm:$0xf]
          %v798 = vld [vmem:[%s1 + $0x20] sm:$0xf]
          %v799 = vld [vmem:[%s1 + $0x24] sm:$0xf]
          %v800 = vld [vmem:[%s1 + $0x28] sm:$0xf]
          %v801 = vld [vmem:[%s1 + $0x2c] sm:$0xf]
          %v802 = vld [vmem:[%s1 + $0x30] sm:$0xf]
          %v803 = vld [vmem:[%s1 + $0x34] sm:$0xf]
          %v804 = vld [vmem:[%s1 + $0x38] sm:$0xf]
          %v805 = vld [vmem:[%s1 + $0x3c] sm:$0xf]
          %v806 = vld [vmem:[%s1 + $0x40] sm:$0xf]
          %v807 = vld [vmem:[%s1 + $0x44] sm:$0xf]
          %v808 = vld [vmem:[%s1 + $0x48] sm:$0xf]
          %v809 = vld [vmem:[%s1 + $0x4c] sm:$0xf]
          %v810 = vld [vmem:[%s1 + $0x50] sm:$0xf]
          %v811 = vld [vmem:[%s1 + $0x54] sm:$0xf]
          %v812 = vld [vmem:[%s1 + $0x58] sm:$0xf]
          %v813 = vld [vmem:[%s1 + $0x5c] sm:$0xf]
          %v814 = vld [vmem:[%s1 + $0x60] sm:$0xf]
          %v815 = vld [vmem:[%s1 + $0x64] sm:$0xf]
          %v816 = vld [vmem:[%s1 + $0x68] sm:$0xf]
          %v817 = vld [vmem:[%s1 + $0x6c] sm:$0xf]
          %v818 = vld [vmem:[%s1 + $0x70] sm:$0xf]
          %v819 = vld [vmem:[%s1 + $0x74] sm:$0xf]
          %v820 = vld [vmem:[%s1 + $0x78] sm:$0xf]
          %v821 = vld [vmem:[%s1 + $0x7c] sm:$0xf]
          %v854 = vunpack.c.l.b16 %v790
          %v855 = vunpack.c.l.b16 %v791
          %v856 = vunpack.c.l.b16 %v792
          %v857 = vunpack.c.l.b16 %v793
          %v858 = vunpack.c.l.b16 %v794
          %v859 = vunpack.c.l.b16 %v795
          %v860 = vunpack.c.l.b16 %v796
          %v861 = vunpack.c.l.b16 %v797
          %v862 = vunpack.c.l.b16 %v798
          %v863 = vunpack.c.l.b16 %v799
          %v864 = vunpack.c.l.b16 %v800
          %v865 = vunpack.c.l.b16 %v801
          %v866 = vunpack.c.l.b16 %v802
          %v867 = vunpack.c.l.b16 %v803
          %v868 = vunpack.c.l.b16 %v804
          %v869 = vunpack.c.l.b16 %v805
          %v870 = vunpack.c.l.b16 %v806
          %v871 = vunpack.c.l.b16 %v807
          %v872 = vunpack.c.l.b16 %v808
          %v873 = vunpack.c.l.b16 %v809
          %v874 = vunpack.c.l.b16 %v810
          %v875 = vunpack.c.l.b16 %v811
          %v876 = vunpack.c.l.b16 %v812
          %v877 = vunpack.c.l.b16 %v813
          %v878 = vunpack.c.l.b16 %v814
          %v879 = vunpack.c.l.b16 %v815
          %v880 = vunpack.c.l.b16 %v816
          %v881 = vunpack.c.l.b16 %v817
          %v882 = vunpack.c.l.b16 %v818
          %v883 = vunpack.c.l.b16 %v819
          %v884 = vunpack.c.l.b16 %v820
          %v885 = vunpack.c.l.b16 %v821
          %v886 = vpack.c.b16 %v855, %v854
          %v887 = vpack.c.b16 %v857, %v856
          %v888 = vpack.c.b16 %v859, %v858
          %v889 = vpack.c.b16 %v861, %v860
          %v890 = vpack.c.b16 %v863, %v862
          %v891 = vpack.c.b16 %v865, %v864
          %v892 = vpack.c.b16 %v867, %v866
          %v893 = vpack.c.b16 %v869, %v868
          %v894 = vpack.c.b16 %v871, %v870
          %v895 = vpack.c.b16 %v873, %v872
          %v896 = vpack.c.b16 %v875, %v874
          %v897 = vpack.c.b16 %v877, %v876
          %v898 = vpack.c.b16 %v879, %v878
          %v899 = vpack.c.b16 %v881, %v880
          %v900 = vpack.c.b16 %v883, %v882
          %v901 = vpack.c.b16 %v885, %v884
          %918 = vmatprep.subr.bf16.mxu0 0
          %919 = vmatpush1.bf16.msra.mxu0 %v893
          %920 = vmatprep.subr.bf16.mxu0 0
          %921 = vmatpush1.bf16.msra.mxu0 %v892
          %922 = vmatprep.subr.bf16.mxu0 0
          %923 = vmatpush1.bf16.msra.mxu0 %v891
          %924 = vmatprep.subr.bf16.mxu0 0
          %925 = vmatpush1.bf16.msra.mxu0 %v890
          %926 = vmatprep.subr.bf16.mxu0 0
          %927 = vmatpush1.bf16.msra.mxu0 %v889
          %928 = vmatprep.subr.bf16.mxu0 0
          %929 = vmatpush1.bf16.msra.mxu0 %v888
          %930 = vmatprep.subr.bf16.mxu0 0
          %931 = vmatpush1.bf16.msra.mxu0 %v887
          %932 = vmatprep.subr.bf16.mxu0 0
          %933 = vmatpush1.bf16.msra.mxu0 %v886
          %934 = vmatprep.subr.bf16.mxu0 0
          %935 = vmatpush2.bf16.msra.mxu0 %v901
          %936 = vmatprep.subr.bf16.mxu0 0
          %937 = vmatpush2.bf16.msra.mxu0 %v900
          %938 = vmatprep.subr.bf16.mxu0 0
          %939 = vmatpush2.bf16.msra.mxu0 %v899
          %940 = vmatprep.subr.bf16.mxu0 0
          %941 = vmatpush2.bf16.msra.mxu0 %v898
          %942 = vmatprep.subr.bf16.mxu0 0
          %943 = vmatpush2.bf16.msra.mxu0 %v897
          %944 = vmatprep.subr.bf16.mxu0 0
          %945 = vmatpush2.bf16.msra.mxu0 %v896
          %946 = vmatprep.subr.bf16.mxu0 0
          %947 = vmatpush2.bf16.msra.mxu0 %v895
          %948 = vmatprep.subr.bf16.mxu0 0
          %949 = vmatpush2.bf16.msra.mxu0 %v894
          %950 = vmatprep.mubr.bf16.mxu0 %v775
          %951 = vmatmul.mubr.bf16.gmra.mxu0 %v774
          %v952 = vpop.f32.mrf.mxu0
          %v953 = vadd.f32 0.0, %v952
          %v954 = vpop.f32.mrf.mxu0
          %v955 = vpop.f32.mrf.mxu0
          %v956 = vadd.f32 0.0, %v955
          %v957 = vpop.f32.mrf.mxu0
          %958 = vmatprep.mubr.bf16.mxu0 %v777
          %959 = vmatmul.mubr.bf16.gmra.mxu0 %v776
          %v960 = vpop.f32.mrf.mxu0
          %v961 = vadd.f32 0.0, %v960
          %v962 = vpop.f32.mrf.mxu0
          %v963 = vpop.f32.mrf.mxu0
          %v964 = vadd.f32 0.0, %v963
          %v965 = vpop.f32.mrf.mxu0
          %966 = vmatprep.mubr.bf16.mxu0 %v779
          %967 = vmatmul.mubr.bf16.gmra.mxu0 %v778
          %v968 = vpop.f32.mrf.mxu0
          %v969 = vadd.f32 0.0, %v968
          %v970 = vpop.f32.mrf.mxu0
          %v971 = vpop.f32.mrf.mxu0
          %v972 = vadd.f32 0.0, %v971
          %v973 = vpop.f32.mrf.mxu0
          %974 = vmatprep.mubr.bf16.mxu0 %v781
          %975 = vmatmul.mubr.bf16.gmra.mxu0 %v780
          %v976 = vpop.f32.mrf.mxu0
          %v977 = vadd.f32 0.0, %v976
          %v978 = vpop.f32.mrf.mxu0
          %v979 = vpop.f32.mrf.mxu0
          %v980 = vadd.f32 0.0, %v979
          %v981 = vpop.f32.mrf.mxu0
          %982 = vmatprep.mubr.bf16.mxu0 %v783
          %983 = vmatmul.mubr.bf16.gmra.mxu0 %v782
          %v984 = vpop.f32.mrf.mxu0
          %v985 = vadd.f32 0.0, %v984
          %v986 = vpop.f32.mrf.mxu0
          %v987 = vpop.f32.mrf.mxu0
          %v988 = vadd.f32 0.0, %v987
          %v989 = vpop.f32.mrf.mxu0
          %990 = vmatprep.mubr.bf16.mxu0 %v785
          %991 = vmatmul.mubr.bf16.gmra.mxu0 %v784
          %v992 = vpop.f32.mrf.mxu0
          %v993 = vadd.f32 0.0, %v992
          %v994 = vpop.f32.mrf.mxu0
          %v995 = vpop.f32.mrf.mxu0
          %v996 = vadd.f32 0.0, %v995
          %v997 = vpop.f32.mrf.mxu0
          %998 = vmatprep.mubr.bf16.mxu0 %v787
          %999 = vmatmul.mubr.bf16.gmra.mxu0 %v786
          %v1000 = vpop.f32.mrf.mxu0
          %v1001 = vadd.f32 0.0, %v1000
          %v1002 = vpop.f32.mrf.mxu0
          %v1003 = vpop.f32.mrf.mxu0
          %v1004 = vadd.f32 0.0, %v1003
          %v1005 = vpop.f32.mrf.mxu0
          %1006 = vmatprep.mubr.bf16.mxu0 %v789
          %1007 = vmatmul.mubr.bf16.gmra.mxu0 %v788
          %v1008 = vpop.f32.mrf.mxu0
          %v1009 = vadd.f32 0.0, %v1008
          %v1010 = vpop.f32.mrf.mxu0
          %v1011 = vpop.f32.mrf.mxu0
          %v1012 = vadd.f32 0.0, %v1011
          %v1013 = vpop.f32.mrf.mxu0
          %1014 = vdwg.mxu0
          %vm1015 = vcmask 64512
          %v1016 = vsel %vm1015, %v953, 0.0
          %v1017 = vsel %vm1015, %v956, 0.0
          %v1018 = vadd.f32 %v1016, %v1017
          %v1019 = vsel %vm1015, %v961, 0.0
          %v1020 = vadd.f32 %v1018, %v1019
          %v1021 = vsel %vm1015, %v964, 0.0
          %v1022 = vadd.f32 %v1020, %v1021
          %v1023 = vsel %vm1015, %v969, 0.0
          %v1024 = vadd.f32 %v1022, %v1023
          %v1025 = vsel %vm1015, %v972, 0.0
          %v1026 = vadd.f32 %v1024, %v1025
          %v1027 = vsel %vm1015, %v977, 0.0
          %v1028 = vadd.f32 %v1026, %v1027
          %v1029 = vsel %vm1015, %v980, 0.0
          %v1030 = vadd.f32 %v1028, %v1029
          %v1031 = vsel %vm1015, %v985, 0.0
          %v1032 = vadd.f32 %v1030, %v1031
          %v1033 = vsel %vm1015, %v988, 0.0
          %v1034 = vadd.f32 %v1032, %v1033
          %v1035 = vsel %vm1015, %v993, 0.0
          %v1036 = vadd.f32 %v1034, %v1035
          %v1037 = vsel %vm1015, %v996, 0.0
          %v1038 = vadd.f32 %v1036, %v1037
          %v1039 = vsel %vm1015, %v1001, 0.0
          %v1040 = vadd.f32 %v1038, %v1039
          %v1041 = vsel %vm1015, %v1004, 0.0
          %v1042 = vadd.f32 %v1040, %v1041
          %v1043 = vsel %vm1015, %v1009, 0.0
          %v1044 = vadd.f32 %v1042, %v1043
          %v1045 = vsel %vm1015, %v1012, 0.0
          %v1046 = vadd.f32 %v1044, %v1045
          %v1047 = vrot.slane %v1046, 4
          %v1048 = vadd.f32 %v1046, %v1047
          %v1049 = vrot.slane %v1048, 2
          %v1050 = vadd.f32 %v1048, %v1049
          %v1051 = vrot.slane %v1050, 1
          %v1052 = vadd.f32 %v1050, %v1051
          %v1053 = vrcp.pop 128.0
          %v1054 = vmul.f32 %v1052, %v1053
          %v1055 = vmul.f32 %v953, %v953
          %v1056 = vmul.f32 %v956, %v956
          %v1057 = vmul.f32 %v961, %v961
          %v1058 = vmul.f32 %v964, %v964
          %v1059 = vmul.f32 %v969, %v969
          %v1060 = vmul.f32 %v972, %v972
          %v1061 = vmul.f32 %v977, %v977
          %v1062 = vmul.f32 %v980, %v980
          %v1063 = vmul.f32 %v985, %v985
          %v1064 = vmul.f32 %v988, %v988
          %v1065 = vmul.f32 %v993, %v993
          %v1066 = vmul.f32 %v996, %v996
          %v1067 = vmul.f32 %v1001, %v1001
          %v1068 = vmul.f32 %v1004, %v1004
          %v1069 = vmul.f32 %v1009, %v1009
          %v1070 = vmul.f32 %v1012, %v1012
          %v1071 = vsel %vm1015, %v1055, 0.0
          %v1072 = vsel %vm1015, %v1056, 0.0
          %v1073 = vadd.f32 %v1071, %v1072
          %v1074 = vsel %vm1015, %v1057, 0.0
          %v1075 = vadd.f32 %v1073, %v1074
          %v1076 = vsel %vm1015, %v1058, 0.0
          %v1077 = vadd.f32 %v1075, %v1076
          %v1078 = vsel %vm1015, %v1059, 0.0
          %v1079 = vadd.f32 %v1077, %v1078
          %v1080 = vsel %vm1015, %v1060, 0.0
          %v1081 = vadd.f32 %v1079, %v1080
          %v1082 = vsel %vm1015, %v1061, 0.0
          %v1083 = vadd.f32 %v1081, %v1082
          %v1084 = vsel %vm1015, %v1062, 0.0
          %v1085 = vadd.f32 %v1083, %v1084
          %v1086 = vsel %vm1015, %v1063, 0.0
          %v1087 = vadd.f32 %v1085, %v1086
          %v1088 = vsel %vm1015, %v1064, 0.0
          %v1089 = vadd.f32 %v1087, %v1088
          %v1090 = vsel %vm1015, %v1065, 0.0
          %v1091 = vadd.f32 %v1089, %v1090
          %v1092 = vsel %vm1015, %v1066, 0.0
          %v1093 = vadd.f32 %v1091, %v1092
          %v1094 = vsel %vm1015, %v1067, 0.0
          %v1095 = vadd.f32 %v1093, %v1094
          %v1096 = vsel %vm1015, %v1068, 0.0
          %v1097 = vadd.f32 %v1095, %v1096
          %v1098 = vsel %vm1015, %v1069, 0.0
          %v1099 = vadd.f32 %v1097, %v1098
          %v1100 = vsel %vm1015, %v1070, 0.0
          %v1101 = vadd.f32 %v1099, %v1100
          %v1102 = vrot.slane %v1101, 4
          %v1103 = vadd.f32 %v1101, %v1102
          %v1104 = vrot.slane %v1103, 2
          %v1105 = vadd.f32 %v1103, %v1104
          %v1106 = vrot.slane %v1105, 1
          %v1107 = vadd.f32 %v1105, %v1106
          %v1108 = vmul.f32 %v1107, %v1053
          %v1109 = vmul.f32 %v1054, %v1054
          %v1110 = vsub.f32 %v1108, %v1109
          %v1111 = vmax.f32 %v1110, 0.0
          %v1112 = vsub.f32 %v953, %v1054
          %v1113 = vsub.f32 %v956, %v1054
          %v1114 = vsub.f32 %v961, %v1054
          %v1115 = vsub.f32 %v964, %v1054
          %v1116 = vsub.f32 %v969, %v1054
          %v1117 = vsub.f32 %v972, %v1054
          %v1118 = vsub.f32 %v977, %v1054
          %v1119 = vsub.f32 %v980, %v1054
          %v1120 = vsub.f32 %v985, %v1054
          %v1121 = vsub.f32 %v988, %v1054
          %v1122 = vsub.f32 %v993, %v1054
          %v1123 = vsub.f32 %v996, %v1054
          %v1124 = vsub.f32 %v1001, %v1054
          %v1125 = vsub.f32 %v1004, %v1054
          %v1126 = vsub.f32 %v1009, %v1054
          %v1127 = vsub.f32 %v1012, %v1054
          %v1128 = vadd.f32 %v1111, 1e-05
          %v1129 = vrsqrt.pop %v1128
          %v1130 = vmul.f32 %v1112, %v1129
          %v1131 = vmul.f32 %v1113, %v1129
          %v1132 = vmul.f32 %v1114, %v1129
          %v1133 = vmul.f32 %v1115, %v1129
          %v1134 = vmul.f32 %v1116, %v1129
          %v1135 = vmul.f32 %v1117, %v1129
          %v1136 = vmul.f32 %v1118, %v1129
          %v1137 = vmul.f32 %v1119, %v1129
          %v1138 = vmul.f32 %v1120, %v1129
          %v1139 = vmul.f32 %v1121, %v1129
          %v1140 = vmul.f32 %v1122, %v1129
          %v1141 = vmul.f32 %v1123, %v1129
          %v1142 = vmul.f32 %v1124, %v1129
          %v1143 = vmul.f32 %v1125, %v1129
          %v1144 = vmul.f32 %v1126, %v1129
          %v1145 = vmul.f32 %v1127, %v1129
          %v1146 = vsel %vm1015, %v1130, -inf
          %1147 = vmax.xlane.f32.xlu0 %v1146
          %v1148 = vpop.xlane.xlu0 %1147
          %v1149 = vsel %vm1015, %v1131, -inf
          %1150 = vmax.xlane.f32.xlu0 %v1149
          %v1151 = vpop.xlane.xlu0 %1150
          %v1152 = vsel %vm1015, %v1132, -inf
          %1153 = vmax.xlane.f32.xlu0 %v1152
          %v1154 = vpop.xlane.xlu0 %1153
          %v1155 = vsel %vm1015, %v1133, -inf
          %1156 = vmax.xlane.f32.xlu0 %v1155
          %v1157 = vpop.xlane.xlu0 %1156
          %v1158 = vsel %vm1015, %v1134, -inf
          %1159 = vmax.xlane.f32.xlu0 %v1158
          %v1160 = vpop.xlane.xlu0 %1159
          %v1161 = vsel %vm1015, %v1135, -inf
          %1162 = vmax.xlane.f32.xlu0 %v1161
          %v1163 = vpop.xlane.xlu0 %1162
          %v1164 = vsel %vm1015, %v1136, -inf
          %1165 = vmax.xlane.f32.xlu0 %v1164
          %v1166 = vpop.xlane.xlu0 %1165
          %v1167 = vsel %vm1015, %v1137, -inf
          %1168 = vmax.xlane.f32.xlu0 %v1167
          %v1169 = vpop.xlane.xlu0 %1168
          %v1170 = vsel %vm1015, %v1138, -inf
          %1171 = vmax.xlane.f32.xlu0 %v1170
          %v1172 = vpop.xlane.xlu0 %1171
          %v1173 = vsel %vm1015, %v1139, -inf
          %1174 = vmax.xlane.f32.xlu0 %v1173
          %v1175 = vpop.xlane.xlu0 %1174
          %v1176 = vsel %vm1015, %v1140, -inf
          %1177 = vmax.xlane.f32.xlu0 %v1176
          %v1178 = vpop.xlane.xlu0 %1177
          %v1179 = vsel %vm1015, %v1141, -inf
          %1180 = vmax.xlane.f32.xlu0 %v1179
          %v1181 = vpop.xlane.xlu0 %1180
          %v1182 = vsel %vm1015, %v1142, -inf
          %1183 = vmax.xlane.f32.xlu0 %v1182
          %v1184 = vpop.xlane.xlu0 %1183
          %v1185 = vsel %vm1015, %v1143, -inf
          %1186 = vmax.xlane.f32.xlu0 %v1185
          %v1187 = vpop.xlane.xlu0 %1186
          %v1188 = vsel %vm1015, %v1144, -inf
          %1189 = vmax.xlane.f32.xlu0 %v1188
          %v1190 = vpop.xlane.xlu0 %1189
          %v1191 = vsel %vm1015, %v1145, -inf
          %1192 = vmax.xlane.f32.xlu0 %v1191
          %v1193 = vpop.xlane.xlu0 %1192
          %v1194 = vsub.f32 %v1130, %v1148
          %v1195 = vsub.f32 %v1131, %v1151
          %v1196 = vsub.f32 %v1132, %v1154
          %v1197 = vsub.f32 %v1133, %v1157
          %v1198 = vsub.f32 %v1134, %v1160
          %v1199 = vsub.f32 %v1135, %v1163
          %v1200 = vsub.f32 %v1136, %v1166
          %v1201 = vsub.f32 %v1137, %v1169
          %v1202 = vsub.f32 %v1138, %v1172
          %v1203 = vsub.f32 %v1139, %v1175
          %v1204 = vsub.f32 %v1140, %v1178
          %v1205 = vsub.f32 %v1141, %v1181
          %v1206 = vsub.f32 %v1142, %v1184
          %v1207 = vsub.f32 %v1143, %v1187
          %v1208 = vsub.f32 %v1144, %v1190
          %v1209 = vsub.f32 %v1145, %v1193
          %v1210 = vmul.f32 %v1194, 1.442695
          %v1211 = vpow.pop %v1210
          %v1212 = vmul.f32 %v1195, 1.442695
          %v1213 = vpow.pop %v1212
          %v1214 = vmul.f32 %v1196, 1.442695
          %v1215 = vpow.pop %v1214
          %v1216 = vmul.f32 %v1197, 1.442695
          %v1217 = vpow.pop %v1216
          %v1218 = vmul.f32 %v1198, 1.442695
          %v1219 = vpow.pop %v1218
          %v1220 = vmul.f32 %v1199, 1.442695
          %v1221 = vpow.pop %v1220
          %v1222 = vmul.f32 %v1200, 1.442695
          %v1223 = vpow.pop %v1222
          %v1224 = vmul.f32 %v1201, 1.442695
          %v1225 = vpow.pop %v1224
          %v1226 = vmul.f32 %v1202, 1.442695
          %v1227 = vpow.pop %v1226
          %v1228 = vmul.f32 %v1203, 1.442695
          %v1229 = vpow.pop %v1228
          %v1230 = vmul.f32 %v1204, 1.442695
          %v1231 = vpow.pop %v1230
          %v1232 = vmul.f32 %v1205, 1.442695
          %v1233 = vpow.pop %v1232
          %v1234 = vmul.f32 %v1206, 1.442695
          %v1235 = vpow.pop %v1234
          %v1236 = vmul.f32 %v1207, 1.442695
          %v1237 = vpow.pop %v1236
          %v1238 = vmul.f32 %v1208, 1.442695
          %v1239 = vpow.pop %v1238
          %v1240 = vmul.f32 %v1209, 1.442695
          %v1241 = vpow.pop %v1240
          %v1242 = vsel %vm1015, %v1211, 0.0
          %1243 = vadd.xlane.f32.xlu0 %v1242
          %v1244 = vpop.xlane.xlu0 %1243
          %v1245 = vsel %vm1015, %v1213, 0.0
          %1246 = vadd.xlane.f32.xlu0 %v1245
          %v1247 = vpop.xlane.xlu0 %1246
          %v1248 = vsel %vm1015, %v1215, 0.0
          %1249 = vadd.xlane.f32.xlu0 %v1248
          %v1250 = vpop.xlane.xlu0 %1249
          %v1251 = vsel %vm1015, %v1217, 0.0
          %1252 = vadd.xlane.f32.xlu0 %v1251
          %v1253 = vpop.xlane.xlu0 %1252
          %v1254 = vsel %vm1015, %v1219, 0.0
          %1255 = vadd.xlane.f32.xlu0 %v1254
          %v1256 = vpop.xlane.xlu0 %1255
          %v1257 = vsel %vm1015, %v1221, 0.0
          %1258 = vadd.xlane.f32.xlu0 %v1257
          %v1259 = vpop.xlane.xlu0 %1258
          %v1260 = vsel %vm1015, %v1223, 0.0
          %1261 = vadd.xlane.f32.xlu0 %v1260
          %v1262 = vpop.xlane.xlu0 %1261
          %v1263 = vsel %vm1015, %v1225, 0.0
          %1264 = vadd.xlane.f32.xlu0 %v1263
          %v1265 = vpop.xlane.xlu0 %1264
          %v1266 = vsel %vm1015, %v1227, 0.0
          %1267 = vadd.xlane.f32.xlu0 %v1266
          %v1268 = vpop.xlane.xlu0 %1267
          %v1269 = vsel %vm1015, %v1229, 0.0
          %1270 = vadd.xlane.f32.xlu0 %v1269
          %v1271 = vpop.xlane.xlu0 %1270
          %v1272 = vsel %vm1015, %v1231, 0.0
          %1273 = vadd.xlane.f32.xlu0 %v1272
          %v1274 = vpop.xlane.xlu0 %1273
          %v1275 = vsel %vm1015, %v1233, 0.0
          %1276 = vadd.xlane.f32.xlu0 %v1275
          %v1277 = vpop.xlane.xlu0 %1276
          %v1278 = vsel %vm1015, %v1235, 0.0
          %1279 = vadd.xlane.f32.xlu0 %v1278
          %v1280 = vpop.xlane.xlu0 %1279
          %v1281 = vsel %vm1015, %v1237, 0.0
          %1282 = vadd.xlane.f32.xlu0 %v1281
          %v1283 = vpop.xlane.xlu0 %1282
          %v1284 = vsel %vm1015, %v1239, 0.0
          %1285 = vadd.xlane.f32.xlu0 %v1284
          %v1286 = vpop.xlane.xlu0 %1285
          %v1287 = vsel %vm1015, %v1241, 0.0
          %1288 = vadd.xlane.f32.xlu0 %v1287
          %v1289 = vpop.xlane.xlu0 %1288
          %v1290 = vrcp.pop %v1244
          %v1291 = vrcp.pop %v1247
          %v1292 = vrcp.pop %v1250
          %v1293 = vrcp.pop %v1253
          %v1294 = vrcp.pop %v1256
          %v1295 = vrcp.pop %v1259
          %v1296 = vrcp.pop %v1262
          %v1297 = vrcp.pop %v1265
          %v1298 = vrcp.pop %v1268
          %v1299 = vrcp.pop %v1271
          %v1300 = vrcp.pop %v1274
          %v1301 = vrcp.pop %v1277
          %v1302 = vrcp.pop %v1280
          %v1303 = vrcp.pop %v1283
          %v1304 = vrcp.pop %v1286
          %v1305 = vrcp.pop %v1289
          %v1306 = vmul.f32 %v1211, %v1290
          %v1307 = vmul.f32 %v1213, %v1291
          %v1308 = vmul.f32 %v1215, %v1292
          %v1309 = vmul.f32 %v1217, %v1293
          %v1310 = vmul.f32 %v1219, %v1294
          %v1311 = vmul.f32 %v1221, %v1295
          %v1312 = vmul.f32 %v1223, %v1296
          %v1313 = vmul.f32 %v1225, %v1297
          %v1314 = vmul.f32 %v1227, %v1298
          %v1315 = vmul.f32 %v1229, %v1299
          %v1316 = vmul.f32 %v1231, %v1300
          %v1317 = vmul.f32 %v1233, %v1301
          %v1318 = vmul.f32 %v1235, %v1302
          %v1319 = vmul.f32 %v1237, %v1303
          %v1320 = vmul.f32 %v1239, %v1304
          %v1321 = vmul.f32 %v1241, %v1305
          %v1322 = vpack.c.bf16 %v1307, %v1306
          %v1323 = vpack.c.bf16 %v1309, %v1308
          %v1324 = vpack.c.bf16 %v1311, %v1310
          %v1325 = vpack.c.bf16 %v1313, %v1312
          %v1326 = vpack.c.bf16 %v1315, %v1314
          %v1327 = vpack.c.bf16 %v1317, %v1316
          %v1328 = vpack.c.bf16 %v1319, %v1318
          %v1329 = vpack.c.bf16 %v1321, %v1320
          %1330 = vxpose.xlu0.c.b16.start [1/8] %v1322, 128
          %1331 = vxpose.xlu0.c.b16.cont [2/8] 0, 128
          %1332 = vxpose.xlu0.c.b16.cont [3/8] 0, 128
          %1333 = vxpose.xlu0.c.b16.cont [4/8] 0, 128
          %1334 = vxpose.xlu0.c.b16.cont [5/8] 0, 128
          %1335 = vxpose.xlu0.c.b16.cont [6/8] 0, 128
          %1336 = vxpose.xlu0.c.b16.cont [7/8] 0, 128
          %1337 = vxpose.xlu0.c.b16.end [8/8] 0, 128
          %v1338 = vpop.trf.xlu0
          %v1339 = vpop.trf.xlu0
          %v1340 = vpop.trf.xlu0
          %v1341 = vpop.trf.xlu0
          %v1342 = vpop.trf.xlu0
          %v1343 = vpop.trf.xlu0
          %v1344 = vpop.trf.xlu0
          %v1345 = vpop.trf.xlu0
          %vm1346 = vcmask 130048
          %v1348 = vsel %vm1346, %v1338, 0
          %1350 = vmatprep.subr.bf16.mxu0 0
          %1351 = vmatpush1.bf16.msra.mxu0 0
          %1352 = vmatprep.subr.bf16.mxu0 0
          %1353 = vmatpush1.bf16.msra.mxu0 0
          %1354 = vmatprep.subr.bf16.mxu0 0
          %1355 = vmatpush1.bf16.msra.mxu0 0
          %1356 = vmatprep.subr.bf16.mxu0 0
          %1357 = vmatpush1.bf16.msra.mxu0 0
          %1358 = vmatprep.subr.bf16.mxu0 0
          %1359 = vmatpush1.bf16.msra.mxu0 0
          %1360 = vmatprep.subr.bf16.mxu0 0
          %1361 = vmatpush1.bf16.msra.mxu0 0
          %1362 = vmatprep.subr.bf16.mxu0 0
          %1363 = vmatpush1.bf16.msra.mxu0 0
          %1364 = vmatprep.subr.bf16.mxu0 %v775
          %1365 = vmatpush1.bf16.msra.mxu0 %v774
          %1366 = vmatprep.subr.bf16.mxu0 0
          %1367 = vmatpush2.bf16.msra.mxu0 0
          %1368 = vmatprep.subr.bf16.mxu0 0
          %1369 = vmatpush2.bf16.msra.mxu0 0
          %1370 = vmatprep.subr.bf16.mxu0 0
          %1371 = vmatpush2.bf16.msra.mxu0 0
          %1372 = vmatprep.subr.bf16.mxu0 0
          %1373 = vmatpush2.bf16.msra.mxu0 0
          %1374 = vmatprep.subr.bf16.mxu0 0
          %1375 = vmatpush2.bf16.msra.mxu0 0
          %1376 = vmatprep.subr.bf16.mxu0 0
          %1377 = vmatpush2.bf16.msra.mxu0 0
          %1378 = vmatprep.subr.bf16.mxu0 0
          %1379 = vmatpush2.bf16.msra.mxu0 0
          %1380 = vmatprep.subr.bf16.mxu0 0
          %1381 = vmatpush2.bf16.msra.mxu0 0
          %1382 = vmatprep.mubr.bf16.mxu0 0
          %1383 = vmatmul.mubr.bf16.gmra.mxu0 %v1348
          %v1384 = vpop.f32.mrf.mxu0
          %v1385 = vadd.f32 0.0, %v1384
          %v1386 = vpop.f32.mrf.mxu0
          %v1387 = vadd.f32 0.0, %v1386
          %v1388 = vpop.f32.mrf.mxu0
          %v1389 = vpop.f32.mrf.mxu0
          %1390 = vdwg.mxu0
          %1391 = vxpose.xlu0.c.b16.start [1/8] %v1323, 128
          %1392 = vxpose.xlu0.c.b16.cont [2/8] 0, 128
          %1393 = vxpose.xlu0.c.b16.cont [3/8] 0, 128
          %1394 = vxpose.xlu0.c.b16.cont [4/8] 0, 128
          %1395 = vxpose.xlu0.c.b16.cont [5/8] 0, 128
          %1396 = vxpose.xlu0.c.b16.cont [6/8] 0, 128
          %1397 = vxpose.xlu0.c.b16.cont [7/8] 0, 128
          %1398 = vxpose.xlu0.c.b16.end [8/8] 0, 128
          %v1399 = vpop.trf.xlu0
          %v1400 = vpop.trf.xlu0
          %v1401 = vpop.trf.xlu0
          %v1402 = vpop.trf.xlu0
          %v1403 = vpop.trf.xlu0
          %v1404 = vpop.trf.xlu0
          %v1405 = vpop.trf.xlu0
          %v1406 = vpop.trf.xlu0
          %v1408 = vsel %vm1346, %v1399, 0
          %1410 = vmatprep.subr.bf16.mxu0 0
          %1411 = vmatpush1.bf16.msra.mxu0 0
          %1412 = vmatprep.subr.bf16.mxu0 0
          %1413 = vmatpush1.bf16.msra.mxu0 0
          %1414 = vmatprep.subr.bf16.mxu0 0
          %1415 = vmatpush1.bf16.msra.mxu0 0
          %1416 = vmatprep.subr.bf16.mxu0 0
          %1417 = vmatpush1.bf16.msra.mxu0 0
          %1418 = vmatprep.subr.bf16.mxu0 0
          %1419 = vmatpush1.bf16.msra.mxu0 0
          %1420 = vmatprep.subr.bf16.mxu0 0
          %1421 = vmatpush1.bf16.msra.mxu0 0
          %1422 = vmatprep.subr.bf16.mxu0 0
          %1423 = vmatpush1.bf16.msra.mxu0 0
          %1424 = vmatprep.subr.bf16.mxu0 %v777
          %1425 = vmatpush1.bf16.msra.mxu0 %v776
          %1426 = vmatprep.subr.bf16.mxu0 0
          %1427 = vmatpush2.bf16.msra.mxu0 0
          %1428 = vmatprep.subr.bf16.mxu0 0
          %1429 = vmatpush2.bf16.msra.mxu0 0
          %1430 = vmatprep.subr.bf16.mxu0 0
          %1431 = vmatpush2.bf16.msra.mxu0 0
          %1432 = vmatprep.subr.bf16.mxu0 0
          %1433 = vmatpush2.bf16.msra.mxu0 0
          %1434 = vmatprep.subr.bf16.mxu0 0
          %1435 = vmatpush2.bf16.msra.mxu0 0
          %1436 = vmatprep.subr.bf16.mxu0 0
          %1437 = vmatpush2.bf16.msra.mxu0 0
          %1438 = vmatprep.subr.bf16.mxu0 0
          %1439 = vmatpush2.bf16.msra.mxu0 0
          %1440 = vmatprep.subr.bf16.mxu0 0
          %1441 = vmatpush2.bf16.msra.mxu0 0
          %1442 = vmatprep.mubr.bf16.mxu0 0
          %1443 = vmatmul.mubr.bf16.gmra.mxu0 %v1408
          %v1444 = vpop.f32.mrf.mxu0
          %v1445 = vadd.f32 0.0, %v1444
          %v1446 = vpop.f32.mrf.mxu0
          %v1447 = vadd.f32 0.0, %v1446
          %v1448 = vpop.f32.mrf.mxu0
          %v1449 = vpop.f32.mrf.mxu0
          %1450 = vdwg.mxu0
          %1451 = vxpose.xlu0.c.b16.start [1/8] %v1324, 128
          %1452 = vxpose.xlu0.c.b16.cont [2/8] 0, 128
          %1453 = vxpose.xlu0.c.b16.cont [3/8] 0, 128
          %1454 = vxpose.xlu0.c.b16.cont [4/8] 0, 128
          %1455 = vxpose.xlu0.c.b16.cont [5/8] 0, 128
          %1456 = vxpose.xlu0.c.b16.cont [6/8] 0, 128
          %1457 = vxpose.xlu0.c.b16.cont [7/8] 0, 128
          %1458 = vxpose.xlu0.c.b16.end [8/8] 0, 128
          %v1459 = vpop.trf.xlu0
          %v1460 = vpop.trf.xlu0
          %v1461 = vpop.trf.xlu0
          %v1462 = vpop.trf.xlu0
          %v1463 = vpop.trf.xlu0
          %v1464 = vpop.trf.xlu0
          %v1465 = vpop.trf.xlu0
          %v1466 = vpop.trf.xlu0
          %v1468 = vsel %vm1346, %v1459, 0
          %1470 = vmatprep.subr.bf16.mxu0 0
          %1471 = vmatpush1.bf16.msra.mxu0 0
          %1472 = vmatprep.subr.bf16.mxu0 0
          %1473 = vmatpush1.bf16.msra.mxu0 0
          %1474 = vmatprep.subr.bf16.mxu0 0
          %1475 = vmatpush1.bf16.msra.mxu0 0
          %1476 = vmatprep.subr.bf16.mxu0 0
          %1477 = vmatpush1.bf16.msra.mxu0 0
          %1478 = vmatprep.subr.bf16.mxu0 0
          %1479 = vmatpush1.bf16.msra.mxu0 0
          %1480 = vmatprep.subr.bf16.mxu0 0
          %1481 = vmatpush1.bf16.msra.mxu0 0
          %1482 = vmatprep.subr.bf16.mxu0 0
          %1483 = vmatpush1.bf16.msra.mxu0 0
          %1484 = vmatprep.subr.bf16.mxu0 %v779
          %1485 = vmatpush1.bf16.msra.mxu0 %v778
          %1486 = vmatprep.subr.bf16.mxu0 0
          %1487 = vmatpush2.bf16.msra.mxu0 0
          %1488 = vmatprep.subr.bf16.mxu0 0
          %1489 = vmatpush2.bf16.msra.mxu0 0
          %1490 = vmatprep.subr.bf16.mxu0 0
          %1491 = vmatpush2.bf16.msra.mxu0 0
          %1492 = vmatprep.subr.bf16.mxu0 0
          %1493 = vmatpush2.bf16.msra.mxu0 0
          %1494 = vmatprep.subr.bf16.mxu0 0
          %1495 = vmatpush2.bf16.msra.mxu0 0
          %1496 = vmatprep.subr.bf16.mxu0 0
          %1497 = vmatpush2.bf16.msra.mxu0 0
          %1498 = vmatprep.subr.bf16.mxu0 0
          %1499 = vmatpush2.bf16.msra.mxu0 0
          %1500 = vmatprep.subr.bf16.mxu0 0
          %1501 = vmatpush2.bf16.msra.mxu0 0
          %1502 = vmatprep.mubr.bf16.mxu0 0
          %1503 = vmatmul.mubr.bf16.gmra.mxu0 %v1468
          %v1504 = vpop.f32.mrf.mxu0
          %v1505 = vadd.f32 0.0, %v1504
          %v1506 = vpop.f32.mrf.mxu0
          %v1507 = vadd.f32 0.0, %v1506
          %v1508 = vpop.f32.mrf.mxu0
          %v1509 = vpop.f32.mrf.mxu0
          %1510 = vdwg.mxu0
          %1511 = vxpose.xlu0.c.b16.start [1/8] %v1325, 128
          %1512 = vxpose.xlu0.c.b16.cont [2/8] 0, 128
          %1513 = vxpose.xlu0.c.b16.cont [3/8] 0, 128
          %1514 = vxpose.xlu0.c.b16.cont [4/8] 0, 128
          %1515 = vxpose.xlu0.c.b16.cont [5/8] 0, 128
          %1516 = vxpose.xlu0.c.b16.cont [6/8] 0, 128
          %1517 = vxpose.xlu0.c.b16.cont [7/8] 0, 128
          %1518 = vxpose.xlu0.c.b16.end [8/8] 0, 128
          %v1519 = vpop.trf.xlu0
          %v1520 = vpop.trf.xlu0
          %v1521 = vpop.trf.xlu0
          %v1522 = vpop.trf.xlu0
          %v1523 = vpop.trf.xlu0
          %v1524 = vpop.trf.xlu0
          %v1525 = vpop.trf.xlu0
          %v1526 = vpop.trf.xlu0
          %v1528 = vsel %vm1346, %v1519, 0
          %1530 = vmatprep.subr.bf16.mxu0 0
          %1531 = vmatpush1.bf16.msra.mxu0 0
          %1532 = vmatprep.subr.bf16.mxu0 0
          %1533 = vmatpush1.bf16.msra.mxu0 0
          %1534 = vmatprep.subr.bf16.mxu0 0
          %1535 = vmatpush1.bf16.msra.mxu0 0
          %1536 = vmatprep.subr.bf16.mxu0 0
          %1537 = vmatpush1.bf16.msra.mxu0 0
          %1538 = vmatprep.subr.bf16.mxu0 0
          %1539 = vmatpush1.bf16.msra.mxu0 0
          %1540 = vmatprep.subr.bf16.mxu0 0
          %1541 = vmatpush1.bf16.msra.mxu0 0
          %1542 = vmatprep.subr.bf16.mxu0 0
          %1543 = vmatpush1.bf16.msra.mxu0 0
          %1544 = vmatprep.subr.bf16.mxu0 %v781
          %1545 = vmatpush1.bf16.msra.mxu0 %v780
          %1546 = vmatprep.subr.bf16.mxu0 0
          %1547 = vmatpush2.bf16.msra.mxu0 0
          %1548 = vmatprep.subr.bf16.mxu0 0
          %1549 = vmatpush2.bf16.msra.mxu0 0
          %1550 = vmatprep.subr.bf16.mxu0 0
          %1551 = vmatpush2.bf16.msra.mxu0 0
          %1552 = vmatprep.subr.bf16.mxu0 0
          %1553 = vmatpush2.bf16.msra.mxu0 0
          %1554 = vmatprep.subr.bf16.mxu0 0
          %1555 = vmatpush2.bf16.msra.mxu0 0
          %1556 = vmatprep.subr.bf16.mxu0 0
          %1557 = vmatpush2.bf16.msra.mxu0 0
          %1558 = vmatprep.subr.bf16.mxu0 0
          %1559 = vmatpush2.bf16.msra.mxu0 0
          %1560 = vmatprep.subr.bf16.mxu0 0
          %1561 = vmatpush2.bf16.msra.mxu0 0
          %1562 = vmatprep.mubr.bf16.mxu0 0
          %1563 = vmatmul.mubr.bf16.gmra.mxu0 %v1528
          %v1564 = vpop.f32.mrf.mxu0
          %v1565 = vadd.f32 0.0, %v1564
          %v1566 = vpop.f32.mrf.mxu0
          %v1567 = vadd.f32 0.0, %v1566
          %v1568 = vpop.f32.mrf.mxu0
          %v1569 = vpop.f32.mrf.mxu0
          %1570 = vdwg.mxu0
          %1571 = vxpose.xlu0.c.b16.start [1/8] %v1326, 128
          %1572 = vxpose.xlu0.c.b16.cont [2/8] 0, 128
          %1573 = vxpose.xlu0.c.b16.cont [3/8] 0, 128
          %1574 = vxpose.xlu0.c.b16.cont [4/8] 0, 128
          %1575 = vxpose.xlu0.c.b16.cont [5/8] 0, 128
          %1576 = vxpose.xlu0.c.b16.cont [6/8] 0, 128
          %1577 = vxpose.xlu0.c.b16.cont [7/8] 0, 128
          %1578 = vxpose.xlu0.c.b16.end [8/8] 0, 128
          %v1579 = vpop.trf.xlu0
          %v1580 = vpop.trf.xlu0
          %v1581 = vpop.trf.xlu0
          %v1582 = vpop.trf.xlu0
          %v1583 = vpop.trf.xlu0
          %v1584 = vpop.trf.xlu0
          %v1585 = vpop.trf.xlu0
          %v1586 = vpop.trf.xlu0
          %v1588 = vsel %vm1346, %v1579, 0
          %1590 = vmatprep.subr.bf16.mxu0 0
          %1591 = vmatpush1.bf16.msra.mxu0 0
          %1592 = vmatprep.subr.bf16.mxu0 0
          %1593 = vmatpush1.bf16.msra.mxu0 0
          %1594 = vmatprep.subr.bf16.mxu0 0
          %1595 = vmatpush1.bf16.msra.mxu0 0
          %1596 = vmatprep.subr.bf16.mxu0 0
          %1597 = vmatpush1.bf16.msra.mxu0 0
          %1598 = vmatprep.subr.bf16.mxu0 0
          %1599 = vmatpush1.bf16.msra.mxu0 0
          %1600 = vmatprep.subr.bf16.mxu0 0
          %1601 = vmatpush1.bf16.msra.mxu0 0
          %1602 = vmatprep.subr.bf16.mxu0 0
          %1603 = vmatpush1.bf16.msra.mxu0 0
          %1604 = vmatprep.subr.bf16.mxu0 %v783
          %1605 = vmatpush1.bf16.msra.mxu0 %v782
          %1606 = vmatprep.subr.bf16.mxu0 0
          %1607 = vmatpush2.bf16.msra.mxu0 0
          %1608 = vmatprep.subr.bf16.mxu0 0
          %1609 = vmatpush2.bf16.msra.mxu0 0
          %1610 = vmatprep.subr.bf16.mxu0 0
          %1611 = vmatpush2.bf16.msra.mxu0 0
          %1612 = vmatprep.subr.bf16.mxu0 0
          %1613 = vmatpush2.bf16.msra.mxu0 0
          %1614 = vmatprep.subr.bf16.mxu0 0
          %1615 = vmatpush2.bf16.msra.mxu0 0
          %1616 = vmatprep.subr.bf16.mxu0 0
          %1617 = vmatpush2.bf16.msra.mxu0 0
          %1618 = vmatprep.subr.bf16.mxu0 0
          %1619 = vmatpush2.bf16.msra.mxu0 0
          %1620 = vmatprep.subr.bf16.mxu0 0
          %1621 = vmatpush2.bf16.msra.mxu0 0
          %1622 = vmatprep.mubr.bf16.mxu0 0
          %1623 = vmatmul.mubr.bf16.gmra.mxu0 %v1588
          %v1624 = vpop.f32.mrf.mxu0
          %v1625 = vadd.f32 0.0, %v1624
          %v1626 = vpop.f32.mrf.mxu0
          %v1627 = vadd.f32 0.0, %v1626
          %v1628 = vpop.f32.mrf.mxu0
          %v1629 = vpop.f32.mrf.mxu0
          %1630 = vdwg.mxu0
          %1631 = vxpose.xlu0.c.b16.start [1/8] %v1327, 128
          %1632 = vxpose.xlu0.c.b16.cont [2/8] 0, 128
          %1633 = vxpose.xlu0.c.b16.cont [3/8] 0, 128
          %1634 = vxpose.xlu0.c.b16.cont [4/8] 0, 128
          %1635 = vxpose.xlu0.c.b16.cont [5/8] 0, 128
          %1636 = vxpose.xlu0.c.b16.cont [6/8] 0, 128
          %1637 = vxpose.xlu0.c.b16.cont [7/8] 0, 128
          %1638 = vxpose.xlu0.c.b16.end [8/8] 0, 128
          %v1639 = vpop.trf.xlu0
          %v1640 = vpop.trf.xlu0
          %v1641 = vpop.trf.xlu0
          %v1642 = vpop.trf.xlu0
          %v1643 = vpop.trf.xlu0
          %v1644 = vpop.trf.xlu0
          %v1645 = vpop.trf.xlu0
          %v1646 = vpop.trf.xlu0
          %v1648 = vsel %vm1346, %v1639, 0
          %1650 = vmatprep.subr.bf16.mxu0 0
          %1651 = vmatpush1.bf16.msra.mxu0 0
          %1652 = vmatprep.subr.bf16.mxu0 0
          %1653 = vmatpush1.bf16.msra.mxu0 0
          %1654 = vmatprep.subr.bf16.mxu0 0
          %1655 = vmatpush1.bf16.msra.mxu0 0
          %1656 = vmatprep.subr.bf16.mxu0 0
          %1657 = vmatpush1.bf16.msra.mxu0 0
          %1658 = vmatprep.subr.bf16.mxu0 0
          %1659 = vmatpush1.bf16.msra.mxu0 0
          %1660 = vmatprep.subr.bf16.mxu0 0
          %1661 = vmatpush1.bf16.msra.mxu0 0
          %1662 = vmatprep.subr.bf16.mxu0 0
          %1663 = vmatpush1.bf16.msra.mxu0 0
          %1664 = vmatprep.subr.bf16.mxu0 %v785
          %1665 = vmatpush1.bf16.msra.mxu0 %v784
          %1666 = vmatprep.subr.bf16.mxu0 0
          %1667 = vmatpush2.bf16.msra.mxu0 0
          %1668 = vmatprep.subr.bf16.mxu0 0
          %1669 = vmatpush2.bf16.msra.mxu0 0
          %1670 = vmatprep.subr.bf16.mxu0 0
          %1671 = vmatpush2.bf16.msra.mxu0 0
          %1672 = vmatprep.subr.bf16.mxu0 0
          %1673 = vmatpush2.bf16.msra.mxu0 0
          %1674 = vmatprep.subr.bf16.mxu0 0
          %1675 = vmatpush2.bf16.msra.mxu0 0
          %1676 = vmatprep.subr.bf16.mxu0 0
          %1677 = vmatpush2.bf16.msra.mxu0 0
          %1678 = vmatprep.subr.bf16.mxu0 0
          %1679 = vmatpush2.bf16.msra.mxu0 0
          %1680 = vmatprep.subr.bf16.mxu0 0
          %1681 = vmatpush2.bf16.msra.mxu0 0
          %1682 = vmatprep.mubr.bf16.mxu0 0
          %1683 = vmatmul.mubr.bf16.gmra.mxu0 %v1648
          %v1684 = vpop.f32.mrf.mxu0
          %v1685 = vadd.f32 0.0, %v1684
          %v1686 = vpop.f32.mrf.mxu0
          %v1687 = vadd.f32 0.0, %v1686
          %v1688 = vpop.f32.mrf.mxu0
          %v1689 = vpop.f32.mrf.mxu0
          %1690 = vdwg.mxu0
          %1691 = vxpose.xlu0.c.b16.start [1/8] %v1328, 128
          %1692 = vxpose.xlu0.c.b16.cont [2/8] 0, 128
          %1693 = vxpose.xlu0.c.b16.cont [3/8] 0, 128
          %1694 = vxpose.xlu0.c.b16.cont [4/8] 0, 128
          %1695 = vxpose.xlu0.c.b16.cont [5/8] 0, 128
          %1696 = vxpose.xlu0.c.b16.cont [6/8] 0, 128
          %1697 = vxpose.xlu0.c.b16.cont [7/8] 0, 128
          %1698 = vxpose.xlu0.c.b16.end [8/8] 0, 128
          %v1699 = vpop.trf.xlu0
          %v1700 = vpop.trf.xlu0
          %v1701 = vpop.trf.xlu0
          %v1702 = vpop.trf.xlu0
          %v1703 = vpop.trf.xlu0
          %v1704 = vpop.trf.xlu0
          %v1705 = vpop.trf.xlu0
          %v1706 = vpop.trf.xlu0
          %v1708 = vsel %vm1346, %v1699, 0
          %1710 = vmatprep.subr.bf16.mxu0 0
          %1711 = vmatpush1.bf16.msra.mxu0 0
          %1712 = vmatprep.subr.bf16.mxu0 0
          %1713 = vmatpush1.bf16.msra.mxu0 0
          %1714 = vmatprep.subr.bf16.mxu0 0
          %1715 = vmatpush1.bf16.msra.mxu0 0
          %1716 = vmatprep.subr.bf16.mxu0 0
          %1717 = vmatpush1.bf16.msra.mxu0 0
          %1718 = vmatprep.subr.bf16.mxu0 0
          %1719 = vmatpush1.bf16.msra.mxu0 0
          %1720 = vmatprep.subr.bf16.mxu0 0
          %1721 = vmatpush1.bf16.msra.mxu0 0
          %1722 = vmatprep.subr.bf16.mxu0 0
          %1723 = vmatpush1.bf16.msra.mxu0 0
          %1724 = vmatprep.subr.bf16.mxu0 %v787
          %1725 = vmatpush1.bf16.msra.mxu0 %v786
          %1726 = vmatprep.subr.bf16.mxu0 0
          %1727 = vmatpush2.bf16.msra.mxu0 0
          %1728 = vmatprep.subr.bf16.mxu0 0
          %1729 = vmatpush2.bf16.msra.mxu0 0
          %1730 = vmatprep.subr.bf16.mxu0 0
          %1731 = vmatpush2.bf16.msra.mxu0 0
          %1732 = vmatprep.subr.bf16.mxu0 0
          %1733 = vmatpush2.bf16.msra.mxu0 0
          %1734 = vmatprep.subr.bf16.mxu0 0
          %1735 = vmatpush2.bf16.msra.mxu0 0
          %1736 = vmatprep.subr.bf16.mxu0 0
          %1737 = vmatpush2.bf16.msra.mxu0 0
          %1738 = vmatprep.subr.bf16.mxu0 0
          %1739 = vmatpush2.bf16.msra.mxu0 0
          %1740 = vmatprep.subr.bf16.mxu0 0
          %1741 = vmatpush2.bf16.msra.mxu0 0
          %1742 = vmatprep.mubr.bf16.mxu0 0
          %1743 = vmatmul.mubr.bf16.gmra.mxu0 %v1708
          %v1744 = vpop.f32.mrf.mxu0
          %v1745 = vadd.f32 0.0, %v1744
          %v1746 = vpop.f32.mrf.mxu0
          %v1747 = vadd.f32 0.0, %v1746
          %v1748 = vpop.f32.mrf.mxu0
          %v1749 = vpop.f32.mrf.mxu0
          %1750 = vdwg.mxu0
          %1751 = vxpose.xlu0.c.b16.start [1/8] %v1329, 128
          %1752 = vxpose.xlu0.c.b16.cont [2/8] 0, 128
          %1753 = vxpose.xlu0.c.b16.cont [3/8] 0, 128
          %1754 = vxpose.xlu0.c.b16.cont [4/8] 0, 128
          %1755 = vxpose.xlu0.c.b16.cont [5/8] 0, 128
          %1756 = vxpose.xlu0.c.b16.cont [6/8] 0, 128
          %1757 = vxpose.xlu0.c.b16.cont [7/8] 0, 128
          %1758 = vxpose.xlu0.c.b16.end [8/8] 0, 128
          %v1759 = vpop.trf.xlu0
          %v1760 = vpop.trf.xlu0
          %v1761 = vpop.trf.xlu0
          %v1762 = vpop.trf.xlu0
          %v1763 = vpop.trf.xlu0
          %v1764 = vpop.trf.xlu0
          %v1765 = vpop.trf.xlu0
          %v1766 = vpop.trf.xlu0
          %v1768 = vsel %vm1346, %v1759, 0
          %1770 = vmatprep.subr.bf16.mxu0 0
          %1771 = vmatpush1.bf16.msra.mxu0 0
          %1772 = vmatprep.subr.bf16.mxu0 0
          %1773 = vmatpush1.bf16.msra.mxu0 0
          %1774 = vmatprep.subr.bf16.mxu0 0
          %1775 = vmatpush1.bf16.msra.mxu0 0
          %1776 = vmatprep.subr.bf16.mxu0 0
          %1777 = vmatpush1.bf16.msra.mxu0 0
          %1778 = vmatprep.subr.bf16.mxu0 0
          %1779 = vmatpush1.bf16.msra.mxu0 0
          %1780 = vmatprep.subr.bf16.mxu0 0
          %1781 = vmatpush1.bf16.msra.mxu0 0
          %1782 = vmatprep.subr.bf16.mxu0 0
          %1783 = vmatpush1.bf16.msra.mxu0 0
          %1784 = vmatprep.subr.bf16.mxu0 %v789
          %1785 = vmatpush1.bf16.msra.mxu0 %v788
          %1786 = vmatprep.subr.bf16.mxu0 0
          %1787 = vmatpush2.bf16.msra.mxu0 0
          %1788 = vmatprep.subr.bf16.mxu0 0
          %1789 = vmatpush2.bf16.msra.mxu0 0
          %1790 = vmatprep.subr.bf16.mxu0 0
          %1791 = vmatpush2.bf16.msra.mxu0 0
          %1792 = vmatprep.subr.bf16.mxu0 0
          %1793 = vmatpush2.bf16.msra.mxu0 0
          %1794 = vmatprep.subr.bf16.mxu0 0
          %1795 = vmatpush2.bf16.msra.mxu0 0
          %1796 = vmatprep.subr.bf16.mxu0 0
          %1797 = vmatpush2.bf16.msra.mxu0 0
          %1798 = vmatprep.subr.bf16.mxu0 0
          %1799 = vmatpush2.bf16.msra.mxu0 0
          %1800 = vmatprep.subr.bf16.mxu0 0
          %1801 = vmatpush2.bf16.msra.mxu0 0
          %1802 = vmatprep.mubr.bf16.mxu0 0
          %1803 = vmatmul.mubr.bf16.gmra.mxu0 %v1768
          %v1804 = vpop.f32.mrf.mxu0
          %v1805 = vadd.f32 0.0, %v1804
          %v1806 = vpop.f32.mrf.mxu0
          %v1807 = vadd.f32 0.0, %v1806
          %v1808 = vpop.f32.mrf.mxu0
          %v1809 = vpop.f32.mrf.mxu0
          %1810 = vdwg.mxu0
          %v1811 = vmul.f32 %v1385, %v1385
          %v1812 = vmul.f32 %v1387, %v1387
          %v1813 = vmul.f32 %v1445, %v1445
          %v1814 = vmul.f32 %v1447, %v1447
          %v1815 = vmul.f32 %v1505, %v1505
          %v1816 = vmul.f32 %v1507, %v1507
          %v1817 = vmul.f32 %v1565, %v1565
          %v1818 = vmul.f32 %v1567, %v1567
          %v1819 = vmul.f32 %v1625, %v1625
          %v1820 = vmul.f32 %v1627, %v1627
          %v1821 = vmul.f32 %v1685, %v1685
          %v1822 = vmul.f32 %v1687, %v1687
          %v1823 = vmul.f32 %v1745, %v1745
          %v1824 = vmul.f32 %v1747, %v1747
          %v1825 = vmul.f32 %v1805, %v1805
          %v1826 = vmul.f32 %v1807, %v1807
          %v1827 = vadd.f32 %v1811, %v1812
          %1828 = vadd.xlane.f32.xlu0 %v1827
          %v1829 = vpop.xlane.xlu0 %1828
          %v1830 = vadd.f32 %v1813, %v1814
          %1831 = vadd.xlane.f32.xlu0 %v1830
          %v1832 = vpop.xlane.xlu0 %1831
          %v1833 = vadd.f32 %v1815, %v1816
          %1834 = vadd.xlane.f32.xlu0 %v1833
          %v1835 = vpop.xlane.xlu0 %1834
          %v1836 = vadd.f32 %v1817, %v1818
          %1837 = vadd.xlane.f32.xlu0 %v1836
          %v1838 = vpop.xlane.xlu0 %1837
          %v1839 = vadd.f32 %v1819, %v1820
          %1840 = vadd.xlane.f32.xlu0 %v1839
          %v1841 = vpop.xlane.xlu0 %1840
          %v1842 = vadd.f32 %v1821, %v1822
          %1843 = vadd.xlane.f32.xlu0 %v1842
          %v1844 = vpop.xlane.xlu0 %1843
          %v1845 = vadd.f32 %v1823, %v1824
          %1846 = vadd.xlane.f32.xlu0 %v1845
          %v1847 = vpop.xlane.xlu0 %1846
          %v1848 = vadd.f32 %v1825, %v1826
          %1849 = vadd.xlane.f32.xlu0 %v1848
          %v1850 = vpop.xlane.xlu0 %1849
          %v1851 = vmax.f32 %v1829, 1e-24
          %v1852 = vmax.f32 %v1832, 1e-24
          %v1853 = vmax.f32 %v1835, 1e-24
          %v1854 = vmax.f32 %v1838, 1e-24
          %v1855 = vmax.f32 %v1841, 1e-24
          %v1856 = vmax.f32 %v1844, 1e-24
          %v1857 = vmax.f32 %v1847, 1e-24
          %v1858 = vmax.f32 %v1850, 1e-24
          %v1859 = vrsqrt.pop %v1851
          %v1860 = vrsqrt.pop %v1852
          %v1861 = vrsqrt.pop %v1853
          %v1862 = vrsqrt.pop %v1854
          %v1863 = vrsqrt.pop %v1855
          %v1864 = vrsqrt.pop %v1856
          %v1865 = vrsqrt.pop %v1857
          %v1866 = vrsqrt.pop %v1858
          %v1867 = vmul.f32 %v1385, %v1859
          %v1868 = vmul.f32 %v1387, %v1859
          %v1869 = vmul.f32 %v1445, %v1860
          %v1870 = vmul.f32 %v1447, %v1860
          %v1871 = vmul.f32 %v1505, %v1861
          %v1872 = vmul.f32 %v1507, %v1861
          %v1873 = vmul.f32 %v1565, %v1862
          %v1874 = vmul.f32 %v1567, %v1862
          %v1875 = vmul.f32 %v1625, %v1863
          %v1876 = vmul.f32 %v1627, %v1863
          %v1877 = vmul.f32 %v1685, %v1864
          %v1878 = vmul.f32 %v1687, %v1864
          %v1879 = vmul.f32 %v1745, %v1865
          %v1880 = vmul.f32 %v1747, %v1865
          %v1881 = vmul.f32 %v1805, %v1866
          %v1882 = vmul.f32 %v1807, %v1866
          %v1883 = vmul.f32 %v1829, %v1859
          %v1884 = vmul.f32 %v1832, %v1860
          %v1885 = vmul.f32 %v1835, %v1861
          %v1886 = vmul.f32 %v1838, %v1862
          %v1887 = vmul.f32 %v1841, %v1863
          %v1888 = vmul.f32 %v1844, %v1864
          %v1889 = vmul.f32 %v1847, %v1865
          %v1890 = vmul.f32 %v1850, %v1866
          %v1891 = vmul.f32 %v1883, %v1859
          %v1892 = vmul.f32 %v1884, %v1860
          %v1893 = vmul.f32 %v1885, %v1861
          %v1894 = vmul.f32 %v1886, %v1862
          %v1895 = vmul.f32 %v1887, %v1863
          %v1896 = vmul.f32 %v1888, %v1864
          %v1897 = vmul.f32 %v1889, %v1865
          %v1898 = vmul.f32 %v1890, %v1866
          %v1899 = vrot.slane %v1891, 4
          %v1900 = vadd.f32 %v1891, %v1899
          %v1901 = vrot.slane %v1900, 2
          %v1902 = vadd.f32 %v1900, %v1901
          %v1903 = vrot.slane %v1902, 1
          %v1904 = vadd.f32 %v1902, %v1903
          %v1905 = vrot.slane %v1892, 4
          %v1906 = vadd.f32 %v1892, %v1905
          %v1907 = vrot.slane %v1906, 2
          %v1908 = vadd.f32 %v1906, %v1907
          %v1909 = vrot.slane %v1908, 1
          %v1910 = vadd.f32 %v1908, %v1909
          %v1911 = vrot.slane %v1893, 4
          %v1912 = vadd.f32 %v1893, %v1911
          %v1913 = vrot.slane %v1912, 2
          %v1914 = vadd.f32 %v1912, %v1913
          %v1915 = vrot.slane %v1914, 1
          %v1916 = vadd.f32 %v1914, %v1915
          %v1917 = vrot.slane %v1894, 4
          %v1918 = vadd.f32 %v1894, %v1917
          %v1919 = vrot.slane %v1918, 2
          %v1920 = vadd.f32 %v1918, %v1919
          %v1921 = vrot.slane %v1920, 1
          %v1922 = vadd.f32 %v1920, %v1921
          %v1923 = vrot.slane %v1895, 4
          %v1924 = vadd.f32 %v1895, %v1923
          %v1925 = vrot.slane %v1924, 2
          %v1926 = vadd.f32 %v1924, %v1925
          %v1927 = vrot.slane %v1926, 1
          %v1928 = vadd.f32 %v1926, %v1927
          %v1929 = vrot.slane %v1896, 4
          %v1930 = vadd.f32 %v1896, %v1929
          %v1931 = vrot.slane %v1930, 2
          %v1932 = vadd.f32 %v1930, %v1931
          %v1933 = vrot.slane %v1932, 1
          %v1934 = vadd.f32 %v1932, %v1933
          %v1935 = vrot.slane %v1897, 4
          %v1936 = vadd.f32 %v1897, %v1935
          %v1937 = vrot.slane %v1936, 2
          %v1938 = vadd.f32 %v1936, %v1937
          %v1939 = vrot.slane %v1938, 1
          %v1940 = vadd.f32 %v1938, %v1939
          %v1941 = vrot.slane %v1898, 4
          %v1942 = vadd.f32 %v1898, %v1941
          %v1943 = vrot.slane %v1942, 2
          %v1944 = vadd.f32 %v1942, %v1943
          %v1945 = vrot.slane %v1944, 1
          %v1946 = vadd.f32 %v1944, %v1945
          %v1947 = vmax.f32 %v1904, 1e-24
          %v1948 = vmax.f32 %v1910, 1e-24
          %v1949 = vmax.f32 %v1916, 1e-24
          %v1950 = vmax.f32 %v1922, 1e-24
          %v1951 = vmax.f32 %v1928, 1e-24
          %v1952 = vmax.f32 %v1934, 1e-24
          %v1953 = vmax.f32 %v1940, 1e-24
          %v1954 = vmax.f32 %v1946, 1e-24
          %v1955 = vrsqrt.pop %v1947
          %v1956 = vrsqrt.pop %v1948
          %v1957 = vrsqrt.pop %v1949
          %v1958 = vrsqrt.pop %v1950
          %v1959 = vrsqrt.pop %v1951
          %v1960 = vrsqrt.pop %v1952
          %v1961 = vrsqrt.pop %v1953
          %v1962 = vrsqrt.pop %v1954
          %vm1971 = vcmask 1041409
          %v1972 = vsel %vm1971, %v1956, %v1955
          %vm1973 = vcmask 1042434
          %v1974 = vsel %vm1973, %v1957, %v1972
          %vm1975 = vcmask 1043459
          %v1976 = vsel %vm1975, %v1958, %v1974
          %vm1977 = vcmask 1044484
          %v1978 = vsel %vm1977, %v1959, %v1976
          %vm1979 = vcmask 1045509
          %v1980 = vsel %vm1979, %v1960, %v1978
          %vm1981 = vcmask 1046534
          %v1982 = vsel %vm1981, %v1961, %v1980
          %vm1983 = vcmask 1047559
          %v1984 = vsel %vm1983, %v1962, %v1982
          %vm1986 = vcmask 7168
          %1987 = vst.msk [vmem:[#allocation4] sm:$0xff] %vm1986, %v1984
          %v1988 = vpack.c.bf16 %v1867, %v1867
          %v1989 = vpack.c.bf16 %v1868, %v1868
          %v1990 = vpack.c.bf16 %v1869, %v1869
          %v1991 = vpack.c.bf16 %v1870, %v1870
          %v1992 = vpack.c.bf16 %v1871, %v1871
          %v1993 = vpack.c.bf16 %v1872, %v1872
          %v1994 = vpack.c.bf16 %v1873, %v1873
          %v1995 = vpack.c.bf16 %v1874, %v1874
          %v1996 = vpack.c.bf16 %v1875, %v1875
          %v1997 = vpack.c.bf16 %v1876, %v1876
          %v1998 = vpack.c.bf16 %v1877, %v1877
          %v1999 = vpack.c.bf16 %v1878, %v1878
          %v2000 = vpack.c.bf16 %v1879, %v1879
          %v2001 = vpack.c.bf16 %v1880, %v1880
          %v2002 = vpack.c.bf16 %v1881, %v1881
          %v2003 = vpack.c.bf16 %v1882, %v1882
          %v2012 = vunpack.c.l.b16 %v1988
          %v2013 = vunpack.c.l.b16 %v1990
          %v2014 = vunpack.c.l.b16 %v1992
          %v2015 = vunpack.c.l.b16 %v1994
          %v2016 = vunpack.c.l.b16 %v1996
          %v2017 = vunpack.c.l.b16 %v1998
          %v2018 = vunpack.c.l.b16 %v2000
          %v2019 = vunpack.c.l.b16 %v2002
          %v2020 = vpack.c.b16 %v2012, %v2012
          %v2021 = vpack.c.b16 %v2013, %v2013
          %v2022 = vpack.c.b16 %v2014, %v2014
          %v2023 = vpack.c.b16 %v2015, %v2015
          %v2024 = vpack.c.b16 %v2016, %v2016
          %v2025 = vpack.c.b16 %v2017, %v2017
          %v2026 = vpack.c.b16 %v2018, %v2018
          %v2027 = vpack.c.b16 %v2019, %v2019
          %v2028 = vunpack.c.l.b16 %v2020
          %v2029 = vunpack.c.l.b16 %v2021
          %v2030 = vunpack.c.l.b16 %v2022
          %v2031 = vunpack.c.l.b16 %v2023
          %v2032 = vunpack.c.l.b16 %v2024
          %v2033 = vunpack.c.l.b16 %v2025
          %v2034 = vunpack.c.l.b16 %v2026
          %v2035 = vunpack.c.l.b16 %v2027
          %v2036 = vrot.slane %v2029, 7
          %v2037 = vsel %vm1971, %v2036, %v2028
          %v2038 = vrot.slane %v2030, 6
          %v2039 = vsel %vm1973, %v2038, %v2037
          %v2040 = vrot.slane %v2031, 5
          %v2041 = vsel %vm1975, %v2040, %v2039
          %v2042 = vrot.slane %v2032, 4
          %v2043 = vsel %vm1977, %v2042, %v2041
          %v2044 = vrot.slane %v2033, 3
          %v2045 = vsel %vm1979, %v2044, %v2043
          %v2046 = vrot.slane %v2034, 2
          %v2047 = vsel %vm1981, %v2046, %v2045
          %v2048 = vrot.slane %v2035, 1
          %v2049 = vsel %vm1983, %v2048, %v2047
          %v2050 = vpack.c.b16 %v2049, %v2049
          %2052 = vst [vmem:[#allocation2] sm:$0xf] %v2050
          %v2053 = vrot.slane %v2028, 1
          %v2054 = vsel %vm1971, %v2029, %v2053
          %v2055 = vrot.slane %v2030, 7
          %v2056 = vsel %vm1973, %v2055, %v2054
          %v2057 = vrot.slane %v2031, 6
          %v2058 = vsel %vm1975, %v2057, %v2056
          %v2059 = vrot.slane %v2032, 5
          %v2060 = vsel %vm1977, %v2059, %v2058
          %v2061 = vrot.slane %v2033, 4
          %v2062 = vsel %vm1979, %v2061, %v2060
          %v2063 = vrot.slane %v2034, 3
          %v2064 = vsel %vm1981, %v2063, %v2062
          %v2065 = vrot.slane %v2035, 2
          %v2066 = vsel %vm1983, %v2065, %v2064
          %v2067 = vpack.c.b16 %v2066, %v2066
          %2069 = vst [vmem:[#allocation2 + $0x4] sm:$0xf] %v2067
          %v2070 = vrot.slane %v2028, 2
          %v2071 = vrot.slane %v2029, 1
          %v2072 = vsel %vm1971, %v2071, %v2070
          %v2073 = vsel %vm1973, %v2030, %v2072
          %v2074 = vrot.slane %v2031, 7
          %v2075 = vsel %vm1975, %v2074, %v2073
          %v2076 = vrot.slane %v2032, 6
          %v2077 = vsel %vm1977, %v2076, %v2075
          %v2078 = vrot.slane %v2033, 5
          %v2079 = vsel %vm1979, %v2078, %v2077
          %v2080 = vrot.slane %v2034, 4
          %v2081 = vsel %vm1981, %v2080, %v2079
          %v2082 = vrot.slane %v2035, 3
          %v2083 = vsel %vm1983, %v2082, %v2081
          %v2084 = vpack.c.b16 %v2083, %v2083
          %2086 = vst [vmem:[#allocation2 + $0x8] sm:$0xf] %v2084
          %v2087 = vrot.slane %v2028, 3
          %v2088 = vrot.slane %v2029, 2
          %v2089 = vsel %vm1971, %v2088, %v2087
          %v2090 = vrot.slane %v2030, 1
          %v2091 = vsel %vm1973, %v2090, %v2089
          %v2092 = vsel %vm1975, %v2031, %v2091
          %v2093 = vrot.slane %v2032, 7
          %v2094 = vsel %vm1977, %v2093, %v2092
          %v2095 = vrot.slane %v2033, 6
          %v2096 = vsel %vm1979, %v2095, %v2094
          %v2097 = vrot.slane %v2034, 5
          %v2098 = vsel %vm1981, %v2097, %v2096
          %v2099 = vrot.slane %v2035, 4
          %v2100 = vsel %vm1983, %v2099, %v2098
          %v2101 = vpack.c.b16 %v2100, %v2100
          %2103 = vst [vmem:[#allocation2 + $0xc] sm:$0xf] %v2101
          %v2104 = vrot.slane %v2028, 4
          %v2105 = vrot.slane %v2029, 3
          %v2106 = vsel %vm1971, %v2105, %v2104
          %v2107 = vrot.slane %v2030, 2
          %v2108 = vsel %vm1973, %v2107, %v2106
          %v2109 = vrot.slane %v2031, 1
          %v2110 = vsel %vm1975, %v2109, %v2108
          %v2111 = vsel %vm1977, %v2032, %v2110
          %v2112 = vrot.slane %v2033, 7
          %v2113 = vsel %vm1979, %v2112, %v2111
          %v2114 = vrot.slane %v2034, 6
          %v2115 = vsel %vm1981, %v2114, %v2113
          %v2116 = vrot.slane %v2035, 5
          %v2117 = vsel %vm1983, %v2116, %v2115
          %v2118 = vpack.c.b16 %v2117, %v2117
          %2120 = vst [vmem:[#allocation2 + $0x10] sm:$0xf] %v2118
          %v2121 = vrot.slane %v2028, 5
          %v2122 = vrot.slane %v2029, 4
          %v2123 = vsel %vm1971, %v2122, %v2121
          %v2124 = vrot.slane %v2030, 3
          %v2125 = vsel %vm1973, %v2124, %v2123
          %v2126 = vrot.slane %v2031, 2
          %v2127 = vsel %vm1975, %v2126, %v2125
          %v2128 = vrot.slane %v2032, 1
          %v2129 = vsel %vm1977, %v2128, %v2127
          %v2130 = vsel %vm1979, %v2033, %v2129
          %v2131 = vrot.slane %v2034, 7
          %v2132 = vsel %vm1981, %v2131, %v2130
          %v2133 = vrot.slane %v2035, 6
          %v2134 = vsel %vm1983, %v2133, %v2132
          %v2135 = vpack.c.b16 %v2134, %v2134
          %2137 = vst [vmem:[#allocation2 + $0x14] sm:$0xf] %v2135
          %v2138 = vrot.slane %v2028, 6
          %v2139 = vrot.slane %v2029, 5
          %v2140 = vsel %vm1971, %v2139, %v2138
          %v2141 = vrot.slane %v2030, 4
          %v2142 = vsel %vm1973, %v2141, %v2140
          %v2143 = vrot.slane %v2031, 3
          %v2144 = vsel %vm1975, %v2143, %v2142
          %v2145 = vrot.slane %v2032, 2
          %v2146 = vsel %vm1977, %v2145, %v2144
          %v2147 = vrot.slane %v2033, 1
          %v2148 = vsel %vm1979, %v2147, %v2146
          %v2149 = vsel %vm1981, %v2034, %v2148
          %v2150 = vrot.slane %v2035, 7
          %v2151 = vsel %vm1983, %v2150, %v2149
          %v2152 = vpack.c.b16 %v2151, %v2151
          %2154 = vst [vmem:[#allocation2 + $0x18] sm:$0xf] %v2152
          %v2155 = vrot.slane %v2028, 7
          %v2156 = vrot.slane %v2029, 6
          %v2157 = vsel %vm1971, %v2156, %v2155
          %v2158 = vrot.slane %v2030, 5
          %v2159 = vsel %vm1973, %v2158, %v2157
          %v2160 = vrot.slane %v2031, 4
          %v2161 = vsel %vm1975, %v2160, %v2159
          %v2162 = vrot.slane %v2032, 3
          %v2163 = vsel %vm1977, %v2162, %v2161
          %v2164 = vrot.slane %v2033, 2
          %v2165 = vsel %vm1979, %v2164, %v2163
          %v2166 = vrot.slane %v2034, 1
          %v2167 = vsel %vm1981, %v2166, %v2165
          %v2168 = vsel %vm1983, %v2035, %v2167
          %v2169 = vpack.c.b16 %v2168, %v2168
          %2171 = vst [vmem:[#allocation2 + $0x1c] sm:$0xf] %v2169
          %v2180 = vunpack.c.l.b16 %v1989
          %v2181 = vunpack.c.l.b16 %v1991
          %v2182 = vunpack.c.l.b16 %v1993
          %v2183 = vunpack.c.l.b16 %v1995
          %v2184 = vunpack.c.l.b16 %v1997
          %v2185 = vunpack.c.l.b16 %v1999
          %v2186 = vunpack.c.l.b16 %v2001
          %v2187 = vunpack.c.l.b16 %v2003
          %v2188 = vpack.c.b16 %v2180, %v2180
          %v2189 = vpack.c.b16 %v2181, %v2181
          %v2190 = vpack.c.b16 %v2182, %v2182
          %v2191 = vpack.c.b16 %v2183, %v2183
          %v2192 = vpack.c.b16 %v2184, %v2184
          %v2193 = vpack.c.b16 %v2185, %v2185
          %v2194 = vpack.c.b16 %v2186, %v2186
          %v2195 = vpack.c.b16 %v2187, %v2187
          %v2196 = vunpack.c.l.b16 %v2188
          %v2197 = vunpack.c.l.b16 %v2189
          %v2198 = vunpack.c.l.b16 %v2190
          %v2199 = vunpack.c.l.b16 %v2191
          %v2200 = vunpack.c.l.b16 %v2192
          %v2201 = vunpack.c.l.b16 %v2193
          %v2202 = vunpack.c.l.b16 %v2194
          %v2203 = vunpack.c.l.b16 %v2195
          %v2204 = vrot.slane %v2197, 7
          %v2205 = vsel %vm1971, %v2204, %v2196
          %v2206 = vrot.slane %v2198, 6
          %v2207 = vsel %vm1973, %v2206, %v2205
          %v2208 = vrot.slane %v2199, 5
          %v2209 = vsel %vm1975, %v2208, %v2207
          %v2210 = vrot.slane %v2200, 4
          %v2211 = vsel %vm1977, %v2210, %v2209
          %v2212 = vrot.slane %v2201, 3
          %v2213 = vsel %vm1979, %v2212, %v2211
          %v2214 = vrot.slane %v2202, 2
          %v2215 = vsel %vm1981, %v2214, %v2213
          %v2216 = vrot.slane %v2203, 1
          %v2217 = vsel %vm1983, %v2216, %v2215
          %v2218 = vpack.c.b16 %v2217, %v2217
          %s2220 = scalar_lea.vmem [#allocation2], 32
          %2221 = vst [vmem:[%s2220] sm:$0xf] %v2218
          %v2222 = vrot.slane %v2196, 1
          %v2223 = vsel %vm1971, %v2197, %v2222
          %v2224 = vrot.slane %v2198, 7
          %v2225 = vsel %vm1973, %v2224, %v2223
          %v2226 = vrot.slane %v2199, 6
          %v2227 = vsel %vm1975, %v2226, %v2225
          %v2228 = vrot.slane %v2200, 5
          %v2229 = vsel %vm1977, %v2228, %v2227
          %v2230 = vrot.slane %v2201, 4
          %v2231 = vsel %vm1979, %v2230, %v2229
          %v2232 = vrot.slane %v2202, 3
          %v2233 = vsel %vm1981, %v2232, %v2231
          %v2234 = vrot.slane %v2203, 2
          %v2235 = vsel %vm1983, %v2234, %v2233
          %v2236 = vpack.c.b16 %v2235, %v2235
          %2238 = vst [vmem:[%s2220 + $0x4] sm:$0xf] %v2236
          %v2239 = vrot.slane %v2196, 2
          %v2240 = vrot.slane %v2197, 1
          %v2241 = vsel %vm1971, %v2240, %v2239
          %v2242 = vsel %vm1973, %v2198, %v2241
          %v2243 = vrot.slane %v2199, 7
          %v2244 = vsel %vm1975, %v2243, %v2242
          %v2245 = vrot.slane %v2200, 6
          %v2246 = vsel %vm1977, %v2245, %v2244
          %v2247 = vrot.slane %v2201, 5
          %v2248 = vsel %vm1979, %v2247, %v2246
          %v2249 = vrot.slane %v2202, 4
          %v2250 = vsel %vm1981, %v2249, %v2248
          %v2251 = vrot.slane %v2203, 3
          %v2252 = vsel %vm1983, %v2251, %v2250
          %v2253 = vpack.c.b16 %v2252, %v2252
          %2255 = vst [vmem:[%s2220 + $0x8] sm:$0xf] %v2253
          %v2256 = vrot.slane %v2196, 3
          %v2257 = vrot.slane %v2197, 2
          %v2258 = vsel %vm1971, %v2257, %v2256
          %v2259 = vrot.slane %v2198, 1
          %v2260 = vsel %vm1973, %v2259, %v2258
          %v2261 = vsel %vm1975, %v2199, %v2260
          %v2262 = vrot.slane %v2200, 7
          %v2263 = vsel %vm1977, %v2262, %v2261
          %v2264 = vrot.slane %v2201, 6
          %v2265 = vsel %vm1979, %v2264, %v2263
          %v2266 = vrot.slane %v2202, 5
          %v2267 = vsel %vm1981, %v2266, %v2265
          %v2268 = vrot.slane %v2203, 4
          %v2269 = vsel %vm1983, %v2268, %v2267
          %v2270 = vpack.c.b16 %v2269, %v2269
          %2272 = vst [vmem:[%s2220 + $0xc] sm:$0xf] %v2270
          %v2273 = vrot.slane %v2196, 4
          %v2274 = vrot.slane %v2197, 3
          %v2275 = vsel %vm1971, %v2274, %v2273
          %v2276 = vrot.slane %v2198, 2
          %v2277 = vsel %vm1973, %v2276, %v2275
          %v2278 = vrot.slane %v2199, 1
          %v2279 = vsel %vm1975, %v2278, %v2277
          %v2280 = vsel %vm1977, %v2200, %v2279
          %v2281 = vrot.slane %v2201, 7
          %v2282 = vsel %vm1979, %v2281, %v2280
          %v2283 = vrot.slane %v2202, 6
          %v2284 = vsel %vm1981, %v2283, %v2282
          %v2285 = vrot.slane %v2203, 5
          %v2286 = vsel %vm1983, %v2285, %v2284
          %v2287 = vpack.c.b16 %v2286, %v2286
          %2289 = vst [vmem:[%s2220 + $0x10] sm:$0xf] %v2287
          %v2290 = vrot.slane %v2196, 5
          %v2291 = vrot.slane %v2197, 4
          %v2292 = vsel %vm1971, %v2291, %v2290
          %v2293 = vrot.slane %v2198, 3
          %v2294 = vsel %vm1973, %v2293, %v2292
          %v2295 = vrot.slane %v2199, 2
          %v2296 = vsel %vm1975, %v2295, %v2294
          %v2297 = vrot.slane %v2200, 1
          %v2298 = vsel %vm1977, %v2297, %v2296
          %v2299 = vsel %vm1979, %v2201, %v2298
          %v2300 = vrot.slane %v2202, 7
          %v2301 = vsel %vm1981, %v2300, %v2299
          %v2302 = vrot.slane %v2203, 6
          %v2303 = vsel %vm1983, %v2302, %v2301
          %v2304 = vpack.c.b16 %v2303, %v2303
          %2306 = vst [vmem:[%s2220 + $0x14] sm:$0xf] %v2304
          %v2307 = vrot.slane %v2196, 6
          %v2308 = vrot.slane %v2197, 5
          %v2309 = vsel %vm1971, %v2308, %v2307
          %v2310 = vrot.slane %v2198, 4
          %v2311 = vsel %vm1973, %v2310, %v2309
          %v2312 = vrot.slane %v2199, 3
          %v2313 = vsel %vm1975, %v2312, %v2311
          %v2314 = vrot.slane %v2200, 2
          %v2315 = vsel %vm1977, %v2314, %v2313
          %v2316 = vrot.slane %v2201, 1
          %v2317 = vsel %vm1979, %v2316, %v2315
          %v2318 = vsel %vm1981, %v2202, %v2317
          %v2319 = vrot.slane %v2203, 7
          %v2320 = vsel %vm1983, %v2319, %v2318
          %v2321 = vpack.c.b16 %v2320, %v2320
          %2323 = vst [vmem:[%s2220 + $0x18] sm:$0xf] %v2321
          %v2324 = vrot.slane %v2196, 7
          %v2325 = vrot.slane %v2197, 6
          %v2326 = vsel %vm1971, %v2325, %v2324
          %v2327 = vrot.slane %v2198, 5
          %v2328 = vsel %vm1973, %v2327, %v2326
          %v2329 = vrot.slane %v2199, 4
          %v2330 = vsel %vm1975, %v2329, %v2328
          %v2331 = vrot.slane %v2200, 3
          %v2332 = vsel %vm1977, %v2331, %v2330
          %v2333 = vrot.slane %v2201, 2
          %v2334 = vsel %vm1979, %v2333, %v2332
          %v2335 = vrot.slane %v2202, 1
          %v2336 = vsel %vm1981, %v2335, %v2334
          %v2337 = vsel %vm1983, %v2203, %v2336
          %v2338 = vpack.c.b16 %v2337, %v2337
          %2340 = vst [vmem:[%s2220 + $0x1c] sm:$0xf] %v2338
          %vm2341 = vcmask 261120
          %2342 = vst.msk [vmem:[#allocation3] sm:$0xff] %vm2341, 0.0
        $region81: #{tpu_custom_call.1} parent=72 // pred_fallthru
          _
        %v2343 = vld [vmem:[%s718] sm:$0xf]
        %v2344 = vld [vmem:[%s718 + $0x4] sm:$0xf]
        %v2345 = vld [vmem:[%s718 + $0x8] sm:$0xf]
        %v2346 = vld [vmem:[%s718 + $0xc] sm:$0xf]
        %v2347 = vld [vmem:[%s718 + $0x10] sm:$0xf]
        %v2348 = vld [vmem:[%s718 + $0x14] sm:$0xf]
        %v2349 = vld [vmem:[%s718 + $0x18] sm:$0xf]
        %v2350 = vld [vmem:[%s718 + $0x1c] sm:$0xf]
        %v2351 = vld [vmem:[%s718 + $0x20] sm:$0xf]
        %v2352 = vld [vmem:[%s718 + $0x24] sm:$0xf]
        %v2353 = vld [vmem:[%s718 + $0x28] sm:$0xf]
        %v2354 = vld [vmem:[%s718 + $0x2c] sm:$0xf]
        %v2355 = vld [vmem:[%s718 + $0x30] sm:$0xf]
        %v2356 = vld [vmem:[%s718 + $0x34] sm:$0xf]
        %v2357 = vld [vmem:[%s718 + $0x38] sm:$0xf]
        %v2358 = vld [vmem:[%s718 + $0x3c] sm:$0xf]
        %v2359 = vld [vmem:[%s718 + $0x40] sm:$0xf]
        %v2360 = vld [vmem:[%s718 + $0x44] sm:$0xf]
        %v2361 = vld [vmem:[%s718 + $0x48] sm:$0xf]
        %v2362 = vld [vmem:[%s718 + $0x4c] sm:$0xf]
        %v2363 = vld [vmem:[%s718 + $0x50] sm:$0xf]
        %v2364 = vld [vmem:[%s718 + $0x54] sm:$0xf]
        %v2365 = vld [vmem:[%s718 + $0x58] sm:$0xf]
        %v2366 = vld [vmem:[%s718 + $0x5c] sm:$0xf]
        %v2367 = vld [vmem:[%s718 + $0x60] sm:$0xf]
        %v2368 = vld [vmem:[%s718 + $0x64] sm:$0xf]
        %v2369 = vld [vmem:[%s718 + $0x68] sm:$0xf]
        %v2370 = vld [vmem:[%s718 + $0x6c] sm:$0xf]
        %v2371 = vld [vmem:[%s718 + $0x70] sm:$0xf]
        %v2372 = vld [vmem:[%s718 + $0x74] sm:$0xf]
        %v2373 = vld [vmem:[%s718 + $0x78] sm:$0xf]
        %v2374 = vld [vmem:[%s718 + $0x7c] sm:$0xf]
        %v2375 = vld [vmem:[%s718 + $0x80] sm:$0xf]
        %v2376 = vld [vmem:[%s718 + $0x84] sm:$0xf]
        %v2377 = vld [vmem:[%s718 + $0x88] sm:$0xf]
        %v2378 = vld [vmem:[%s718 + $0x8c] sm:$0xf]
        %v2379 = vld [vmem:[%s718 + $0x90] sm:$0xf]
        %v2380 = vld [vmem:[%s718 + $0x94] sm:$0xf]
        %v2381 = vld [vmem:[%s718 + $0x98] sm:$0xf]
        %v2382 = vld [vmem:[%s718 + $0x9c] sm:$0xf]
        %v2383 = vld [vmem:[%s718 + $0xa0] sm:$0xf]
        %v2384 = vld [vmem:[%s718 + $0xa4] sm:$0xf]
        %v2385 = vld [vmem:[%s718 + $0xa8] sm:$0xf]
        %v2386 = vld [vmem:[%s718 + $0xac] sm:$0xf]
        %v2387 = vld [vmem:[%s718 + $0xb0] sm:$0xf]
        %v2388 = vld [vmem:[%s718 + $0xb4] sm:$0xf]
        %v2389 = vld [vmem:[%s718 + $0xb8] sm:$0xf]
        %v2390 = vld [vmem:[%s718 + $0xbc] sm:$0xf]
        %v2391 = vld [vmem:[%s718 + $0xc0] sm:$0xf]
        %v2392 = vld [vmem:[%s718 + $0xc4] sm:$0xf]
        %v2393 = vld [vmem:[%s718 + $0xc8] sm:$0xf]
        %v2394 = vld [vmem:[%s718 + $0xcc] sm:$0xf]
        %v2395 = vld [vmem:[%s718 + $0xd0] sm:$0xf]
        %v2396 = vld [vmem:[%s718 + $0xd4] sm:$0xf]
        %v2397 = vld [vmem:[%s718 + $0xd8] sm:$0xf]
        %v2398 = vld [vmem:[%s718 + $0xdc] sm:$0xf]
        %v2399 = vld [vmem:[%s718 + $0xe0] sm:$0xf]
        %v2400 = vld [vmem:[%s718 + $0xe4] sm:$0xf]
        %v2401 = vld [vmem:[%s718 + $0xe8] sm:$0xf]
        %v2402 = vld [vmem:[%s718 + $0xec] sm:$0xf]
        %v2403 = vld [vmem:[%s718 + $0xf0] sm:$0xf]
        %v2404 = vld [vmem:[%s718 + $0xf4] sm:$0xf]
        %v2405 = vld [vmem:[%s718 + $0xf8] sm:$0xf]
        %v2406 = vld [vmem:[%s718 + $0xfc] sm:$0xf]
        %v2407 = vld [vmem:[%s718 + $0x100] sm:$0xf]
        %v2408 = vld [vmem:[%s718 + $0x104] sm:$0xf]
        %v2409 = vld [vmem:[%s718 + $0x108] sm:$0xf]
        %v2410 = vld [vmem:[%s718 + $0x10c] sm:$0xf]
        %v2411 = vld [vmem:[%s718 + $0x110] sm:$0xf]
        %v2412 = vld [vmem:[%s718 + $0x114] sm:$0xf]
        %v2413 = vld [vmem:[%s718 + $0x118] sm:$0xf]
        %v2414 = vld [vmem:[%s718 + $0x11c] sm:$0xf]
        %v2415 = vld [vmem:[%s718 + $0x120] sm:$0xf]
        %v2416 = vld [vmem:[%s718 + $0x124] sm:$0xf]
        %v2417 = vld [vmem:[%s718 + $0x128] sm:$0xf]
        %v2418 = vld [vmem:[%s718 + $0x12c] sm:$0xf]
        %v2419 = vld [vmem:[%s718 + $0x130] sm:$0xf]
        %v2420 = vld [vmem:[%s718 + $0x134] sm:$0xf]
        %v2421 = vld [vmem:[%s718 + $0x138] sm:$0xf]
        %v2422 = vld [vmem:[%s718 + $0x13c] sm:$0xf]
        %v2423 = vld [vmem:[%s718 + $0x140] sm:$0xf]
        %v2424 = vld [vmem:[%s718 + $0x144] sm:$0xf]
        %v2425 = vld [vmem:[%s718 + $0x148] sm:$0xf]
        %v2426 = vld [vmem:[%s718 + $0x14c] sm:$0xf]
        %v2427 = vld [vmem:[%s718 + $0x150] sm:$0xf]
        %v2428 = vld [vmem:[%s718 + $0x154] sm:$0xf]
        %v2429 = vld [vmem:[%s718 + $0x158] sm:$0xf]
        %v2430 = vld [vmem:[%s718 + $0x15c] sm:$0xf]
        %v2431 = vld [vmem:[%s718 + $0x160] sm:$0xf]
        %v2432 = vld [vmem:[%s718 + $0x164] sm:$0xf]
        %v2433 = vld [vmem:[%s718 + $0x168] sm:$0xf]
        %v2434 = vld [vmem:[%s718 + $0x16c] sm:$0xf]
        %v2435 = vld [vmem:[%s718 + $0x170] sm:$0xf]
        %v2436 = vld [vmem:[%s718 + $0x174] sm:$0xf]
        %v2437 = vld [vmem:[%s718 + $0x178] sm:$0xf]
        %v2438 = vld [vmem:[%s718 + $0x17c] sm:$0xf]
        %v2439 = vld [vmem:[%s718 + $0x180] sm:$0xf]
        %v2440 = vld [vmem:[%s718 + $0x184] sm:$0xf]
        %v2441 = vld [vmem:[%s718 + $0x188] sm:$0xf]
        %v2442 = vld [vmem:[%s718 + $0x18c] sm:$0xf]
        %v2443 = vld [vmem:[%s718 + $0x190] sm:$0xf]
        %v2444 = vld [vmem:[%s718 + $0x194] sm:$0xf]
        %v2445 = vld [vmem:[%s718 + $0x198] sm:$0xf]
        %v2446 = vld [vmem:[%s718 + $0x19c] sm:$0xf]
        %v2447 = vld [vmem:[%s718 + $0x1a0] sm:$0xf]
        %v2448 = vld [vmem:[%s718 + $0x1a4] sm:$0xf]
        %v2449 = vld [vmem:[%s718 + $0x1a8] sm:$0xf]
        %v2450 = vld [vmem:[%s718 + $0x1ac] sm:$0xf]
        %v2451 = vld [vmem:[%s718 + $0x1b0] sm:$0xf]
        %v2452 = vld [vmem:[%s718 + $0x1b4] sm:$0xf]
        %v2453 = vld [vmem:[%s718 + $0x1b8] sm:$0xf]
        %v2454 = vld [vmem:[%s718 + $0x1bc] sm:$0xf]
        %v2455 = vld [vmem:[%s718 + $0x1c0] sm:$0xf]
        %v2456 = vld [vmem:[%s718 + $0x1c4] sm:$0xf]
        %v2457 = vld [vmem:[%s718 + $0x1c8] sm:$0xf]
        %v2458 = vld [vmem:[%s718 + $0x1cc] sm:$0xf]
        %v2459 = vld [vmem:[%s718 + $0x1d0] sm:$0xf]
        %v2460 = vld [vmem:[%s718 + $0x1d4] sm:$0xf]
        %v2461 = vld [vmem:[%s718 + $0x1d8] sm:$0xf]
        %v2462 = vld [vmem:[%s718 + $0x1dc] sm:$0xf]
        %v2463 = vld [vmem:[%s718 + $0x1e0] sm:$0xf]
        %v2464 = vld [vmem:[%s718 + $0x1e4] sm:$0xf]
        %v2465 = vld [vmem:[%s718 + $0x1e8] sm:$0xf]
        %v2466 = vld [vmem:[%s718 + $0x1ec] sm:$0xf]
        %v2467 = vld [vmem:[%s718 + $0x1f0] sm:$0xf]
        %v2468 = vld [vmem:[%s718 + $0x1f4] sm:$0xf]
        %v2469 = vld [vmem:[%s718 + $0x1f8] sm:$0xf]
        %v2470 = vld [vmem:[%s718 + $0x1fc] sm:$0xf]
        %v2471 = vld [vmem:[#allocation3] sm:$0xff]
        %s2472 = smul.u32 %s16, 8
        %s2473 = smul.addr %s2472, 4
        %s2474 = scalar_lea.vmem [#allocation2], %s2473
        %v2475 = vld [vmem:[%s2474] sm:$0xff]
        %v2476 = vld [vmem:[%s2474 + $0x8] sm:$0xff]
        %v2477 = vld [vmem:[%s2474 + $0x10] sm:$0xff]
        %v2478 = vld [vmem:[%s2474 + $0x18] sm:$0xff]
        %v2483 = vunpack.c.l.b16 %v2475
        %v2484 = vunpack.c.h.b16 %v2475
        %v2485 = vunpack.c.l.b16 %v2476
        %v2486 = vunpack.c.h.b16 %v2476
        %v2487 = vunpack.c.l.b16 %v2477
        %v2488 = vunpack.c.h.b16 %v2477
        %v2489 = vunpack.c.l.b16 %v2478
        %v2490 = vunpack.c.h.b16 %v2478
        %v2491 = vpack.c.b16 %v2483, %v2483
        %v2492 = vpack.c.b16 %v2484, %v2484
        %v2493 = vpack.c.b16 %v2485, %v2485
        %v2494 = vpack.c.b16 %v2486, %v2486
        %v2495 = vpack.c.b16 %v2487, %v2487
        %v2496 = vpack.c.b16 %v2488, %v2488
        %v2497 = vpack.c.b16 %v2489, %v2489
        %v2498 = vpack.c.b16 %v2490, %v2490
        %v2635 = vunpack.c.l.b16 %v2343
        %v2636 = vunpack.c.l.b16 %v2344
        %v2637 = vunpack.c.l.b16 %v2345
        %v2638 = vunpack.c.l.b16 %v2346
        %v2639 = vunpack.c.l.b16 %v2347
        %v2640 = vunpack.c.l.b16 %v2348
        %v2641 = vunpack.c.l.b16 %v2349
        %v2642 = vunpack.c.l.b16 %v2350
        %v2643 = vunpack.c.l.b16 %v2351
        %v2644 = vunpack.c.l.b16 %v2352
        %v2645 = vunpack.c.l.b16 %v2353
        %v2646 = vunpack.c.l.b16 %v2354
        %v2647 = vunpack.c.l.b16 %v2355
        %v2648 = vunpack.c.l.b16 %v2356
        %v2649 = vunpack.c.l.b16 %v2357
        %v2650 = vunpack.c.l.b16 %v2358
        %v2651 = vunpack.c.l.b16 %v2359
        %v2652 = vunpack.c.l.b16 %v2360
        %v2653 = vunpack.c.l.b16 %v2361
        %v2654 = vunpack.c.l.b16 %v2362
        %v2655 = vunpack.c.l.b16 %v2363
        %v2656 = vunpack.c.l.b16 %v2364
        %v2657 = vunpack.c.l.b16 %v2365
        %v2658 = vunpack.c.l.b16 %v2366
        %v2659 = vunpack.c.l.b16 %v2367
        %v2660 = vunpack.c.l.b16 %v2368
        %v2661 = vunpack.c.l.b16 %v2369
        %v2662 = vunpack.c.l.b16 %v2370
        %v2663 = vunpack.c.l.b16 %v2371
        %v2664 = vunpack.c.l.b16 %v2372
        %v2665 = vunpack.c.l.b16 %v2373
        %v2666 = vunpack.c.l.b16 %v2374
        %v2667 = vunpack.c.l.b16 %v2375
        %v2668 = vunpack.c.l.b16 %v2376
        %v2669 = vunpack.c.l.b16 %v2377
        %v2670 = vunpack.c.l.b16 %v2378
        %v2671 = vunpack.c.l.b16 %v2379
        %v2672 = vunpack.c.l.b16 %v2380
        %v2673 = vunpack.c.l.b16 %v2381
        %v2674 = vunpack.c.l.b16 %v2382
        %v2675 = vunpack.c.l.b16 %v2383
        %v2676 = vunpack.c.l.b16 %v2384
        %v2677 = vunpack.c.l.b16 %v2385
        %v2678 = vunpack.c.l.b16 %v2386
        %v2679 = vunpack.c.l.b16 %v2387
        %v2680 = vunpack.c.l.b16 %v2388
        %v2681 = vunpack.c.l.b16 %v2389
        %v2682 = vunpack.c.l.b16 %v2390
        %v2683 = vunpack.c.l.b16 %v2391
        %v2684 = vunpack.c.l.b16 %v2392
        %v2685 = vunpack.c.l.b16 %v2393
        %v2686 = vunpack.c.l.b16 %v2394
        %v2687 = vunpack.c.l.b16 %v2395
        %v2688 = vunpack.c.l.b16 %v2396
        %v2689 = vunpack.c.l.b16 %v2397
        %v2690 = vunpack.c.l.b16 %v2398
        %v2691 = vunpack.c.l.b16 %v2399
        %v2692 = vunpack.c.l.b16 %v2400
        %v2693 = vunpack.c.l.b16 %v2401
        %v2694 = vunpack.c.l.b16 %v2402
        %v2695 = vunpack.c.l.b16 %v2403
        %v2696 = vunpack.c.l.b16 %v2404
        %v2697 = vunpack.c.l.b16 %v2405
        %v2698 = vunpack.c.l.b16 %v2406
        %v2699 = vunpack.c.l.b16 %v2407
        %v2700 = vunpack.c.l.b16 %v2408
        %v2701 = vunpack.c.l.b16 %v2409
        %v2702 = vunpack.c.l.b16 %v2410
        %v2703 = vunpack.c.l.b16 %v2411
        %v2704 = vunpack.c.l.b16 %v2412
        %v2705 = vunpack.c.l.b16 %v2413
        %v2706 = vunpack.c.l.b16 %v2414
        %v2707 = vunpack.c.l.b16 %v2415
        %v2708 = vunpack.c.l.b16 %v2416
        %v2709 = vunpack.c.l.b16 %v2417
        %v2710 = vunpack.c.l.b16 %v2418
        %v2711 = vunpack.c.l.b16 %v2419
        %v2712 = vunpack.c.l.b16 %v2420
        %v2713 = vunpack.c.l.b16 %v2421
        %v2714 = vunpack.c.l.b16 %v2422
        %v2715 = vunpack.c.l.b16 %v2423
        %v2716 = vunpack.c.l.b16 %v2424
        %v2717 = vunpack.c.l.b16 %v2425
        %v2718 = vunpack.c.l.b16 %v2426
        %v2719 = vunpack.c.l.b16 %v2427
        %v2720 = vunpack.c.l.b16 %v2428
        %v2721 = vunpack.c.l.b16 %v2429
        %v2722 = vunpack.c.l.b16 %v2430
        %v2723 = vunpack.c.l.b16 %v2431
        %v2724 = vunpack.c.l.b16 %v2432
        %v2725 = vunpack.c.l.b16 %v2433
        %v2726 = vunpack.c.l.b16 %v2434
        %v2727 = vunpack.c.l.b16 %v2435
        %v2728 = vunpack.c.l.b16 %v2436
        %v2729 = vunpack.c.l.b16 %v2437
        %v2730 = vunpack.c.l.b16 %v2438
        %v2731 = vunpack.c.l.b16 %v2439
        %v2732 = vunpack.c.l.b16 %v2440
        %v2733 = vunpack.c.l.b16 %v2441
        %v2734 = vunpack.c.l.b16 %v2442
        %v2735 = vunpack.c.l.b16 %v2443
        %v2736 = vunpack.c.l.b16 %v2444
        %v2737 = vunpack.c.l.b16 %v2445
        %v2738 = vunpack.c.l.b16 %v2446
        %v2739 = vunpack.c.l.b16 %v2447
        %v2740 = vunpack.c.l.b16 %v2448
        %v2741 = vunpack.c.l.b16 %v2449
        %v2742 = vunpack.c.l.b16 %v2450
        %v2743 = vunpack.c.l.b16 %v2451
        %v2744 = vunpack.c.l.b16 %v2452
        %v2745 = vunpack.c.l.b16 %v2453
        %v2746 = vunpack.c.l.b16 %v2454
        %v2747 = vunpack.c.l.b16 %v2455
        %v2748 = vunpack.c.l.b16 %v2456
        %v2749 = vunpack.c.l.b16 %v2457
        %v2750 = vunpack.c.l.b16 %v2458
        %v2751 = vunpack.c.l.b16 %v2459
        %v2752 = vunpack.c.l.b16 %v2460
        %v2753 = vunpack.c.l.b16 %v2461
        %v2754 = vunpack.c.l.b16 %v2462
        %v2755 = vunpack.c.l.b16 %v2463
        %v2756 = vunpack.c.l.b16 %v2464
        %v2757 = vunpack.c.l.b16 %v2465
        %v2758 = vunpack.c.l.b16 %v2466
        %v2759 = vunpack.c.l.b16 %v2467
        %v2760 = vunpack.c.l.b16 %v2468
        %v2761 = vunpack.c.l.b16 %v2469
        %v2762 = vunpack.c.l.b16 %v2470
        %v2763 = vpack.c.b16 %v2636, %v2635
        %v2764 = vpack.c.b16 %v2638, %v2637
        %v2765 = vpack.c.b16 %v2640, %v2639
        %v2766 = vpack.c.b16 %v2642, %v2641
        %v2767 = vpack.c.b16 %v2644, %v2643
        %v2768 = vpack.c.b16 %v2646, %v2645
        %v2769 = vpack.c.b16 %v2648, %v2647
        %v2770 = vpack.c.b16 %v2650, %v2649
        %v2771 = vpack.c.b16 %v2652, %v2651
        %v2772 = vpack.c.b16 %v2654, %v2653
        %v2773 = vpack.c.b16 %v2656, %v2655
        %v2774 = vpack.c.b16 %v2658, %v2657
        %v2775 = vpack.c.b16 %v2660, %v2659
        %v2776 = vpack.c.b16 %v2662, %v2661
        %v2777 = vpack.c.b16 %v2664, %v2663
        %v2778 = vpack.c.b16 %v2666, %v2665
        %v2779 = vpack.c.b16 %v2668, %v2667
        %v2780 = vpack.c.b16 %v2670, %v2669
        %v2781 = vpack.c.b16 %v2672, %v2671
        %v2782 = vpack.c.b16 %v2674, %v2673
        %v2783 = vpack.c.b16 %v2676, %v2675
        %v2784 = vpack.c.b16 %v2678, %v2677
        %v2785 = vpack.c.b16 %v2680, %v2679
        %v2786 = vpack.c.b16 %v2682, %v2681
        %v2787 = vpack.c.b16 %v2684, %v2683
        %v2788 = vpack.c.b16 %v2686, %v2685
        %v2789 = vpack.c.b16 %v2688, %v2687
        %v2790 = vpack.c.b16 %v2690, %v2689
        %v2791 = vpack.c.b16 %v2692, %v2691
        %v2792 = vpack.c.b16 %v2694, %v2693
        %v2793 = vpack.c.b16 %v2696, %v2695
        %v2794 = vpack.c.b16 %v2698, %v2697
        %v2795 = vpack.c.b16 %v2700, %v2699
        %v2796 = vpack.c.b16 %v2702, %v2701
        %v2797 = vpack.c.b16 %v2704, %v2703
        %v2798 = vpack.c.b16 %v2706, %v2705
        %v2799 = vpack.c.b16 %v2708, %v2707
        %v2800 = vpack.c.b16 %v2710, %v2709
        %v2801 = vpack.c.b16 %v2712, %v2711
        %v2802 = vpack.c.b16 %v2714, %v2713
        %v2803 = vpack.c.b16 %v2716, %v2715
        %v2804 = vpack.c.b16 %v2718, %v2717
        %v2805 = vpack.c.b16 %v2720, %v2719
        %v2806 = vpack.c.b16 %v2722, %v2721
        %v2807 = vpack.c.b16 %v2724, %v2723
        %v2808 = vpack.c.b16 %v2726, %v2725
        %v2809 = vpack.c.b16 %v2728, %v2727
        %v2810 = vpack.c.b16 %v2730, %v2729
        %v2811 = vpack.c.b16 %v2732, %v2731
        %v2812 = vpack.c.b16 %v2734, %v2733
        %v2813 = vpack.c.b16 %v2736, %v2735
        %v2814 = vpack.c.b16 %v2738, %v2737
        %v2815 = vpack.c.b16 %v2740, %v2739
        %v2816 = vpack.c.b16 %v2742, %v2741
        %v2817 = vpack.c.b16 %v2744, %v2743
        %v2818 = vpack.c.b16 %v2746, %v2745
        %v2819 = vpack.c.b16 %v2748, %v2747
        %v2820 = vpack.c.b16 %v2750, %v2749
        %v2821 = vpack.c.b16 %v2752, %v2751
        %v2822 = vpack.c.b16 %v2754, %v2753
        %v2823 = vpack.c.b16 %v2756, %v2755
        %v2824 = vpack.c.b16 %v2758, %v2757
        %v2825 = vpack.c.b16 %v2760, %v2759
        %v2826 = vpack.c.b16 %v2762, %v2761
        %2891 = vmatprep.subr.bf16.mxu0 0
        %2892 = vmatpush1.bf16.msra.mxu0 %v2770
        %2893 = vmatprep.subr.bf16.mxu0 0
        %2894 = vmatpush1.bf16.msra.mxu0 %v2769
        %2895 = vmatprep.subr.bf16.mxu0 0
        %2896 = vmatpush1.bf16.msra.mxu0 %v2768
        %2897 = vmatprep.subr.bf16.mxu0 0
        %2898 = vmatpush1.bf16.msra.mxu0 %v2767
        %2899 = vmatprep.subr.bf16.mxu0 0
        %2900 = vmatpush1.bf16.msra.mxu0 %v2766
        %2901 = vmatprep.subr.bf16.mxu0 0
        %2902 = vmatpush1.bf16.msra.mxu0 %v2765
        %2903 = vmatprep.subr.bf16.mxu0 0
        %2904 = vmatpush1.bf16.msra.mxu0 %v2764
        %2905 = vmatprep.subr.bf16.mxu0 0
        %2906 = vmatpush1.bf16.msra.mxu0 %v2763
        %2907 = vmatprep.subr.bf16.mxu0 0
        %2908 = vmatpush2.bf16.msra.mxu0 %v2778
        %2909 = vmatprep.subr.bf16.mxu0 0
        %2910 = vmatpush2.bf16.msra.mxu0 %v2777
        %2911 = vmatprep.subr.bf16.mxu0 0
        %2912 = vmatpush2.bf16.msra.mxu0 %v2776
        %2913 = vmatprep.subr.bf16.mxu0 0
        %2914 = vmatpush2.bf16.msra.mxu0 %v2775
        %2915 = vmatprep.subr.bf16.mxu0 0
        %2916 = vmatpush2.bf16.msra.mxu0 %v2774
        %2917 = vmatprep.subr.bf16.mxu0 0
        %2918 = vmatpush2.bf16.msra.mxu0 %v2773
        %2919 = vmatprep.subr.bf16.mxu0 0
        %2920 = vmatpush2.bf16.msra.mxu0 %v2772
        %2921 = vmatprep.subr.bf16.mxu0 0
        %2922 = vmatpush2.bf16.msra.mxu0 %v2771
        %2923 = vmatprep.mubr.bf16.mxu0 %v2492
        %2924 = vmatmul.mubr.bf16.gmra.mxu0 %v2491
        %v2925 = vpop.f32.mrf.mxu0
        %v2926 = vadd.f32 0.0, %v2925
        %v2927 = vpop.f32.mrf.mxu0
        %v2928 = vpop.f32.mrf.mxu0
        %v2929 = vpop.f32.mrf.mxu0
        %2930 = vdwg.mxu0
        %2931 = vmatprep.subr.bf16.mxu0 0
        %2932 = vmatpush1.bf16.msra.mxu0 %v2786
        %2933 = vmatprep.subr.bf16.mxu0 0
        %2934 = vmatpush1.bf16.msra.mxu0 %v2785
        %2935 = vmatprep.subr.bf16.mxu0 0
        %2936 = vmatpush1.bf16.msra.mxu0 %v2784
        %2937 = vmatprep.subr.bf16.mxu0 0
        %2938 = vmatpush1.bf16.msra.mxu0 %v2783
        %2939 = vmatprep.subr.bf16.mxu0 0
        %2940 = vmatpush1.bf16.msra.mxu0 %v2782
        %2941 = vmatprep.subr.bf16.mxu0 0
        %2942 = vmatpush1.bf16.msra.mxu0 %v2781
        %2943 = vmatprep.subr.bf16.mxu0 0
        %2944 = vmatpush1.bf16.msra.mxu0 %v2780
        %2945 = vmatprep.subr.bf16.mxu0 0
        %2946 = vmatpush1.bf16.msra.mxu0 %v2779
        %2947 = vmatprep.subr.bf16.mxu0 0
        %2948 = vmatpush2.bf16.msra.mxu0 %v2794
        %2949 = vmatprep.subr.bf16.mxu0 0
        %2950 = vmatpush2.bf16.msra.mxu0 %v2793
        %2951 = vmatprep.subr.bf16.mxu0 0
        %2952 = vmatpush2.bf16.msra.mxu0 %v2792
        %2953 = vmatprep.subr.bf16.mxu0 0
        %2954 = vmatpush2.bf16.msra.mxu0 %v2791
        %2955 = vmatprep.subr.bf16.mxu0 0
        %2956 = vmatpush2.bf16.msra.mxu0 %v2790
        %2957 = vmatprep.subr.bf16.mxu0 0
        %2958 = vmatpush2.bf16.msra.mxu0 %v2789
        %2959 = vmatprep.subr.bf16.mxu0 0
        %2960 = vmatpush2.bf16.msra.mxu0 %v2788
        %2961 = vmatprep.subr.bf16.mxu0 0
        %2962 = vmatpush2.bf16.msra.mxu0 %v2787
        %2963 = vmatprep.mubr.bf16.mxu0 %v2494
        %2964 = vmatmul.mubr.bf16.gmra.mxu0 %v2493
        %v2965 = vpop.f32.mrf.mxu0
        %v2966 = vadd.f32 %v2926, %v2965
        %v2967 = vpop.f32.mrf.mxu0
        %v2968 = vpop.f32.mrf.mxu0
        %v2969 = vpop.f32.mrf.mxu0
        %2970 = vdwg.mxu0
        %2971 = vmatprep.subr.bf16.mxu0 0
        %2972 = vmatpush1.bf16.msra.mxu0 %v2802
        %2973 = vmatprep.subr.bf16.mxu0 0
        %2974 = vmatpush1.bf16.msra.mxu0 %v2801
        %2975 = vmatprep.subr.bf16.mxu0 0
        %2976 = vmatpush1.bf16.msra.mxu0 %v2800
        %2977 = vmatprep.subr.bf16.mxu0 0
        %2978 = vmatpush1.bf16.msra.mxu0 %v2799
        %2979 = vmatprep.subr.bf16.mxu0 0
        %2980 = vmatpush1.bf16.msra.mxu0 %v2798
        %2981 = vmatprep.subr.bf16.mxu0 0
        %2982 = vmatpush1.bf16.msra.mxu0 %v2797
        %2983 = vmatprep.subr.bf16.mxu0 0
        %2984 = vmatpush1.bf16.msra.mxu0 %v2796
        %2985 = vmatprep.subr.bf16.mxu0 0
        %2986 = vmatpush1.bf16.msra.mxu0 %v2795
        %2987 = vmatprep.subr.bf16.mxu0 0
        %2988 = vmatpush2.bf16.msra.mxu0 %v2810
        %2989 = vmatprep.subr.bf16.mxu0 0
        %2990 = vmatpush2.bf16.msra.mxu0 %v2809
        %2991 = vmatprep.subr.bf16.mxu0 0
        %2992 = vmatpush2.bf16.msra.mxu0 %v2808
        %2993 = vmatprep.subr.bf16.mxu0 0
        %2994 = vmatpush2.bf16.msra.mxu0 %v2807
        %2995 = vmatprep.subr.bf16.mxu0 0
        %2996 = vmatpush2.bf16.msra.mxu0 %v2806
        %2997 = vmatprep.subr.bf16.mxu0 0
        %2998 = vmatpush2.bf16.msra.mxu0 %v2805
        %2999 = vmatprep.subr.bf16.mxu0 0
        %3000 = vmatpush2.bf16.msra.mxu0 %v2804
        %3001 = vmatprep.subr.bf16.mxu0 0
        %3002 = vmatpush2.bf16.msra.mxu0 %v2803
        %3003 = vmatprep.mubr.bf16.mxu0 %v2496
        %3004 = vmatmul.mubr.bf16.gmra.mxu0 %v2495
        %v3005 = vpop.f32.mrf.mxu0
        %v3006 = vadd.f32 %v2966, %v3005
        %v3007 = vpop.f32.mrf.mxu0
        %v3008 = vpop.f32.mrf.mxu0
        %v3009 = vpop.f32.mrf.mxu0
        %3010 = vdwg.mxu0
        %3011 = vmatprep.subr.bf16.mxu0 0
        %3012 = vmatpush1.bf16.msra.mxu0 %v2818
        %3013 = vmatprep.subr.bf16.mxu0 0
        %3014 = vmatpush1.bf16.msra.mxu0 %v2817
        %3015 = vmatprep.subr.bf16.mxu0 0
        %3016 = vmatpush1.bf16.msra.mxu0 %v2816
        %3017 = vmatprep.subr.bf16.mxu0 0
        %3018 = vmatpush1.bf16.msra.mxu0 %v2815
        %3019 = vmatprep.subr.bf16.mxu0 0
        %3020 = vmatpush1.bf16.msra.mxu0 %v2814
        %3021 = vmatprep.subr.bf16.mxu0 0
        %3022 = vmatpush1.bf16.msra.mxu0 %v2813
        %3023 = vmatprep.subr.bf16.mxu0 0
        %3024 = vmatpush1.bf16.msra.mxu0 %v2812
        %3025 = vmatprep.subr.bf16.mxu0 0
        %3026 = vmatpush1.bf16.msra.mxu0 %v2811
        %3027 = vmatprep.subr.bf16.mxu0 0
        %3028 = vmatpush2.bf16.msra.mxu0 %v2826
        %3029 = vmatprep.subr.bf16.mxu0 0
        %3030 = vmatpush2.bf16.msra.mxu0 %v2825
        %3031 = vmatprep.subr.bf16.mxu0 0
        %3032 = vmatpush2.bf16.msra.mxu0 %v2824
        %3033 = vmatprep.subr.bf16.mxu0 0
        %3034 = vmatpush2.bf16.msra.mxu0 %v2823
        %3035 = vmatprep.subr.bf16.mxu0 0
        %3036 = vmatpush2.bf16.msra.mxu0 %v2822
        %3037 = vmatprep.subr.bf16.mxu0 0
        %3038 = vmatpush2.bf16.msra.mxu0 %v2821
        %3039 = vmatprep.subr.bf16.mxu0 0
        %3040 = vmatpush2.bf16.msra.mxu0 %v2820
        %3041 = vmatprep.subr.bf16.mxu0 0
        %3042 = vmatpush2.bf16.msra.mxu0 %v2819
        %3043 = vmatprep.mubr.bf16.mxu0 %v2498
        %3044 = vmatmul.mubr.bf16.gmra.mxu0 %v2497
        %v3045 = vpop.f32.mrf.mxu0
        %v3046 = vadd.f32 %v3006, %v3045
        %v3047 = vpop.f32.mrf.mxu0
        %v3048 = vpop.f32.mrf.mxu0
        %v3049 = vpop.f32.mrf.mxu0
        %3050 = vdwg.mxu0
        %v3051 = vadd.f32 %v2471, %v3046
        %vm3052 = vcmask 261120
        %3053 = vst.msk [vmem:[#allocation3] sm:$0xff] %vm3052, %v3051
        %p3054 = scmp.eq.s32.totalorder %s16, 1
        // Predicated region
        $region82: #{tpu_custom_call.1} parent=72 // pred_check
          %p3055 = pneg %p3054
        $region83: #{tpu_custom_call.1} parent=72 // pred_check_branch
          %3057 = sbr.rel (%p3055) target = $region85
        $region84: #{tpu_custom_call.1} parent=72 // pred_region
          %v3058 = vld [vmem:[#allocation3] sm:$0xff]
          %v3059 = vld [vmem:[#allocation4] sm:$0xff]
          %3061 = vset.pattern.permute.xlu0 0
          %3062 = vperm.xlu0 %3061, %v3059
          %v3063 = vpop.permute.xlu0 %3062
          %v3065 = vmul.f32 %v3058, %v3063
          %v3066 = vld [vmem:[%s2] sm:$0xff]
          %v3067 = vld [vmem:[%s2 + $0x8] sm:$0xff]
          %v3068 = vld [vmem:[%s2 + $0x10] sm:$0xff]
          %v3069 = vld [vmem:[%s2 + $0x18] sm:$0xff]
          %v3071 = vsel %vm3052, %v3065, 0
          %3073 = vmatprep.subr.mxu0 0.0
          %3074 = vmatpush1.msra.mxu0 0.0
          %3075 = vmatprep.subr.mxu0 0.0
          %3076 = vmatpush1.msra.mxu0 0.0
          %3077 = vmatprep.subr.mxu0 0.0
          %3078 = vmatpush1.msra.mxu0 0.0
          %3079 = vmatprep.subr.mxu0 0.0
          %3080 = vmatpush1.msra.mxu0 0.0
          %3081 = vmatprep.subr.mxu0 0.0
          %3082 = vmatpush1.msra.mxu0 0.0
          %3083 = vmatprep.subr.mxu0 0.0
          %3084 = vmatpush1.msra.mxu0 0.0
          %3085 = vmatprep.subr.mxu0 0.0
          %3086 = vmatpush1.msra.mxu0 0.0
          %3087 = vmatprep.subr.mxu0 0.0
          %3088 = vmatpush1.msra.mxu0 0.0
          %3089 = vmatprep.subr.mxu0 0.0
          %3090 = vmatpush1.msra.mxu0 0.0
          %3091 = vmatprep.subr.mxu0 0.0
          %3092 = vmatpush1.msra.mxu0 0.0
          %3093 = vmatprep.subr.mxu0 0.0
          %3094 = vmatpush1.msra.mxu0 0.0
          %3095 = vmatprep.subr.mxu0 0.0
          %3096 = vmatpush1.msra.mxu0 0.0
          %3097 = vmatprep.subr.mxu0 0.0
          %3098 = vmatpush1.msra.mxu0 %v3069
          %3099 = vmatprep.subr.mxu0 0.0
          %3100 = vmatpush1.msra.mxu0 %v3068
          %3101 = vmatprep.subr.mxu0 0.0
          %3102 = vmatpush1.msra.mxu0 %v3067
          %3103 = vmatprep.subr.mxu0 0.0
          %3104 = vmatpush1.msra.mxu0 %v3066
          %3105 = vmatprep.subr.mxu0 0.0
          %3106 = vmatpush2.msra.mxu0 0.0
          %3107 = vmatprep.subr.mxu0 0.0
          %3108 = vmatpush2.msra.mxu0 0.0
          %3109 = vmatprep.subr.mxu0 0.0
          %3110 = vmatpush2.msra.mxu0 0.0
          %3111 = vmatprep.subr.mxu0 0.0
          %3112 = vmatpush2.msra.mxu0 0.0
          %3113 = vmatprep.subr.mxu0 0.0
          %3114 = vmatpush2.msra.mxu0 0.0
          %3115 = vmatprep.subr.mxu0 0.0
          %3116 = vmatpush2.msra.mxu0 0.0
          %3117 = vmatprep.subr.mxu0 0.0
          %3118 = vmatpush2.msra.mxu0 0.0
          %3119 = vmatprep.subr.mxu0 0.0
          %3120 = vmatpush2.msra.mxu0 0.0
          %3121 = vmatprep.subr.mxu0 0.0
          %3122 = vmatpush2.msra.mxu0 0.0
          %3123 = vmatprep.subr.mxu0 0.0
          %3124 = vmatpush2.msra.mxu0 0.0
          %3125 = vmatprep.subr.mxu0 0.0
          %3126 = vmatpush2.msra.mxu0 0.0
          %3127 = vmatprep.subr.mxu0 0.0
          %3128 = vmatpush2.msra.mxu0 0.0
          %3129 = vmatprep.subr.mxu0 0.0
          %3130 = vmatpush2.msra.mxu0 0.0
          %3131 = vmatprep.subr.mxu0 0.0
          %3132 = vmatpush2.msra.mxu0 0.0
          %3133 = vmatprep.subr.mxu0 0.0
          %3134 = vmatpush2.msra.mxu0 0.0
          %3135 = vmatprep.subr.mxu0 0.0
          %3136 = vmatpush2.msra.mxu0 0.0
          %3137 = vmatprep.mubr.f32.mxu0 0.0
          %3138 = vmatmul.mubr.f32.gmra.mxu0 %v3071
          %v3139 = vpop.f32.mrf.mxu0
          %v3140 = vadd.f32 0.0, %v3139
          %v3141 = vpop.f32.mrf.mxu0
          %3142 = vdwg.mxu0
          %v3143 = vsel %vm3052, %v3140, 0.0
          %v3144 = vrot.slane %v3143, 4
          %v3145 = vadd.f32 %v3143, %v3144
          %v3146 = vrot.slane %v3145, 2
          %v3147 = vadd.f32 %v3145, %v3146
          %v3148 = vrot.slane %v3147, 1
          %v3149 = vadd.f32 %v3147, %v3148
          %v3150 = vrcp.pop 8.0
          %v3151 = vmul.f32 %v3149, %v3150
          %v3152 = vmul.f32 %v3140, %v3140
          %v3153 = vsel %vm3052, %v3152, 0.0
          %v3154 = vrot.slane %v3153, 4
          %v3155 = vadd.f32 %v3153, %v3154
          %v3156 = vrot.slane %v3155, 2
          %v3157 = vadd.f32 %v3155, %v3156
          %v3158 = vrot.slane %v3157, 1
          %v3159 = vadd.f32 %v3157, %v3158
          %v3160 = vmul.f32 %v3159, %v3150
          %v3161 = vmul.f32 %v3151, %v3151
          %v3162 = vsub.f32 %v3160, %v3161
          %v3163 = vmax.f32 %v3162, 0.0
          %v3164 = vsub.f32 %v3140, %v3151
          %v3165 = vadd.f32 %v3163, 1e-05
          %v3166 = vrsqrt.pop %v3165
          %v3167 = vmul.f32 %v3164, %v3166
          %v3168 = vxor.u32 %v3167, 2147483648
          %v3169 = vmul.f32 %v3168, 1.442695
          %v3170 = vpow.pop %v3169
          %v3171 = vadd.f32 %v3170, 1.0
          %v3172 = vrcp.pop %v3171
          %v3173 = vmul.f32 1.0, %v3172
          %v3174 = vmul.f32 %v3065, %v3173
          %3175 = vst.msk [vmem:[#allocation6] sm:$0xff] %vm3052, %v3174
        $region85: #{tpu_custom_call.1} parent=72 // pred_fallthru
          _
        // Predicated region
        $region86: #{tpu_custom_call.1} parent=72 // pred_check
          %p3176 = pneg %p118
        $region87: #{tpu_custom_call.1} parent=72 // pred_check_branch
          %3178 = sbr.rel (%p3176) target = $region89
        $region88: #{tpu_custom_call.1} parent=72 // pred_region
          %s3180 = ssub.s32 128, 128
          %3181 = vsyncadd [#allocation7], %s3180
          %s3183 = sshll.u32 [#allocation6], 4
          %s3184 = int_to_ptr.vmem [resolvable:$true] %s3183
          %3186 = dma.vmem_to_hbm [thread:$0]  %s3184, 128, %s4, [#allocation7]
        $region89: #{tpu_custom_call.1} parent=72 // pred_fallthru
          _
        // Predicated region
        $region90: #{tpu_custom_call.1} parent=72 // pred_check
          %p3187 = pneg %p118
        $region91: #{tpu_custom_call.1} parent=72 // pred_check_branch
          %3189 = sbr.rel (%p3187) target = $region93
        $region92: #{tpu_custom_call.1} parent=72 // pred_region
          %3190 = dma.done [#allocation7], 128
        $region93: #{tpu_custom_call.1} parent=72 // pred_fallthru
          _
      $region73: #{tpu_custom_call.1} parent=5 // pred_fallthru
        _
      %p3191 = scmp.le.s32.totalorder 2, %s11
      // Predicated region
      $region94: #{tpu_custom_call.1} parent=5 // pred_check
        %p3192 = pneg %p3191
      $region95: #{tpu_custom_call.1} parent=5 // pred_check_branch
        %3194 = sbr.rel (%p3192) target = $region97
      $region96: #{tpu_custom_call.1} parent=5 // pred_region
        %s3195 = ssub.s32 %s11, 2
      $region97: #{tpu_custom_call.1} parent=5 // pred_fallthru
        _
    $region6: #{tpu_custom_call.1} parent=1 // loop_footer
      %s15 = sadd.s32 1, %s11
    $region7: #{tpu_custom_call.1} parent=1 // loop_footer_branch
      %10 = sbr.rel target = $region3
    $region8: #{tpu_custom_call.1} parent=1 // loop_exit
      _
    %3196 = vsyncpa [#allocation7], 1
    %s3197 = scalar_lea.sflag [#allocation7], 1
    %3198 = vsyncpa %s3197, 1

</llo_original>
